<compile_context>
chip_gen: v6e
topology: v6e:2x2x1
jax: 0.10.0
libtpu: 0.0.40
codegen_flags: <defaults>
</compile_context>

<pallas_src>
import numpy as np
import jax
import jax.numpy as jnp
from jax.experimental import pallas as pl
from jax.experimental.pallas import tpu as pltpu

# ----------------------------- model constants ------------------------------
LATENT_C = 4            # SD latent channels
C_PAD = 8               # latent channels padded to a full sublane group
H = W = 16              # small spatial size (real SD uses 64x64 latents)
HW = H * W              # 256 tokens -> TPU lane axis
HID = 32                # mini-UNet hidden channels
SEQ = 8                 # text sequence length (real CLIP uses 77)
D_TXT = 32              # text embedding dim (real sd-turbo uses 1024)
VOCAB = 64
TEMB_DIM = 32
OUT_C = 3               # RGB
OUT_C_PAD = 8
VAE_SCALING = 0.18215
NUM_TRAIN_T = 1000
NUM_INF_STEPS = 4
BATCH = 2               # two prompts -> two generated images
K72 = 9 * C_PAD         # stacked 3x3-conv contraction dim
CONV_OFFSETS = tuple((di, dj) for di in (-1, 0, 1) for dj in (-1, 0, 1))


# ----------------------------- fused Pallas kernel --------------------------
def _dm_fused_kernel(coef_ref,              # SMEM (2*STEPS,)        f32
                     z0_ref,                # (1, C_PAD, HW)         f32
                     xtxt_ref,              # (1, SEQ, D_TXT)        f32
                     temb_ref,              # (TEMB_DIM, STEPS)      f32
                     mask_ref,              # (72, HW)               f32
                     wtxt_ref, btxt_ref,    # (D,D), (1,D)           f32
                     wk_ref, wv_ref,        # (D,HID) x2             f32
                     wtT_ref, bt_ref,       # (HID,TEMB), (HID,1)    f32
                     wci_ref, bci_ref,      # (HID,72) bf16, (HID,1) f32
                     wqT_ref, woT_ref,      # (HID,HID) f32 x2
                     wcoT_ref, bco_ref,     # (C_PAD,HID), (C_PAD,1) f32
                     wdecT_ref, bdec_ref,   # (OUT_C_PAD,C_PAD) bf16, (OUT_C_PAD,1) f32
                     img_ref):              # out (1, OUT_C_PAD, HW) f32
    f32, bf16 = jnp.float32, jnp.bfloat16

    # ------------- loop-invariant work: runs exactly once (hoisted) ----------
    # text projection (CLIP stand-in), attention K/V with Wq / Wo / Wconv_out
    # folded in algebraically:  s = (K/sqrt(d) . Wq^T) . h ,
    #                           eps_attn = (Wco . Wo^T . V^T) . softmax(s)
    ctx = jnp.dot(xtxt_ref[0], wtxt_ref[...],
                  preferred_element_type=f32) + btxt_ref[...]           # (S, D)
    k = jnp.dot(ctx, wk_ref[...], preferred_element_type=f32)           # (S, HID)
    v = jnp.dot(ctx, wv_ref[...], preferred_element_type=f32)           # (S, HID)
    kq_bf = jnp.dot(k * (1.0 / (HID ** 0.5)), wqT_ref[...],
                    preferred_element_type=f32).astype(bf16)            # (S, HID)
    wov = jnp.dot(woT_ref[...], v.T, preferred_element_type=f32)        # (HID, S)
    wcov_bf = jnp.dot(wcoT_ref[...], wov,
                      preferred_element_type=f32).astype(bf16)          # (C_PAD, S)
    wco_bf = wcoT_ref[...].astype(bf16)                                 # (C_PAD, HID)

    # timestep-embedding MLP for all 4 steps at once, bias folded in
    temb_all = jnp.dot(wtT_ref[...], temb_ref[...],
                       preferred_element_type=f32) + bt_ref[...]        # (HID, STEPS)
    temb_all = temb_all * jax.nn.sigmoid(temb_all)                      # SiLU
    bias_all = temb_all + bci_ref[...]                                  # (HID, STEPS)

    mask72 = mask_ref[...]                                              # (72, HW)
    wci_bf = wci_ref[...]                                               # (HID, 72)
    bco = bco_ref[...]

    z = z0_ref[0]                                                       # (C_PAD, HW)

    # ----------------- 4-step DDIM denoise loop (fully unrolled) -------------
    for step in range(NUM_INF_STEPS):
        # 3x3 zero-padded conv: 9 lane-rolls (XLU) stacked along sublanes,
        # one boundary-mask multiply, one bf16 cast, ONE K=72 MXU matmul.
        rolls = [z if (di == 0 and dj == 0)
                 else pltpu.roll(z, (-(di * W + dj)) % HW, axis=1)
                 for di, dj in CONV_OFFSETS]
        zstack = (jnp.concatenate(rolls, axis=0) * mask72).astype(bf16)  # (72, HW)
        h = jnp.dot(wci_bf, zstack, preferred_element_type=f32)          # (HID, HW)
        h = h + bias_all[:, step:step + 1]                               # bias + t-cond
        h = h * jax.nn.sigmoid(h)                                        # SiLU (f32)
        h_bf = h.astype(bf16)                                            # cast once

        # single-head cross-attention (V / Wo / conv_out folded into wcov)
        s = jnp.dot(kq_bf, h_bf, preferred_element_type=f32)             # (S, HW)
        p = jnp.exp(s - jnp.max(s, axis=0, keepdims=True))
        p = p * pl.reciprocal(jnp.sum(p, axis=0, keepdims=True), approx=True)
        p_bf = p.astype(bf16)                                            # cast once

        # eps = Wco.(h + Wo^T V^T p) + bco  ==  Wco.h + (Wco Wo^T V^T).p + bco
        eps = (jnp.dot(wco_bf, h_bf, preferred_element_type=f32)
               + jnp.dot(wcov_bf, p_bf, preferred_element_type=f32) + bco)

        # DDIM (eta=0) update, coefficients from SMEM scalar path
        z = coef_ref[2 * step] * z + coef_ref[2 * step + 1] * eps

    # ------------- decode: 1x1 conv (1/VAE_SCALING pre-folded) -> clamp ------
    x = jnp.dot(wdecT_ref[...], z.astype(bf16),
                preferred_element_type=f32) + bdec_ref[...]             # (OUT_C_PAD, HW)
    img_ref[0] = jnp.clip((x + 1.0) * 0.5, 0.0, 1.0).astype(img_ref.dtype)


def _bcast(shape):
    nd = len(shape)
    return pl.BlockSpec(shape, lambda b: (0,) * nd)


def run_fused_dm(coefs, z0_p, xtxt, temb_t, mask72, kw):
    batch = z0_p.shape[0]
    in_specs = [
        pl.BlockSpec(memory_space=pltpu.MemorySpace.SMEM),   # DDIM coefs (1-D scalars)
        pl.BlockSpec((1, C_PAD, HW), lambda b: (b, 0, 0)),
        pl.BlockSpec((1, SEQ, D_TXT), lambda b: (b, 0, 0)),
        _bcast((TEMB_DIM, NUM_INF_STEPS)),
        _bcast((K72, HW)),
        _bcast((D_TXT, D_TXT)), _bcast((1, D_TXT)),
        _bcast((D_TXT, HID)), _bcast((D_TXT, HID)),
        _bcast((HID, TEMB_DIM)), _bcast((HID, 1)),
        _bcast((HID, K72)), _bcast((HID, 1)),
        _bcast((HID, HID)), _bcast((HID, HID)),
        _bcast((C_PAD, HID)), _bcast((C_PAD, 1)),
        _bcast((OUT_C_PAD, C_PAD)), _bcast((OUT_C_PAD, 1)),
    ]
    return pl.pallas_call(
        _dm_fused_kernel,
        out_shape=jax.ShapeDtypeStruct((batch, OUT_C_PAD, HW), jnp.float32),
        grid=(batch,),
        in_specs=in_specs,
        out_specs=pl.BlockSpec((1, OUT_C_PAD, HW), lambda b: (b, 0, 0)),
        compiler_params=pltpu.CompilerParams(
            dimension_semantics=("parallel",)),   # batch -> 2nd TC on v7x
    )(coefs, z0_p, xtxt, temb_t, mask72,
      kw["w_txt"], kw["b_txt"], kw["wk"], kw["wv"],
      kw["w_t_T"], kw["b_t"], kw["w_ci_T"], kw["b_ci"],
      kw["wq_T"], kw["wo_T"], kw["w_co_T"], kw["b_co"],
      kw["w_dec_T"], kw["b_dec"])


# --------------------------- trace-time constants ----------------------------
def ddim_coef_schedule():
    """DDIMScheduler (scaled_linear betas, steps_offset=1, eta=0, eps pred) in NumPy.
    Returns flat interleaved coefficients [c_z0, c_e0, c_z1, c_e1, ...]."""
    betas = np.linspace(0.00085 ** 0.5, 0.012 ** 0.5, NUM_TRAIN_T,
                        dtype=np.float64) ** 2
    alphas_cumprod = np.cumprod(1.0 - betas)
    step_ratio = NUM_TRAIN_T // NUM_INF_STEPS
    timesteps = [t + 1 for t in range(0, NUM_TRAIN_T, step_ratio)][::-1]  # [751,501,251,1]
    coefs = []
    for t in timesteps:
        prev_t = t - step_ratio
        a_t = alphas_cumprod[t]
        a_prev = alphas_cumprod[prev_t] if prev_t >= 0 else 1.0
        c_z = (a_prev / a_t) ** 0.5
        c_e = (1.0 - a_prev) ** 0.5 - (a_prev ** 0.5) * ((1.0 - a_t) ** 0.5) / (a_t ** 0.5)
        coefs.extend([c_z, c_e])
    return np.asarray(timesteps, np.float32), np.asarray(coefs, np.float32)


def timestep_embedding_np(timesteps, dim=TEMB_DIM):
    half = dim // 2
    freqs = np.exp(-np.log(10000.0) * np.arange(half, dtype=np.float32) / half)
    args = np.asarray(timesteps, np.float32)[:, None] * freqs[None, :]
    return np.concatenate([np.sin(args), np.cos(args)], axis=-1)        # (T, dim)


def conv3x3_boundary_masks72():
    """(72, HW) mask: offset-o rows (replicated across C_PAD channels) zero out
    wrapped-around lane-roll contributions at the image border."""
    idx = np.arange(HW)
    hh, ww = idx // W, idx % W
    rows = []
    for di, dj in CONV_OFFSETS:
        valid = (hh + di >= 0) & (hh + di < H) & (ww + dj >= 0) & (ww + dj < W)
        rows.append(valid.astype(np.float32))
    return np.repeat(np.stack(rows), C_PAD, axis=0)                     # (72, HW)


# ------------------------------ weight plumbing ------------------------------
def prep_kernel_weights(params):
    """Channel-first layout, pad C 4->8, pre-fold conv taps / VAE scale, bf16 MXU weights."""
    f32, bf16 = jnp.float32, jnp.bfloat16
    # conv_in taps -> single (HID, 72) matrix matching the stacked-roll ordering
    w_ci = params["w_conv_in"].reshape(9, LATENT_C, HID)
    w_ci = jnp.pad(w_ci, ((0, 0), (0, C_PAD - LATENT_C), (0, 0)))       # (9, C_PAD, HID)
    w_ci72 = w_ci.transpose(2, 0, 1).reshape(HID, K72)                  # (HID, 72)
    w_co = jnp.pad(params["w_conv_out"].T, ((0, C_PAD - LATENT_C), (0, 0)))  # (C_PAD, HID)
    b_co = jnp.pad(params["b_conv_out"], (0, C_PAD - LATENT_C)).reshape(C_PAD, 1)
    w_dec = jnp.pad(params["w_dec"].T,
                    ((0, OUT_C_PAD - OUT_C), (0, C_PAD - LATENT_C)))    # (8, 8)
    w_dec = w_dec * (1.0 / VAE_SCALING)          # fold latent un-scaling into decode
    b_dec = jnp.pad(params["b_dec"], (0, OUT_C_PAD - OUT_C)).reshape(OUT_C_PAD, 1)
    return {
        "w_txt":   params["w_txt"].astype(f32),
        "b_txt":   params["b_txt"].reshape(1, D_TXT).astype(f32),
        "wk":      params["wk"].astype(f32),
        "wv":      params["wv"].astype(f32),
        "w_t_T":   params["w_t"].T.astype(f32),
        "b_t":     params["b_t"].reshape(HID, 1).astype(f32),
        "w_ci_T":  w_ci72.astype(bf16),
        "b_ci":    params["b_conv_in"].reshape(HID, 1).astype(f32),
        "wq_T":    params["wq"].T.astype(f32),    # hoisted fold only (f32, once)
        "wo_T":    params["wo"].T.astype(f32),    # hoisted fold only (f32, once)
        "w_co_T":  w_co.astype(f32),
        "b_co":    b_co.astype(f32),
        "w_dec_T": w_dec.astype(bf16),
        "b_dec":   b_dec.astype(f32),
    }


def encode_text_tokens(token_ids, params):
    # TODO(synk): stand-in for CLIPTokenizer + full CLIP transformer; the
    # embedding gather stays in XLA, the dense projection runs in the fused kernel.
    tok_emb = jnp.take(params["emb_table"], token_ids, axis=0)          # (B, S, D_TXT)
    return (tok_emb + params["pos_emb"][None]).astype(jnp.float32)


# --------------------------------- forward -----------------------------------
def dm_forward(batch, params, z_key):
    """Mirrors DM.forward(): text -> DDIM(4) denoise loop -> decode -> clamp.
    Generalized to a batch of prompts (one independent latent per prompt)."""
    timesteps, coefs_np = ddim_coef_schedule()                    # NumPy (no dev syncs)
    temb_t_np = timestep_embedding_np(timesteps).T                # (TEMB_DIM, STEPS)
    mask72_np = conv3x3_boundary_masks72()                        # (72, HW)

    xtxt = encode_text_tokens(batch["text"], params)              # (B, S, D_TXT)
    kw = prep_kernel_weights(params)
    b = xtxt.shape[0]

    # torch.randn(1, 4, 64, 64) analogue at small spatial size (per prompt).
    # NCHW flattening (c, h*W+w) IS the channel-first "tokens on lanes" layout.
    z_nchw = jax.random.normal(z_key, (b, LATENT_C, H, W), jnp.float32)
    z0 = z_nchw.reshape(b, LATENT_C, HW)
    z0_p = jnp.pad(z0, ((0, 0), (0, C_PAD - LATENT_C), (0, 0)))   # (B, C_PAD, HW)

    img_t = run_fused_dm(jnp.asarray(coefs_np), z0_p, xtxt,
                         jnp.asarray(temb_t_np, jnp.float32),
                         jnp.asarray(mask72_np), kw)              # (B, OUT_C_PAD, HW)
    return img_t[:, :OUT_C].reshape(b, OUT_C, H, W)               # NCHW


# ------------------------------ parameter init --------------------------------
def init_params(key):
    ks = jax.random.split(key, 14)
    w = lambda k, shp, s=0.05: (jax.random.normal(k, shp, jnp.float32) * s)
    return {
        "emb_table":  w(ks[0], (VOCAB, D_TXT), 0.2),
        "pos_emb":    w(ks[1], (SEQ, D_TXT), 0.02),
        "w_txt":      w(ks[2], (D_TXT, D_TXT)),
        "b_txt":      jnp.zeros((D_TXT,), jnp.float32),
        "w_t":        w(ks[3], (TEMB_DIM, HID)),
        "b_t":        jnp.zeros((HID,), jnp.float32),
        "w_conv_in":  w(ks[4], (9 * LATENT_C, HID)),
        "b_conv_in":  jnp.zeros((HID,), jnp.float32),
        "wq":         w(ks[5], (HID, HID)),
        "wk":         w(ks[6], (D_TXT, HID)),
        "wv":         w(ks[7], (D_TXT, HID)),
        "wo":         w(ks[8], (HID, HID)),
        "w_conv_out": w(ks[9], (HID, LATENT_C)),
        "b_conv_out": jnp.zeros((LATENT_C,), jnp.float32),
        "w_dec":      w(ks[10], (LATENT_C, 3), 0.2),
        "b_dec":      jnp.zeros((3,), jnp.float32),
    }


# ----------------------------------- main -------------------------------------
if __name__ == "__main__":
    key = jax.random.PRNGKey(0)
    k_tok, k_z, k_par = jax.random.split(key, 3)
    params = init_params(k_par)
    token_ids = jax.random.randint(k_tok, (BATCH, SEQ), 0, VOCAB, dtype=jnp.int32)
    batch = {"text": token_ids}

    fwd = jax.jit(dm_forward)
    img_pred = jax.block_until_ready(fwd(batch, params, k_z))

    assert img_pred.shape == (BATCH, OUT_C, H, W), img_pred.shape
    assert img_pred.dtype == jnp.float32
    assert bool(jnp.all(jnp.isfinite(img_pred)))
    assert bool(jnp.all(img_pred >= 0.0)) and bool(jnp.all(img_pred <= 1.0))
    print("KERNEL_OK")
</pallas_src>

<mosaic_0001>
module attributes {stable_mosaic.version = 11 : i64} {
  func.func @_dm_fused_kernel(%arg0: i32, %arg1: memref<8xf32, #tpu.memory_space<smem>>, %arg2: memref<1x8x256xf32, #tpu.memory_space<vmem>>, %arg3: memref<1x8x32xf32, #tpu.memory_space<vmem>>, %arg4: memref<32x4xf32, #tpu.memory_space<vmem>>, %arg5: memref<72x256xf32, #tpu.memory_space<vmem>>, %arg6: memref<32x32xf32, #tpu.memory_space<vmem>>, %arg7: memref<1x32xf32, #tpu.memory_space<vmem>>, %arg8: memref<32x32xf32, #tpu.memory_space<vmem>>, %arg9: memref<32x32xf32, #tpu.memory_space<vmem>>, %arg10: memref<32x32xf32, #tpu.memory_space<vmem>>, %arg11: memref<32x1xf32, #tpu.memory_space<vmem>>, %arg12: memref<32x72xbf16, #tpu.memory_space<vmem>>, %arg13: memref<32x1xf32, #tpu.memory_space<vmem>>, %arg14: memref<32x32xf32, #tpu.memory_space<vmem>>, %arg15: memref<32x32xf32, #tpu.memory_space<vmem>>, %arg16: memref<8x32xf32, #tpu.memory_space<vmem>>, %arg17: memref<8x1xf32, #tpu.memory_space<vmem>>, %arg18: memref<8x8xbf16, #tpu.memory_space<vmem>>, %arg19: memref<8x1xf32, #tpu.memory_space<vmem>>, %arg20: memref<1x8x256xf32, #tpu.memory_space<vmem>>) attributes {dimension_semantics = [#tpu.dimension_semantics<parallel>], iteration_bounds = array<i64: 2>, scalar_prefetch = 0 : i64, scratch_operands = 0 : i64, tpu.core_type = #tpu.core_type<tc>, window_params = [{transform_indices = @transform_0, window_bounds = array<i64: 8>}, {transform_indices = @transform_1, window_bounds = array<i64: 1, 8, 256>}, {transform_indices = @transform_2, window_bounds = array<i64: 1, 8, 32>}, {pipeline_mode = #tpu.pipeline_mode<synchronous>, transform_indices = @transform_3, window_bounds = array<i64: 32, 4>}, {pipeline_mode = #tpu.pipeline_mode<synchronous>, transform_indices = @transform_4, window_bounds = array<i64: 72, 256>}, {pipeline_mode = #tpu.pipeline_mode<synchronous>, transform_indices = @transform_5, window_bounds = array<i64: 32, 32>}, {pipeline_mode = #tpu.pipeline_mode<synchronous>, transform_indices = @transform_6, window_bounds = array<i64: 1, 32>}, {pipeline_mode = #tpu.pipeline_mode<synchronous>, transform_indices = @transform_7, window_bounds = array<i64: 32, 32>}, {pipeline_mode = #tpu.pipeline_mode<synchronous>, transform_indices = @transform_8, window_bounds = array<i64: 32, 32>}, {pipeline_mode = #tpu.pipeline_mode<synchronous>, transform_indices = @transform_9, window_bounds = array<i64: 32, 32>}, {pipeline_mode = #tpu.pipeline_mode<synchronous>, transform_indices = @transform_10, window_bounds = array<i64: 32, 1>}, {pipeline_mode = #tpu.pipeline_mode<synchronous>, transform_indices = @transform_11, window_bounds = array<i64: 32, 72>}, {pipeline_mode = #tpu.pipeline_mode<synchronous>, transform_indices = @transform_12, window_bounds = array<i64: 32, 1>}, {pipeline_mode = #tpu.pipeline_mode<synchronous>, transform_indices = @transform_13, window_bounds = array<i64: 32, 32>}, {pipeline_mode = #tpu.pipeline_mode<synchronous>, transform_indices = @transform_14, window_bounds = array<i64: 32, 32>}, {pipeline_mode = #tpu.pipeline_mode<synchronous>, transform_indices = @transform_15, window_bounds = array<i64: 8, 32>}, {pipeline_mode = #tpu.pipeline_mode<synchronous>, transform_indices = @transform_16, window_bounds = array<i64: 8, 1>}, {pipeline_mode = #tpu.pipeline_mode<synchronous>, transform_indices = @transform_17, window_bounds = array<i64: 8, 8>}, {pipeline_mode = #tpu.pipeline_mode<synchronous>, transform_indices = @transform_18, window_bounds = array<i64: 8, 1>}, {transform_indices = @transform_19, window_bounds = array<i64: 1, 8, 256>}]} {
    %c0 = arith.constant 0 : index
    %c0_0 = arith.constant 0 : index
    %c0_1 = arith.constant 0 : index
    %0 = vector.load %arg3[%c0, %c0_0, %c0_1] : memref<1x8x32xf32, #tpu.memory_space<vmem>>, vector<1x8x32xf32>
    %1 = vector.shape_cast %0 : vector<1x8x32xf32> to vector<8x32xf32>
    %c0_2 = arith.constant 0 : index
    %c0_3 = arith.constant 0 : index
    %2 = vector.load %arg6[%c0_2, %c0_3] : memref<32x32xf32, #tpu.memory_space<vmem>>, vector<32x32xf32>
    %cst = arith.constant dense<0.000000e+00> : vector<8x32xf32>
    %3 = tpu.matmul %1, %2, %cst {dimension_numbers = #tpu.dot_dimension_numbers<[1], [0], [0], [1], [0, 0, 1, 1], [], []>} : vector<8x32xf32>, vector<32x32xf32>, vector<8x32xf32> -> vector<8x32xf32>
    %c0_4 = arith.constant 0 : index
    %c0_5 = arith.constant 0 : index
    %4 = vector.load %arg7[%c0_4, %c0_5] : memref<1x32xf32, #tpu.memory_space<vmem>>, vector<1x32xf32>
    %5 = vector.broadcast %4 : vector<1x32xf32> to vector<8x32xf32>
    %6 = arith.addf %3, %5 : vector<8x32xf32>
    %c0_6 = arith.constant 0 : index
    %c0_7 = arith.constant 0 : index
    %7 = vector.load %arg8[%c0_6, %c0_7] : memref<32x32xf32, #tpu.memory_space<vmem>>, vector<32x32xf32>
    %cst_8 = arith.constant dense<0.000000e+00> : vector<8x32xf32>
    %8 = tpu.matmul %6, %7, %cst_8 {dimension_numbers = #tpu.dot_dimension_numbers<[1], [0], [0], [1], [0, 0, 1, 1], [], []>} : vector<8x32xf32>, vector<32x32xf32>, vector<8x32xf32> -> vector<8x32xf32>
    %c0_9 = arith.constant 0 : index
    %c0_10 = arith.constant 0 : index
    %9 = vector.load %arg9[%c0_9, %c0_10] : memref<32x32xf32, #tpu.memory_space<vmem>>, vector<32x32xf32>
    %cst_11 = arith.constant dense<0.000000e+00> : vector<8x32xf32>
    %10 = tpu.matmul %6, %9, %cst_11 {dimension_numbers = #tpu.dot_dimension_numbers<[1], [0], [0], [1], [0, 0, 1, 1], [], []>} : vector<8x32xf32>, vector<32x32xf32>, vector<8x32xf32> -> vector<8x32xf32>
    %cst_12 = arith.constant 0.176776692 : f32
    %11 = vector.broadcast %cst_12 : f32 to vector<8x32xf32>
    %12 = arith.mulf %8, %11 : vector<8x32xf32>
    %c0_13 = arith.constant 0 : index
    %c0_14 = arith.constant 0 : index
    %13 = vector.load %arg14[%c0_13, %c0_14] : memref<32x32xf32, #tpu.memory_space<vmem>>, vector<32x32xf32>
    %cst_15 = arith.constant dense<0.000000e+00> : vector<8x32xf32>
    %14 = tpu.matmul %12, %13, %cst_15 {dimension_numbers = #tpu.dot_dimension_numbers<[1], [0], [0], [1], [0, 0, 1, 1], [], []>} : vector<8x32xf32>, vector<32x32xf32>, vector<8x32xf32> -> vector<8x32xf32>
    %15 = arith.truncf %14 : vector<8x32xf32> to vector<8x32xbf16>
    %c0_16 = arith.constant 0 : index
    %c0_17 = arith.constant 0 : index
    %16 = vector.load %arg15[%c0_16, %c0_17] : memref<32x32xf32, #tpu.memory_space<vmem>>, vector<32x32xf32>
    %17 = tpu.transpose %10, [1, 0] : vector<8x32xf32> -> vector<32x8xf32>
    %cst_18 = arith.constant dense<0.000000e+00> : vector<32x8xf32>
    %18 = tpu.matmul %16, %17, %cst_18 {dimension_numbers = #tpu.dot_dimension_numbers<[1], [0], [0], [1], [0, 0, 1, 1], [], []>} : vector<32x32xf32>, vector<32x8xf32>, vector<32x8xf32> -> vector<32x8xf32>
    %c0_19 = arith.constant 0 : index
    %c0_20 = arith.constant 0 : index
    %19 = vector.load %arg16[%c0_19, %c0_20] : memref<8x32xf32, #tpu.memory_space<vmem>>, vector<8x32xf32>
    %cst_21 = arith.constant dense<0.000000e+00> : vector<8x8xf32>
    %20 = tpu.matmul %19, %18, %cst_21 {dimension_numbers = #tpu.dot_dimension_numbers<[1], [0], [0], [1], [0, 0, 1, 1], [], []>} : vector<8x32xf32>, vector<32x8xf32>, vector<8x8xf32> -> vector<8x8xf32>
    %21 = arith.truncf %20 : vector<8x8xf32> to vector<8x8xbf16>
    %c0_22 = arith.constant 0 : index
    %c0_23 = arith.constant 0 : index
    %22 = vector.load %arg16[%c0_22, %c0_23] : memref<8x32xf32, #tpu.memory_space<vmem>>, vector<8x32xf32>
    %23 = arith.truncf %22 : vector<8x32xf32> to vector<8x32xbf16>
    %c0_24 = arith.constant 0 : index
    %c0_25 = arith.constant 0 : index
    %24 = vector.load %arg10[%c0_24, %c0_25] : memref<32x32xf32, #tpu.memory_space<vmem>>, vector<32x32xf32>
    %c0_26 = arith.constant 0 : index
    %c0_27 = arith.constant 0 : index
    %25 = vector.load %arg4[%c0_26, %c0_27] : memref<32x4xf32, #tpu.memory_space<vmem>>, vector<32x4xf32>
    %cst_28 = arith.constant dense<0.000000e+00> : vector<32x4xf32>
    %26 = tpu.matmul %24, %25, %cst_28 {dimension_numbers = #tpu.dot_dimension_numbers<[1], [0], [0], [1], [0, 0, 1, 1], [], []>} : vector<32x32xf32>, vector<32x4xf32>, vector<32x4xf32> -> vector<32x4xf32>
    %c0_29 = arith.constant 0 : index
    %c0_30 = arith.constant 0 : index
    %27 = vector.load %arg11[%c0_29, %c0_30] : memref<32x1xf32, #tpu.memory_space<vmem>>, vector<32x1xf32>
    %28 = vector.broadcast %27 : vector<32x1xf32> to vector<32x4xf32>
    %29 = arith.addf %26, %28 : vector<32x4xf32>
    %30 = arith.negf %29 : vector<32x4xf32>
    %31 = math.exp %30 : vector<32x4xf32>
    %cst_31 = arith.constant 1.000000e+00 : f32
    %32 = vector.broadcast %cst_31 : f32 to vector<32x4xf32>
    %33 = arith.addf %32, %31 : vector<32x4xf32>
    %34 = arith.divf %32, %33 : vector<32x4xf32>
    %35 = arith.mulf %29, %34 : vector<32x4xf32>
    %c0_32 = arith.constant 0 : index
    %c0_33 = arith.constant 0 : index
    %36 = vector.load %arg13[%c0_32, %c0_33] : memref<32x1xf32, #tpu.memory_space<vmem>>, vector<32x1xf32>
    %37 = vector.broadcast %36 : vector<32x1xf32> to vector<32x4xf32>
    %38 = arith.addf %35, %37 : vector<32x4xf32>
    %c0_34 = arith.constant 0 : index
    %c0_35 = arith.constant 0 : index
    %39 = vector.load %arg5[%c0_34, %c0_35] : memref<72x256xf32, #tpu.memory_space<vmem>>, vector<72x256xf32>
    %c0_36 = arith.constant 0 : index
    %c0_37 = arith.constant 0 : index
    %40 = vector.load %arg12[%c0_36, %c0_37] : memref<32x72xbf16, #tpu.memory_space<vmem>>, vector<32x72xbf16>
    %c0_38 = arith.constant 0 : index
    %c0_39 = arith.constant 0 : index
    %41 = vector.load %arg17[%c0_38, %c0_39] : memref<8x1xf32, #tpu.memory_space<vmem>>, vector<8x1xf32>
    %c0_40 = arith.constant 0 : index
    %c0_41 = arith.constant 0 : index
    %c0_42 = arith.constant 0 : index
    %42 = vector.load %arg2[%c0_40, %c0_41, %c0_42] : memref<1x8x256xf32, #tpu.memory_space<vmem>>, vector<1x8x256xf32>
    %43 = vector.shape_cast %42 : vector<1x8x256xf32> to vector<8x256xf32>
    %c17_i32 = arith.constant 17 : i32
    %44 = tpu.dynamic_rotate %43 by %c17_i32 dim 1 : vector<8x256xf32>, i32 -> vector<8x256xf32>
    %c16_i32 = arith.constant 16 : i32
    %45 = tpu.dynamic_rotate %43 by %c16_i32 dim 1 : vector<8x256xf32>, i32 -> vector<8x256xf32>
    %c15_i32 = arith.constant 15 : i32
    %46 = tpu.dynamic_rotate %43 by %c15_i32 dim 1 : vector<8x256xf32>, i32 -> vector<8x256xf32>
    %c1_i32 = arith.constant 1 : i32
    %47 = tpu.dynamic_rotate %43 by %c1_i32 dim 1 : vector<8x256xf32>, i32 -> vector<8x256xf32>
    %c255_i32 = arith.constant 255 : i32
    %48 = tpu.dynamic_rotate %43 by %c255_i32 dim 1 : vector<8x256xf32>, i32 -> vector<8x256xf32>
    %c241_i32 = arith.constant 241 : i32
    %49 = tpu.dynamic_rotate %43 by %c241_i32 dim 1 : vector<8x256xf32>, i32 -> vector<8x256xf32>
    %c240_i32 = arith.constant 240 : i32
    %50 = tpu.dynamic_rotate %43 by %c240_i32 dim 1 : vector<8x256xf32>, i32 -> vector<8x256xf32>
    %c239_i32 = arith.constant 239 : i32
    %51 = tpu.dynamic_rotate %43 by %c239_i32 dim 1 : vector<8x256xf32>, i32 -> vector<8x256xf32>
    %52 = tpu.concatenate %44, %45, %46, %47, %43, %48, %49, %50, %51 in 0 : vector<8x256xf32>, vector<8x256xf32>, vector<8x256xf32>, vector<8x256xf32>, vector<8x256xf32>, vector<8x256xf32>, vector<8x256xf32>, vector<8x256xf32>, vector<8x256xf32> -> vector<72x256xf32>
    %53 = arith.mulf %52, %39 : vector<72x256xf32>
    %54 = arith.truncf %53 : vector<72x256xf32> to vector<72x256xbf16>
    %cst_43 = arith.constant dense<0.000000e+00> : vector<32x256xf32>
    %55 = tpu.matmul %40, %54, %cst_43 {dimension_numbers = #tpu.dot_dimension_numbers<[1], [0], [0], [1], [0, 0, 1, 1], [], []>} : vector<32x72xbf16>, vector<72x256xbf16>, vector<32x256xf32> -> vector<32x256xf32>
    %56 = vector.extract_strided_slice %38 {offsets = [0, 0], sizes = [32, 1], strides = [1, 1]} : vector<32x4xf32> to vector<32x1xf32>
    %57 = vector.broadcast %56 : vector<32x1xf32> to vector<32x256xf32>
    %58 = arith.addf %55, %57 : vector<32x256xf32>
    %59 = arith.negf %58 : vector<32x256xf32>
    %60 = math.exp %59 : vector<32x256xf32>
    %cst_44 = arith.constant 1.000000e+00 : f32
    %61 = vector.broadcast %cst_44 : f32 to vector<32x256xf32>
    %62 = arith.addf %61, %60 : vector<32x256xf32>
    %63 = arith.divf %61, %62 : vector<32x256xf32>
    %64 = arith.mulf %58, %63 : vector<32x256xf32>
    %65 = arith.truncf %64 : vector<32x256xf32> to vector<32x256xbf16>
    %cst_45 = arith.constant dense<0.000000e+00> : vector<8x256xf32>
    %66 = tpu.matmul %15, %65, %cst_45 {dimension_numbers = #tpu.dot_dimension_numbers<[1], [0], [0], [1], [0, 0, 1, 1], [], []>} : vector<8x32xbf16>, vector<32x256xbf16>, vector<8x256xf32> -> vector<8x256xf32>
    %cst_46 = arith.constant dense<0xFF800000> : vector<256xf32>
    %67 = vector.multi_reduction <maximumf>, %66, %cst_46 [0] : vector<8x256xf32> to vector<256xf32>
    %68 = vector.shape_cast %67 : vector<256xf32> to vector<1x256xf32>
    %69 = vector.broadcast %68 : vector<1x256xf32> to vector<8x256xf32>
    %70 = arith.subf %66, %69 : vector<8x256xf32>
    %71 = math.exp %70 : vector<8x256xf32>
    %cst_47 = arith.constant dense<0.000000e+00> : vector<256xf32>
    %72 = vector.multi_reduction <add>, %71, %cst_47 [0] : vector<8x256xf32> to vector<256xf32>
    %73 = vector.shape_cast %72 : vector<256xf32> to vector<1x256xf32>
    %74 = tpu.reciprocal %73 {approx = true} : vector<1x256xf32> -> vector<1x256xf32>
    %75 = vector.broadcast %74 : vector<1x256xf32> to vector<8x256xf32>
    %76 = arith.mulf %71, %75 : vector<8x256xf32>
    %77 = arith.truncf %76 : vector<8x256xf32> to vector<8x256xbf16>
    %cst_48 = arith.constant dense<0.000000e+00> : vector<8x256xf32>
    %78 = tpu.matmul %23, %65, %cst_48 {dimension_numbers = #tpu.dot_dimension_numbers<[1], [0], [0], [1], [0, 0, 1, 1], [], []>} : vector<8x32xbf16>, vector<32x256xbf16>, vector<8x256xf32> -> vector<8x256xf32>
    %cst_49 = arith.constant dense<0.000000e+00> : vector<8x256xf32>
    %79 = tpu.matmul %21, %77, %cst_49 {dimension_numbers = #tpu.dot_dimension_numbers<[1], [0], [0], [1], [0, 0, 1, 1], [], []>} : vector<8x8xbf16>, vector<8x256xbf16>, vector<8x256xf32> -> vector<8x256xf32>
    %80 = arith.addf %78, %79 : vector<8x256xf32>
    %81 = vector.broadcast %41 : vector<8x1xf32> to vector<8x256xf32>
    %82 = arith.addf %80, %81 : vector<8x256xf32>
    %c0_50 = arith.constant 0 : index
    %83 = memref.load %arg1[%c0_50] : memref<8xf32, #tpu.memory_space<smem>>
    %84 = vector.broadcast %83 : f32 to vector<8x256xf32>
    %85 = arith.mulf %84, %43 : vector<8x256xf32>
    %c1 = arith.constant 1 : index
    %86 = memref.load %arg1[%c1] : memref<8xf32, #tpu.memory_space<smem>>
    %87 = vector.broadcast %86 : f32 to vector<8x256xf32>
    %88 = arith.mulf %87, %82 : vector<8x256xf32>
    %89 = arith.addf %85, %88 : vector<8x256xf32>
    %c17_i32_51 = arith.constant 17 : i32
    %90 = tpu.dynamic_rotate %89 by %c17_i32_51 dim 1 : vector<8x256xf32>, i32 -> vector<8x256xf32>
    %c16_i32_52 = arith.constant 16 : i32
    %91 = tpu.dynamic_rotate %89 by %c16_i32_52 dim 1 : vector<8x256xf32>, i32 -> vector<8x256xf32>
    %c15_i32_53 = arith.constant 15 : i32
    %92 = tpu.dynamic_rotate %89 by %c15_i32_53 dim 1 : vector<8x256xf32>, i32 -> vector<8x256xf32>
    %c1_i32_54 = arith.constant 1 : i32
    %93 = tpu.dynamic_rotate %89 by %c1_i32_54 dim 1 : vector<8x256xf32>, i32 -> vector<8x256xf32>
    %c255_i32_55 = arith.constant 255 : i32
    %94 = tpu.dynamic_rotate %89 by %c255_i32_55 dim 1 : vector<8x256xf32>, i32 -> vector<8x256xf32>
    %c241_i32_56 = arith.constant 241 : i32
    %95 = tpu.dynamic_rotate %89 by %c241_i32_56 dim 1 : vector<8x256xf32>, i32 -> vector<8x256xf32>
    %c240_i32_57 = arith.constant 240 : i32
    %96 = tpu.dynamic_rotate %89 by %c240_i32_57 dim 1 : vector<8x256xf32>, i32 -> vector<8x256xf32>
    %c239_i32_58 = arith.constant 239 : i32
    %97 = tpu.dynamic_rotate %89 by %c239_i32_58 dim 1 : vector<8x256xf32>, i32 -> vector<8x256xf32>
    %98 = tpu.concatenate %90, %91, %92, %93, %89, %94, %95, %96, %97 in 0 : vector<8x256xf32>, vector<8x256xf32>, vector<8x256xf32>, vector<8x256xf32>, vector<8x256xf32>, vector<8x256xf32>, vector<8x256xf32>, vector<8x256xf32>, vector<8x256xf32> -> vector<72x256xf32>
    %99 = arith.mulf %98, %39 : vector<72x256xf32>
    %100 = arith.truncf %99 : vector<72x256xf32> to vector<72x256xbf16>
    %cst_59 = arith.constant dense<0.000000e+00> : vector<32x256xf32>
    %101 = tpu.matmul %40, %100, %cst_59 {dimension_numbers = #tpu.dot_dimension_numbers<[1], [0], [0], [1], [0, 0, 1, 1], [], []>} : vector<32x72xbf16>, vector<72x256xbf16>, vector<32x256xf32> -> vector<32x256xf32>
    %102 = vector.extract_strided_slice %38 {offsets = [0, 1], sizes = [32, 1], strides = [1, 1]} : vector<32x4xf32> to vector<32x1xf32>
    %103 = vector.broadcast %102 : vector<32x1xf32> to vector<32x256xf32>
    %104 = arith.addf %101, %103 : vector<32x256xf32>
    %105 = arith.negf %104 : vector<32x256xf32>
    %106 = math.exp %105 : vector<32x256xf32>
    %cst_60 = arith.constant 1.000000e+00 : f32
    %107 = vector.broadcast %cst_60 : f32 to vector<32x256xf32>
    %108 = arith.addf %107, %106 : vector<32x256xf32>
    %109 = arith.divf %107, %108 : vector<32x256xf32>
    %110 = arith.mulf %104, %109 : vector<32x256xf32>
    %111 = arith.truncf %110 : vector<32x256xf32> to vector<32x256xbf16>
    %cst_61 = arith.constant dense<0.000000e+00> : vector<8x256xf32>
    %112 = tpu.matmul %15, %111, %cst_61 {dimension_numbers = #tpu.dot_dimension_numbers<[1], [0], [0], [1], [0, 0, 1, 1], [], []>} : vector<8x32xbf16>, vector<32x256xbf16>, vector<8x256xf32> -> vector<8x256xf32>
    %cst_62 = arith.constant dense<0xFF800000> : vector<256xf32>
    %113 = vector.multi_reduction <maximumf>, %112, %cst_62 [0] : vector<8x256xf32> to vector<256xf32>
    %114 = vector.shape_cast %113 : vector<256xf32> to vector<1x256xf32>
    %115 = vector.broadcast %114 : vector<1x256xf32> to vector<8x256xf32>
    %116 = arith.subf %112, %115 : vector<8x256xf32>
    %117 = math.exp %116 : vector<8x256xf32>
    %cst_63 = arith.constant dense<0.000000e+00> : vector<256xf32>
    %118 = vector.multi_reduction <add>, %117, %cst_63 [0] : vector<8x256xf32> to vector<256xf32>
    %119 = vector.shape_cast %118 : vector<256xf32> to vector<1x256xf32>
    %120 = tpu.reciprocal %119 {approx = true} : vector<1x256xf32> -> vector<1x256xf32>
    %121 = vector.broadcast %120 : vector<1x256xf32> to vector<8x256xf32>
    %122 = arith.mulf %117, %121 : vector<8x256xf32>
    %123 = arith.truncf %122 : vector<8x256xf32> to vector<8x256xbf16>
    %cst_64 = arith.constant dense<0.000000e+00> : vector<8x256xf32>
    %124 = tpu.matmul %23, %111, %cst_64 {dimension_numbers = #tpu.dot_dimension_numbers<[1], [0], [0], [1], [0, 0, 1, 1], [], []>} : vector<8x32xbf16>, vector<32x256xbf16>, vector<8x256xf32> -> vector<8x256xf32>
    %cst_65 = arith.constant dense<0.000000e+00> : vector<8x256xf32>
    %125 = tpu.matmul %21, %123, %cst_65 {dimension_numbers = #tpu.dot_dimension_numbers<[1], [0], [0], [1], [0, 0, 1, 1], [], []>} : vector<8x8xbf16>, vector<8x256xbf16>, vector<8x256xf32> -> vector<8x256xf32>
    %126 = arith.addf %124, %125 : vector<8x256xf32>
    %127 = vector.broadcast %41 : vector<8x1xf32> to vector<8x256xf32>
    %128 = arith.addf %126, %127 : vector<8x256xf32>
    %c2 = arith.constant 2 : index
    %129 = memref.load %arg1[%c2] : memref<8xf32, #tpu.memory_space<smem>>
    %130 = vector.broadcast %129 : f32 to vector<8x256xf32>
    %131 = arith.mulf %130, %89 : vector<8x256xf32>
    %c3 = arith.constant 3 : index
    %132 = memref.load %arg1[%c3] : memref<8xf32, #tpu.memory_space<smem>>
    %133 = vector.broadcast %132 : f32 to vector<8x256xf32>
    %134 = arith.mulf %133, %128 : vector<8x256xf32>
    %135 = arith.addf %131, %134 : vector<8x256xf32>
    %c17_i32_66 = arith.constant 17 : i32
    %136 = tpu.dynamic_rotate %135 by %c17_i32_66 dim 1 : vector<8x256xf32>, i32 -> vector<8x256xf32>
    %c16_i32_67 = arith.constant 16 : i32
    %137 = tpu.dynamic_rotate %135 by %c16_i32_67 dim 1 : vector<8x256xf32>, i32 -> vector<8x256xf32>
    %c15_i32_68 = arith.constant 15 : i32
    %138 = tpu.dynamic_rotate %135 by %c15_i32_68 dim 1 : vector<8x256xf32>, i32 -> vector<8x256xf32>
    %c1_i32_69 = arith.constant 1 : i32
    %139 = tpu.dynamic_rotate %135 by %c1_i32_69 dim 1 : vector<8x256xf32>, i32 -> vector<8x256xf32>
    %c255_i32_70 = arith.constant 255 : i32
    %140 = tpu.dynamic_rotate %135 by %c255_i32_70 dim 1 : vector<8x256xf32>, i32 -> vector<8x256xf32>
    %c241_i32_71 = arith.constant 241 : i32
    %141 = tpu.dynamic_rotate %135 by %c241_i32_71 dim 1 : vector<8x256xf32>, i32 -> vector<8x256xf32>
    %c240_i32_72 = arith.constant 240 : i32
    %142 = tpu.dynamic_rotate %135 by %c240_i32_72 dim 1 : vector<8x256xf32>, i32 -> vector<8x256xf32>
    %c239_i32_73 = arith.constant 239 : i32
    %143 = tpu.dynamic_rotate %135 by %c239_i32_73 dim 1 : vector<8x256xf32>, i32 -> vector<8x256xf32>
    %144 = tpu.concatenate %136, %137, %138, %139, %135, %140, %141, %142, %143 in 0 : vector<8x256xf32>, vector<8x256xf32>, vector<8x256xf32>, vector<8x256xf32>, vector<8x256xf32>, vector<8x256xf32>, vector<8x256xf32>, vector<8x256xf32>, vector<8x256xf32> -> vector<72x256xf32>
    %145 = arith.mulf %144, %39 : vector<72x256xf32>
    %146 = arith.truncf %145 : vector<72x256xf32> to vector<72x256xbf16>
    %cst_74 = arith.constant dense<0.000000e+00> : vector<32x256xf32>
    %147 = tpu.matmul %40, %146, %cst_74 {dimension_numbers = #tpu.dot_dimension_numbers<[1], [0], [0], [1], [0, 0, 1, 1], [], []>} : vector<32x72xbf16>, vector<72x256xbf16>, vector<32x256xf32> -> vector<32x256xf32>
    %148 = vector.extract_strided_slice %38 {offsets = [0, 2], sizes = [32, 1], strides = [1, 1]} : vector<32x4xf32> to vector<32x1xf32>
    %149 = vector.broadcast %148 : vector<32x1xf32> to vector<32x256xf32>
    %150 = arith.addf %147, %149 : vector<32x256xf32>
    %151 = arith.negf %150 : vector<32x256xf32>
    %152 = math.exp %151 : vector<32x256xf32>
    %cst_75 = arith.constant 1.000000e+00 : f32
    %153 = vector.broadcast %cst_75 : f32 to vector<32x256xf32>
    %154 = arith.addf %153, %152 : vector<32x256xf32>
    %155 = arith.divf %153, %154 : vector<32x256xf32>
    %156 = arith.mulf %150, %155 : vector<32x256xf32>
    %157 = arith.truncf %156 : vector<32x256xf32> to vector<32x256xbf16>
    %cst_76 = arith.constant dense<0.000000e+00> : vector<8x256xf32>
    %158 = tpu.matmul %15, %157, %cst_76 {dimension_numbers = #tpu.dot_dimension_numbers<[1], [0], [0], [1], [0, 0, 1, 1], [], []>} : vector<8x32xbf16>, vector<32x256xbf16>, vector<8x256xf32> -> vector<8x256xf32>
    %cst_77 = arith.constant dense<0xFF800000> : vector<256xf32>
    %159 = vector.multi_reduction <maximumf>, %158, %cst_77 [0] : vector<8x256xf32> to vector<256xf32>
    %160 = vector.shape_cast %159 : vector<256xf32> to vector<1x256xf32>
    %161 = vector.broadcast %160 : vector<1x256xf32> to vector<8x256xf32>
    %162 = arith.subf %158, %161 : vector<8x256xf32>
    %163 = math.exp %162 : vector<8x256xf32>
    %cst_78 = arith.constant dense<0.000000e+00> : vector<256xf32>
    %164 = vector.multi_reduction <add>, %163, %cst_78 [0] : vector<8x256xf32> to vector<256xf32>
    %165 = vector.shape_cast %164 : vector<256xf32> to vector<1x256xf32>
    %166 = tpu.reciprocal %165 {approx = true} : vector<1x256xf32> -> vector<1x256xf32>
    %167 = vector.broadcast %166 : vector<1x256xf32> to vector<8x256xf32>
    %168 = arith.mulf %163, %167 : vector<8x256xf32>
    %169 = arith.truncf %168 : vector<8x256xf32> to vector<8x256xbf16>
    %cst_79 = arith.constant dense<0.000000e+00> : vector<8x256xf32>
    %170 = tpu.matmul %23, %157, %cst_79 {dimension_numbers = #tpu.dot_dimension_numbers<[1], [0], [0], [1], [0, 0, 1, 1], [], []>} : vector<8x32xbf16>, vector<32x256xbf16>, vector<8x256xf32> -> vector<8x256xf32>
    %cst_80 = arith.constant dense<0.000000e+00> : vector<8x256xf32>
    %171 = tpu.matmul %21, %169, %cst_80 {dimension_numbers = #tpu.dot_dimension_numbers<[1], [0], [0], [1], [0, 0, 1, 1], [], []>} : vector<8x8xbf16>, vector<8x256xbf16>, vector<8x256xf32> -> vector<8x256xf32>
    %172 = arith.addf %170, %171 : vector<8x256xf32>
    %173 = vector.broadcast %41 : vector<8x1xf32> to vector<8x256xf32>
    %174 = arith.addf %172, %173 : vector<8x256xf32>
    %c4 = arith.constant 4 : index
    %175 = memref.load %arg1[%c4] : memref<8xf32, #tpu.memory_space<smem>>
    %176 = vector.broadcast %175 : f32 to vector<8x256xf32>
    %177 = arith.mulf %176, %135 : vector<8x256xf32>
    %c5 = arith.constant 5 : index
    %178 = memref.load %arg1[%c5] : memref<8xf32, #tpu.memory_space<smem>>
    %179 = vector.broadcast %178 : f32 to vector<8x256xf32>
    %180 = arith.mulf %179, %174 : vector<8x256xf32>
    %181 = arith.addf %177, %180 : vector<8x256xf32>
    %c17_i32_81 = arith.constant 17 : i32
    %182 = tpu.dynamic_rotate %181 by %c17_i32_81 dim 1 : vector<8x256xf32>, i32 -> vector<8x256xf32>
    %c16_i32_82 = arith.constant 16 : i32
    %183 = tpu.dynamic_rotate %181 by %c16_i32_82 dim 1 : vector<8x256xf32>, i32 -> vector<8x256xf32>
    %c15_i32_83 = arith.constant 15 : i32
    %184 = tpu.dynamic_rotate %181 by %c15_i32_83 dim 1 : vector<8x256xf32>, i32 -> vector<8x256xf32>
    %c1_i32_84 = arith.constant 1 : i32
    %185 = tpu.dynamic_rotate %181 by %c1_i32_84 dim 1 : vector<8x256xf32>, i32 -> vector<8x256xf32>
    %c255_i32_85 = arith.constant 255 : i32
    %186 = tpu.dynamic_rotate %181 by %c255_i32_85 dim 1 : vector<8x256xf32>, i32 -> vector<8x256xf32>
    %c241_i32_86 = arith.constant 241 : i32
    %187 = tpu.dynamic_rotate %181 by %c241_i32_86 dim 1 : vector<8x256xf32>, i32 -> vector<8x256xf32>
    %c240_i32_87 = arith.constant 240 : i32
    %188 = tpu.dynamic_rotate %181 by %c240_i32_87 dim 1 : vector<8x256xf32>, i32 -> vector<8x256xf32>
    %c239_i32_88 = arith.constant 239 : i32
    %189 = tpu.dynamic_rotate %181 by %c239_i32_88 dim 1 : vector<8x256xf32>, i32 -> vector<8x256xf32>
    %190 = tpu.concatenate %182, %183, %184, %185, %181, %186, %187, %188, %189 in 0 : vector<8x256xf32>, vector<8x256xf32>, vector<8x256xf32>, vector<8x256xf32>, vector<8x256xf32>, vector<8x256xf32>, vector<8x256xf32>, vector<8x256xf32>, vector<8x256xf32> -> vector<72x256xf32>
    %191 = arith.mulf %190, %39 : vector<72x256xf32>
    %192 = arith.truncf %191 : vector<72x256xf32> to vector<72x256xbf16>
    %cst_89 = arith.constant dense<0.000000e+00> : vector<32x256xf32>
    %193 = tpu.matmul %40, %192, %cst_89 {dimension_numbers = #tpu.dot_dimension_numbers<[1], [0], [0], [1], [0, 0, 1, 1], [], []>} : vector<32x72xbf16>, vector<72x256xbf16>, vector<32x256xf32> -> vector<32x256xf32>
    %194 = vector.extract_strided_slice %38 {offsets = [0, 3], sizes = [32, 1], strides = [1, 1]} : vector<32x4xf32> to vector<32x1xf32>
    %195 = vector.broadcast %194 : vector<32x1xf32> to vector<32x256xf32>
    %196 = arith.addf %193, %195 : vector<32x256xf32>
    %197 = arith.negf %196 : vector<32x256xf32>
    %198 = math.exp %197 : vector<32x256xf32>
    %cst_90 = arith.constant 1.000000e+00 : f32
    %199 = vector.broadcast %cst_90 : f32 to vector<32x256xf32>
    %200 = arith.addf %199, %198 : vector<32x256xf32>
    %201 = arith.divf %199, %200 : vector<32x256xf32>
    %202 = arith.mulf %196, %201 : vector<32x256xf32>
    %203 = arith.truncf %202 : vector<32x256xf32> to vector<32x256xbf16>
    %cst_91 = arith.constant dense<0.000000e+00> : vector<8x256xf32>
    %204 = tpu.matmul %15, %203, %cst_91 {dimension_numbers = #tpu.dot_dimension_numbers<[1], [0], [0], [1], [0, 0, 1, 1], [], []>} : vector<8x32xbf16>, vector<32x256xbf16>, vector<8x256xf32> -> vector<8x256xf32>
    %cst_92 = arith.constant dense<0xFF800000> : vector<256xf32>
    %205 = vector.multi_reduction <maximumf>, %204, %cst_92 [0] : vector<8x256xf32> to vector<256xf32>
    %206 = vector.shape_cast %205 : vector<256xf32> to vector<1x256xf32>
    %207 = vector.broadcast %206 : vector<1x256xf32> to vector<8x256xf32>
    %208 = arith.subf %204, %207 : vector<8x256xf32>
    %209 = math.exp %208 : vector<8x256xf32>
    %cst_93 = arith.constant dense<0.000000e+00> : vector<256xf32>
    %210 = vector.multi_reduction <add>, %209, %cst_93 [0] : vector<8x256xf32> to vector<256xf32>
    %211 = vector.shape_cast %210 : vector<256xf32> to vector<1x256xf32>
    %212 = tpu.reciprocal %211 {approx = true} : vector<1x256xf32> -> vector<1x256xf32>
    %213 = vector.broadcast %212 : vector<1x256xf32> to vector<8x256xf32>
    %214 = arith.mulf %209, %213 : vector<8x256xf32>
    %215 = arith.truncf %214 : vector<8x256xf32> to vector<8x256xbf16>
    %cst_94 = arith.constant dense<0.000000e+00> : vector<8x256xf32>
    %216 = tpu.matmul %23, %203, %cst_94 {dimension_numbers = #tpu.dot_dimension_numbers<[1], [0], [0], [1], [0, 0, 1, 1], [], []>} : vector<8x32xbf16>, vector<32x256xbf16>, vector<8x256xf32> -> vector<8x256xf32>
    %cst_95 = arith.constant dense<0.000000e+00> : vector<8x256xf32>
    %217 = tpu.matmul %21, %215, %cst_95 {dimension_numbers = #tpu.dot_dimension_numbers<[1], [0], [0], [1], [0, 0, 1, 1], [], []>} : vector<8x8xbf16>, vector<8x256xbf16>, vector<8x256xf32> -> vector<8x256xf32>
    %218 = arith.addf %216, %217 : vector<8x256xf32>
    %219 = vector.broadcast %41 : vector<8x1xf32> to vector<8x256xf32>
    %220 = arith.addf %218, %219 : vector<8x256xf32>
    %c6 = arith.constant 6 : index
    %221 = memref.load %arg1[%c6] : memref<8xf32, #tpu.memory_space<smem>>
    %222 = vector.broadcast %221 : f32 to vector<8x256xf32>
    %223 = arith.mulf %222, %181 : vector<8x256xf32>
    %c7 = arith.constant 7 : index
    %224 = memref.load %arg1[%c7] : memref<8xf32, #tpu.memory_space<smem>>
    %225 = vector.broadcast %224 : f32 to vector<8x256xf32>
    %226 = arith.mulf %225, %220 : vector<8x256xf32>
    %227 = arith.addf %223, %226 : vector<8x256xf32>
    %c0_96 = arith.constant 0 : index
    %c0_97 = arith.constant 0 : index
    %228 = vector.load %arg18[%c0_96, %c0_97] : memref<8x8xbf16, #tpu.memory_space<vmem>>, vector<8x8xbf16>
    %229 = arith.truncf %227 : vector<8x256xf32> to vector<8x256xbf16>
    %cst_98 = arith.constant dense<0.000000e+00> : vector<8x256xf32>
    %230 = tpu.matmul %228, %229, %cst_98 {dimension_numbers = #tpu.dot_dimension_numbers<[1], [0], [0], [1], [0, 0, 1, 1], [], []>} : vector<8x8xbf16>, vector<8x256xbf16>, vector<8x256xf32> -> vector<8x256xf32>
    %c0_99 = arith.constant 0 : index
    %c0_100 = arith.constant 0 : index
    %231 = vector.load %arg19[%c0_99, %c0_100] : memref<8x1xf32, #tpu.memory_space<vmem>>, vector<8x1xf32>
    %232 = vector.broadcast %231 : vector<8x1xf32> to vector<8x256xf32>
    %233 = arith.addf %230, %232 : vector<8x256xf32>
    %cst_101 = arith.constant 1.000000e+00 : f32
    %234 = vector.broadcast %cst_101 : f32 to vector<8x256xf32>
    %235 = arith.addf %233, %234 : vector<8x256xf32>
    %cst_102 = arith.constant 5.000000e-01 : f32
    %236 = vector.broadcast %cst_102 : f32 to vector<8x256xf32>
    %237 = arith.mulf %235, %236 : vector<8x256xf32>
    %cst_103 = arith.constant 0.000000e+00 : f32
    %cst_104 = arith.constant 1.000000e+00 : f32
    %238 = vector.broadcast %cst_103 : f32 to vector<8x256xf32>
    %239 = arith.maximumf %238, %237 : vector<8x256xf32>
    %240 = vector.broadcast %cst_104 : f32 to vector<8x256xf32>
    %241 = arith.minimumf %240, %239 : vector<8x256xf32>
    %c0_105 = arith.constant 0 : index
    %c0_106 = arith.constant 0 : index
    %c0_107 = arith.constant 0 : index
    %242 = vector.load %arg20[%c0_105, %c0_106, %c0_107] : memref<1x8x256xf32, #tpu.memory_space<vmem>>, vector<1x8x256xf32>
    %243 = vector.shape_cast %242 : vector<1x8x256xf32> to vector<8x256xf32>
    %244 = vector.shape_cast %241 : vector<8x256xf32> to vector<1x8x256xf32>
    tpu.vector_store %arg20[%c0_105, %c0_106, %c0_107], %244 {strides = array<i32>} : memref<1x8x256xf32, #tpu.memory_space<vmem>>, vector<1x8x256xf32>,
    return
  }
  func.func @transform_0(%arg0: i32) -> i32 {
    %c0_i32 = arith.constant 0 : i32
    %c0_i32_0 = arith.constant 0 : i32
    return %c0_i32 : i32
  }
  func.func @transform_1(%arg0: i32) -> (i32, i32, i32) {
    %c0_i32 = arith.constant 0 : i32
    %c0_i32_0 = arith.constant 0 : i32
    %c0_i32_1 = arith.constant 0 : i32
    return %arg0, %c0_i32, %c0_i32_0 : i32, i32, i32
  }
  func.func @transform_2(%arg0: i32) -> (i32, i32, i32) {
    %c0_i32 = arith.constant 0 : i32
    %c0_i32_0 = arith.constant 0 : i32
    %c0_i32_1 = arith.constant 0 : i32
    return %arg0, %c0_i32, %c0_i32_0 : i32, i32, i32
  }
  func.func @transform_3(%arg0: i32) -> (i32, i32) {
    %c0_i32 = arith.constant 0 : i32
    %c0_i32_0 = arith.constant 0 : i32
    %c0_i32_1 = arith.constant 0 : i32
    return %c0_i32, %c0_i32_0 : i32, i32
  }
  func.func @transform_4(%arg0: i32) -> (i32, i32) {
    %c0_i32 = arith.constant 0 : i32
    %c0_i32_0 = arith.constant 0 : i32
    %c0_i32_1 = arith.constant 0 : i32
    return %c0_i32, %c0_i32_0 : i32, i32
  }
  func.func @transform_5(%arg0: i32) -> (i32, i32) {
    %c0_i32 = arith.constant 0 : i32
    %c0_i32_0 = arith.constant 0 : i32
    %c0_i32_1 = arith.constant 0 : i32
    return %c0_i32, %c0_i32_0 : i32, i32
  }
  func.func @transform_6(%arg0: i32) -> (i32, i32) {
    %c0_i32 = arith.constant 0 : i32
    %c0_i32_0 = arith.constant 0 : i32
    %c0_i32_1 = arith.constant 0 : i32
    return %c0_i32, %c0_i32_0 : i32, i32
  }
  func.func @transform_7(%arg0: i32) -> (i32, i32) {
    %c0_i32 = arith.constant 0 : i32
    %c0_i32_0 = arith.constant 0 : i32
    %c0_i32_1 = arith.constant 0 : i32
    return %c0_i32, %c0_i32_0 : i32, i32
  }
  func.func @transform_8(%arg0: i32) -> (i32, i32) {
    %c0_i32 = arith.constant 0 : i32
    %c0_i32_0 = arith.constant 0 : i32
    %c0_i32_1 = arith.constant 0 : i32
    return %c0_i32, %c0_i32_0 : i32, i32
  }
  func.func @transform_9(%arg0: i32) -> (i32, i32) {
    %c0_i32 = arith.constant 0 : i32
    %c0_i32_0 = arith.constant 0 : i32
    %c0_i32_1 = arith.constant 0 : i32
    return %c0_i32, %c0_i32_0 : i32, i32
  }
  func.func @transform_10(%arg0: i32) -> (i32, i32) {
    %c0_i32 = arith.constant 0 : i32
    %c0_i32_0 = arith.constant 0 : i32
    %c0_i32_1 = arith.constant 0 : i32
    return %c0_i32, %c0_i32_0 : i32, i32
  }
  func.func @transform_11(%arg0: i32) -> (i32, i32) {
    %c0_i32 = arith.constant 0 : i32
    %c0_i32_0 = arith.constant 0 : i32
    %c0_i32_1 = arith.constant 0 : i32
    return %c0_i32, %c0_i32_0 : i32, i32
  }
  func.func @transform_12(%arg0: i32) -> (i32, i32) {
    %c0_i32 = arith.constant 0 : i32
    %c0_i32_0 = arith.constant 0 : i32
    %c0_i32_1 = arith.constant 0 : i32
    return %c0_i32, %c0_i32_0 : i32, i32
  }
  func.func @transform_13(%arg0: i32) -> (i32, i32) {
    %c0_i32 = arith.constant 0 : i32
    %c0_i32_0 = arith.constant 0 : i32
    %c0_i32_1 = arith.constant 0 : i32
    return %c0_i32, %c0_i32_0 : i32, i32
  }
  func.func @transform_14(%arg0: i32) -> (i32, i32) {
    %c0_i32 = arith.constant 0 : i32
    %c0_i32_0 = arith.constant 0 : i32
    %c0_i32_1 = arith.constant 0 : i32
    return %c0_i32, %c0_i32_0 : i32, i32
  }
  func.func @transform_15(%arg0: i32) -> (i32, i32) {
    %c0_i32 = arith.constant 0 : i32
    %c0_i32_0 = arith.constant 0 : i32
    %c0_i32_1 = arith.constant 0 : i32
    return %c0_i32, %c0_i32_0 : i32, i32
  }
  func.func @transform_16(%arg0: i32) -> (i32, i32) {
    %c0_i32 = arith.constant 0 : i32
    %c0_i32_0 = arith.constant 0 : i32
    %c0_i32_1 = arith.constant 0 : i32
    return %c0_i32, %c0_i32_0 : i32, i32
  }
  func.func @transform_17(%arg0: i32) -> (i32, i32) {
    %c0_i32 = arith.constant 0 : i32
    %c0_i32_0 = arith.constant 0 : i32
    %c0_i32_1 = arith.constant 0 : i32
    return %c0_i32, %c0_i32_0 : i32, i32
  }
  func.func @transform_18(%arg0: i32) -> (i32, i32) {
    %c0_i32 = arith.constant 0 : i32
    %c0_i32_0 = arith.constant 0 : i32
    %c0_i32_1 = arith.constant 0 : i32
    return %c0_i32, %c0_i32_0 : i32, i32
  }
  func.func @transform_19(%arg0: i32) -> (i32, i32, i32) {
    %c0_i32 = arith.constant 0 : i32
    %c0_i32_0 = arith.constant 0 : i32
    %c0_i32_1 = arith.constant 0 : i32
    return %arg0, %c0_i32, %c0_i32_0 : i32, i32, i32
  }
}

</mosaic_0001>

<llo_original>
// kernel: dm_forward.1
$region0: #{dm_forward.1}
  #allocation0 [shape = 'u32[]', space=smem, size = 0x4, offset = 0x4, fixed_abs, tag = 'smem constant byte address 0x4 - core index']
  #allocation1 [shape = 'u32[144,128]{1,0:T(1,128)}', space=vmem, size = 0x12000, scoped, tag = 'internal scratch']
  %s0 = inlined_call_operand.vmem [shape: f32[8], index: 0, kind: input, shape index: {}]
  %s1 = inlined_call_operand.vmem [shape: f32[2,8,256], index: 1, kind: input, shape index: {}]
  %s2 = inlined_call_operand.vmem [shape: f32[2,8,32], index: 2, kind: input, shape index: {}]
  %s3 = inlined_call_operand.vmem [shape: f32[32,4], index: 3, kind: input, shape index: {}]
  %s4 = inlined_call_operand.vmem [shape: f32[72,256], index: 4, kind: input, shape index: {}]
  %s5 = inlined_call_operand.vmem [shape: f32[32,32], index: 5, kind: input, shape index: {}]
  %s6 = inlined_call_operand.vmem [shape: f32[1,32], index: 6, kind: input, shape index: {}]
  %s7 = inlined_call_operand.vmem [shape: f32[32,32], index: 7, kind: input, shape index: {}]
  %s8 = inlined_call_operand.vmem [shape: f32[32,32], index: 8, kind: input, shape index: {}]
  %s9 = inlined_call_operand.vmem [shape: f32[32,32], index: 9, kind: input, shape index: {}]
  %s10 = inlined_call_operand.vmem [shape: f32[32,1], index: 10, kind: input, shape index: {}]
  %s11 = inlined_call_operand.vmem [shape: bf16[32,72], index: 11, kind: input, shape index: {}]
  %s12 = inlined_call_operand.vmem [shape: f32[32,1], index: 12, kind: input, shape index: {}]
  %s13 = inlined_call_operand.vmem [shape: f32[32,32], index: 13, kind: input, shape index: {}]
  %s14 = inlined_call_operand.vmem [shape: f32[32,32], index: 14, kind: input, shape index: {}]
  %s15 = inlined_call_operand.vmem [shape: f32[8,32], index: 15, kind: input, shape index: {}]
  %s16 = inlined_call_operand.vmem [shape: f32[8,1], index: 16, kind: input, shape index: {}]
  %s17 = inlined_call_operand.vmem [shape: bf16[8,8], index: 17, kind: input, shape index: {}]
  %s18 = inlined_call_operand.vmem [shape: f32[8,1], index: 18, kind: input, shape index: {}]
  %s19 = inlined_call_operand.vmem [shape: f32[2,8,256], index: 19, kind: output, shape index: {}]
  %s20 = sld [smem:[#allocation0]]
  $region113: #{dm_forward.1} parent=0
    _
  %s22 = ssub.s32 1, %s20
  %s23 = scalar_select 0, %s22, %s20
  $region1: #{dm_forward.1} parent=0
    #allocation2 [shape = 'u8[512]{0}', space=smem, size = 0x200, scoped, tag = 'input window, operand 0, single buffered']
    #allocation3 [shape = 's32[2]{0}', space=sflag, size = 0x8, scoped, tag = 'scoped memory for dm_forward.1']
    %24 = vsyncpa [#allocation3], 0
    loop: start=0, step=1, limit=4
    $region2: #{dm_forward.1} parent=1 // loop_pre_header
      _
    $region3: #{dm_forward.1} parent=1 // loop_header
      %s26 = sphi 0, %s30
      %p27 = scmp.ge.s32.totalorder %s26, 4
      %s34 = sphi 0, %s34
      %s36 = sphi 0, %s34
      %s37 = sphi 0, %s36
      %s51 = sphi 0, %s37
      %s57 = sphi 0, %s59
      %s60 = sphi 0, %s57
      %s61 = sphi 0, %s60
      %s77 = sphi 0, %s61
      %s83 = sphi 0, %s85
      %s86 = sphi 0, %s83
      %s87 = sphi 0, %s86
      %s103 = sphi 0, %s87
      %s107 = sphi 0, %s107
      %s109 = sphi 0, %s107
      %s110 = sphi 0, %s109
      %s124 = sphi 0, %s110
      %s128 = sphi 0, %s128
      %s130 = sphi 0, %s128
      %s131 = sphi 0, %s130
      %s145 = sphi 0, %s131
      %s149 = sphi 0, %s149
      %s151 = sphi 0, %s149
      %s152 = sphi 0, %s151
      %s166 = sphi 0, %s152
      %s170 = sphi 0, %s170
      %s172 = sphi 0, %s170
      %s173 = sphi 0, %s172
      %s187 = sphi 0, %s173
      %s191 = sphi 0, %s191
      %s193 = sphi 0, %s191
      %s194 = sphi 0, %s193
      %s208 = sphi 0, %s194
      %s212 = sphi 0, %s212
      %s214 = sphi 0, %s212
      %s215 = sphi 0, %s214
      %s229 = sphi 0, %s215
      %s233 = sphi 0, %s233
      %s235 = sphi 0, %s233
      %s236 = sphi 0, %s235
      %s250 = sphi 0, %s236
      %s254 = sphi 0, %s254
      %s256 = sphi 0, %s254
      %s257 = sphi 0, %s256
      %s271 = sphi 0, %s257
      %s275 = sphi 0, %s275
      %s277 = sphi 0, %s275
      %s278 = sphi 0, %s277
      %s292 = sphi 0, %s278
      %s296 = sphi 0, %s296
      %s298 = sphi 0, %s296
      %s299 = sphi 0, %s298
      %s313 = sphi 0, %s299
      %s317 = sphi 0, %s317
      %s319 = sphi 0, %s317
      %s320 = sphi 0, %s319
      %s334 = sphi 0, %s320
      %s338 = sphi 0, %s338
      %s340 = sphi 0, %s338
      %s341 = sphi 0, %s340
      %s355 = sphi 0, %s341
      %s359 = sphi 0, %s359
      %s361 = sphi 0, %s359
      %s362 = sphi 0, %s361
      %s376 = sphi 0, %s362
      %s380 = sphi 0, %s380
      %s382 = sphi 0, %s380
      %s383 = sphi 0, %s382
      %s397 = sphi 0, %s383
      %s401 = sphi 0, %s401
      %s403 = sphi 0, %s401
      %s404 = sphi 0, %s403
      %s418 = sphi 0, %s404
      %s422 = sphi 0, %s422
      %s424 = sphi 0, %s422
      %s425 = sphi 0, %s424
      %s439 = sphi 0, %s425
      %s445 = sphi 0, %s447
      %s448 = sphi 0, %s445
      %s449 = sphi 0, %s448
      %s465 = sphi 0, %s449
    $region4: #{dm_forward.1} parent=1 // loop_header_branch
      %29 = sbr.rel (%p27) target = $region8
    $region5: #{dm_forward.1} parent=1 // loop_body
      %s31 = ssub.s32 %s26, 1
      %s32 = ssub.s32 %s26, 2
      %s33 = sadd.s32 %s26, 1
      %s35 = sadd.s32 %s34, 1
      %p38 = scmp.eq.s32.totalorder %s26, 1
      %p39 = scmp.ne.s32.totalorder %s34, %s36
      %p40 = scmp.eq.s32.totalorder %s26, 0
      %p41 = por %p39, %p40
      %p42 = scmp.ne.s32.totalorder %s34, %s36
      %p43 = scmp.eq.s32.totalorder %s31, 1
      %p44 = por %p42, %p43
      %p45 = scmp.ne.s32.totalorder %s36, %s37
      %p46 = scmp.eq.s32.totalorder %s31, 0
      %p47 = por %p45, %p46
      %p48 = scmp.ne.s32.totalorder %s36, %s37
      %p49 = scmp.eq.s32.totalorder %s32, 1
      %p50 = por %p48, %p49
      %p52 = scmp.ne.s32.totalorder %s37, %s51
      %p53 = scmp.eq.s32.totalorder %s32, 0
      %p54 = por %p52, %p53
      %s55 = ssub.s32 %s26, %s33
      %p56 = scmp.eq.s32.totalorder %s55, 0
      %s58 = sadd.s32 %s57, 1
      %s59 = scalar_select %p56, %s57, %s58
      %p62 = pneg %p56
      %p63 = scmp.eq.s32.totalorder %s26, 1
      %p64 = por %p62, %p63
      %p65 = scmp.ne.s32.totalorder %s57, %s60
      %p66 = scmp.eq.s32.totalorder %s26, 0
      %p67 = por %p65, %p66
      %p68 = scmp.ne.s32.totalorder %s57, %s60
      %p69 = scmp.eq.s32.totalorder %s31, 1
      %p70 = por %p68, %p69
      %p71 = scmp.ne.s32.totalorder %s60, %s61
      %p72 = scmp.eq.s32.totalorder %s31, 0
      %p73 = por %p71, %p72
      %p74 = scmp.ne.s32.totalorder %s60, %s61
      %p75 = scmp.eq.s32.totalorder %s32, 1
      %p76 = por %p74, %p75
      %p78 = scmp.ne.s32.totalorder %s61, %s77
      %p79 = scmp.eq.s32.totalorder %s32, 0
      %p80 = por %p78, %p79
      %s81 = ssub.s32 %s26, %s33
      %p82 = scmp.eq.s32.totalorder %s81, 0
      %s84 = sadd.s32 %s83, 1
      %s85 = scalar_select %p82, %s83, %s84
      %p88 = pneg %p82
      %p89 = scmp.eq.s32.totalorder %s26, 1
      %p90 = por %p88, %p89
      %p91 = scmp.ne.s32.totalorder %s83, %s86
      %p92 = scmp.eq.s32.totalorder %s26, 0
      %p93 = por %p91, %p92
      %p94 = scmp.ne.s32.totalorder %s83, %s86
      %p95 = scmp.eq.s32.totalorder %s31, 1
      %p96 = por %p94, %p95
      %p97 = scmp.ne.s32.totalorder %s86, %s87
      %p98 = scmp.eq.s32.totalorder %s31, 0
      %p99 = por %p97, %p98
      %p100 = scmp.ne.s32.totalorder %s86, %s87
      %p101 = scmp.eq.s32.totalorder %s32, 1
      %p102 = por %p100, %p101
      %p104 = scmp.ne.s32.totalorder %s87, %s103
      %p105 = scmp.eq.s32.totalorder %s32, 0
      %p106 = por %p104, %p105
      %s108 = sadd.s32 %s107, 1
      %p111 = scmp.eq.s32.totalorder %s26, 1
      %p112 = scmp.ne.s32.totalorder %s107, %s109
      %p113 = scmp.eq.s32.totalorder %s26, 0
      %p114 = por %p112, %p113
      %p115 = scmp.ne.s32.totalorder %s107, %s109
      %p116 = scmp.eq.s32.totalorder %s31, 1
      %p117 = por %p115, %p116
      %p118 = scmp.ne.s32.totalorder %s109, %s110
      %p119 = scmp.eq.s32.totalorder %s31, 0
      %p120 = por %p118, %p119
      %p121 = scmp.ne.s32.totalorder %s109, %s110
      %p122 = scmp.eq.s32.totalorder %s32, 1
      %p123 = por %p121, %p122
      %p125 = scmp.ne.s32.totalorder %s110, %s124
      %p126 = scmp.eq.s32.totalorder %s32, 0
      %p127 = por %p125, %p126
      %s129 = sadd.s32 %s128, 1
      %p132 = scmp.eq.s32.totalorder %s26, 1
      %p133 = scmp.ne.s32.totalorder %s128, %s130
      %p134 = scmp.eq.s32.totalorder %s26, 0
      %p135 = por %p133, %p134
      %p136 = scmp.ne.s32.totalorder %s128, %s130
      %p137 = scmp.eq.s32.totalorder %s31, 1
      %p138 = por %p136, %p137
      %p139 = scmp.ne.s32.totalorder %s130, %s131
      %p140 = scmp.eq.s32.totalorder %s31, 0
      %p141 = por %p139, %p140
      %p142 = scmp.ne.s32.totalorder %s130, %s131
      %p143 = scmp.eq.s32.totalorder %s32, 1
      %p144 = por %p142, %p143
      %p146 = scmp.ne.s32.totalorder %s131, %s145
      %p147 = scmp.eq.s32.totalorder %s32, 0
      %p148 = por %p146, %p147
      %s150 = sadd.s32 %s149, 1
      %p153 = scmp.eq.s32.totalorder %s26, 1
      %p154 = scmp.ne.s32.totalorder %s149, %s151
      %p155 = scmp.eq.s32.totalorder %s26, 0
      %p156 = por %p154, %p155
      %p157 = scmp.ne.s32.totalorder %s149, %s151
      %p158 = scmp.eq.s32.totalorder %s31, 1
      %p159 = por %p157, %p158
      %p160 = scmp.ne.s32.totalorder %s151, %s152
      %p161 = scmp.eq.s32.totalorder %s31, 0
      %p162 = por %p160, %p161
      %p163 = scmp.ne.s32.totalorder %s151, %s152
      %p164 = scmp.eq.s32.totalorder %s32, 1
      %p165 = por %p163, %p164
      %p167 = scmp.ne.s32.totalorder %s152, %s166
      %p168 = scmp.eq.s32.totalorder %s32, 0
      %p169 = por %p167, %p168
      %s171 = sadd.s32 %s170, 1
      %p174 = scmp.eq.s32.totalorder %s26, 1
      %p175 = scmp.ne.s32.totalorder %s170, %s172
      %p176 = scmp.eq.s32.totalorder %s26, 0
      %p177 = por %p175, %p176
      %p178 = scmp.ne.s32.totalorder %s170, %s172
      %p179 = scmp.eq.s32.totalorder %s31, 1
      %p180 = por %p178, %p179
      %p181 = scmp.ne.s32.totalorder %s172, %s173
      %p182 = scmp.eq.s32.totalorder %s31, 0
      %p183 = por %p181, %p182
      %p184 = scmp.ne.s32.totalorder %s172, %s173
      %p185 = scmp.eq.s32.totalorder %s32, 1
      %p186 = por %p184, %p185
      %p188 = scmp.ne.s32.totalorder %s173, %s187
      %p189 = scmp.eq.s32.totalorder %s32, 0
      %p190 = por %p188, %p189
      %s192 = sadd.s32 %s191, 1
      %p195 = scmp.eq.s32.totalorder %s26, 1
      %p196 = scmp.ne.s32.totalorder %s191, %s193
      %p197 = scmp.eq.s32.totalorder %s26, 0
      %p198 = por %p196, %p197
      %p199 = scmp.ne.s32.totalorder %s191, %s193
      %p200 = scmp.eq.s32.totalorder %s31, 1
      %p201 = por %p199, %p200
      %p202 = scmp.ne.s32.totalorder %s193, %s194
      %p203 = scmp.eq.s32.totalorder %s31, 0
      %p204 = por %p202, %p203
      %p205 = scmp.ne.s32.totalorder %s193, %s194
      %p206 = scmp.eq.s32.totalorder %s32, 1
      %p207 = por %p205, %p206
      %p209 = scmp.ne.s32.totalorder %s194, %s208
      %p210 = scmp.eq.s32.totalorder %s32, 0
      %p211 = por %p209, %p210
      %s213 = sadd.s32 %s212, 1
      %p216 = scmp.eq.s32.totalorder %s26, 1
      %p217 = scmp.ne.s32.totalorder %s212, %s214
      %p218 = scmp.eq.s32.totalorder %s26, 0
      %p219 = por %p217, %p218
      %p220 = scmp.ne.s32.totalorder %s212, %s214
      %p221 = scmp.eq.s32.totalorder %s31, 1
      %p222 = por %p220, %p221
      %p223 = scmp.ne.s32.totalorder %s214, %s215
      %p224 = scmp.eq.s32.totalorder %s31, 0
      %p225 = por %p223, %p224
      %p226 = scmp.ne.s32.totalorder %s214, %s215
      %p227 = scmp.eq.s32.totalorder %s32, 1
      %p228 = por %p226, %p227
      %p230 = scmp.ne.s32.totalorder %s215, %s229
      %p231 = scmp.eq.s32.totalorder %s32, 0
      %p232 = por %p230, %p231
      %s234 = sadd.s32 %s233, 1
      %p237 = scmp.eq.s32.totalorder %s26, 1
      %p238 = scmp.ne.s32.totalorder %s233, %s235
      %p239 = scmp.eq.s32.totalorder %s26, 0
      %p240 = por %p238, %p239
      %p241 = scmp.ne.s32.totalorder %s233, %s235
      %p242 = scmp.eq.s32.totalorder %s31, 1
      %p243 = por %p241, %p242
      %p244 = scmp.ne.s32.totalorder %s235, %s236
      %p245 = scmp.eq.s32.totalorder %s31, 0
      %p246 = por %p244, %p245
      %p247 = scmp.ne.s32.totalorder %s235, %s236
      %p248 = scmp.eq.s32.totalorder %s32, 1
      %p249 = por %p247, %p248
      %p251 = scmp.ne.s32.totalorder %s236, %s250
      %p252 = scmp.eq.s32.totalorder %s32, 0
      %p253 = por %p251, %p252
      %s255 = sadd.s32 %s254, 1
      %p258 = scmp.eq.s32.totalorder %s26, 1
      %p259 = scmp.ne.s32.totalorder %s254, %s256
      %p260 = scmp.eq.s32.totalorder %s26, 0
      %p261 = por %p259, %p260
      %p262 = scmp.ne.s32.totalorder %s254, %s256
      %p263 = scmp.eq.s32.totalorder %s31, 1
      %p264 = por %p262, %p263
      %p265 = scmp.ne.s32.totalorder %s256, %s257
      %p266 = scmp.eq.s32.totalorder %s31, 0
      %p267 = por %p265, %p266
      %p268 = scmp.ne.s32.totalorder %s256, %s257
      %p269 = scmp.eq.s32.totalorder %s32, 1
      %p270 = por %p268, %p269
      %p272 = scmp.ne.s32.totalorder %s257, %s271
      %p273 = scmp.eq.s32.totalorder %s32, 0
      %p274 = por %p272, %p273
      %s276 = sadd.s32 %s275, 1
      %p279 = scmp.eq.s32.totalorder %s26, 1
      %p280 = scmp.ne.s32.totalorder %s275, %s277
      %p281 = scmp.eq.s32.totalorder %s26, 0
      %p282 = por %p280, %p281
      %p283 = scmp.ne.s32.totalorder %s275, %s277
      %p284 = scmp.eq.s32.totalorder %s31, 1
      %p285 = por %p283, %p284
      %p286 = scmp.ne.s32.totalorder %s277, %s278
      %p287 = scmp.eq.s32.totalorder %s31, 0
      %p288 = por %p286, %p287
      %p289 = scmp.ne.s32.totalorder %s277, %s278
      %p290 = scmp.eq.s32.totalorder %s32, 1
      %p291 = por %p289, %p290
      %p293 = scmp.ne.s32.totalorder %s278, %s292
      %p294 = scmp.eq.s32.totalorder %s32, 0
      %p295 = por %p293, %p294
      %s297 = sadd.s32 %s296, 1
      %p300 = scmp.eq.s32.totalorder %s26, 1
      %p301 = scmp.ne.s32.totalorder %s296, %s298
      %p302 = scmp.eq.s32.totalorder %s26, 0
      %p303 = por %p301, %p302
      %p304 = scmp.ne.s32.totalorder %s296, %s298
      %p305 = scmp.eq.s32.totalorder %s31, 1
      %p306 = por %p304, %p305
      %p307 = scmp.ne.s32.totalorder %s298, %s299
      %p308 = scmp.eq.s32.totalorder %s31, 0
      %p309 = por %p307, %p308
      %p310 = scmp.ne.s32.totalorder %s298, %s299
      %p311 = scmp.eq.s32.totalorder %s32, 1
      %p312 = por %p310, %p311
      %p314 = scmp.ne.s32.totalorder %s299, %s313
      %p315 = scmp.eq.s32.totalorder %s32, 0
      %p316 = por %p314, %p315
      %s318 = sadd.s32 %s317, 1
      %p321 = scmp.eq.s32.totalorder %s26, 1
      %p322 = scmp.ne.s32.totalorder %s317, %s319
      %p323 = scmp.eq.s32.totalorder %s26, 0
      %p324 = por %p322, %p323
      %p325 = scmp.ne.s32.totalorder %s317, %s319
      %p326 = scmp.eq.s32.totalorder %s31, 1
      %p327 = por %p325, %p326
      %p328 = scmp.ne.s32.totalorder %s319, %s320
      %p329 = scmp.eq.s32.totalorder %s31, 0
      %p330 = por %p328, %p329
      %p331 = scmp.ne.s32.totalorder %s319, %s320
      %p332 = scmp.eq.s32.totalorder %s32, 1
      %p333 = por %p331, %p332
      %p335 = scmp.ne.s32.totalorder %s320, %s334
      %p336 = scmp.eq.s32.totalorder %s32, 0
      %p337 = por %p335, %p336
      %s339 = sadd.s32 %s338, 1
      %p342 = scmp.eq.s32.totalorder %s26, 1
      %p343 = scmp.ne.s32.totalorder %s338, %s340
      %p344 = scmp.eq.s32.totalorder %s26, 0
      %p345 = por %p343, %p344
      %p346 = scmp.ne.s32.totalorder %s338, %s340
      %p347 = scmp.eq.s32.totalorder %s31, 1
      %p348 = por %p346, %p347
      %p349 = scmp.ne.s32.totalorder %s340, %s341
      %p350 = scmp.eq.s32.totalorder %s31, 0
      %p351 = por %p349, %p350
      %p352 = scmp.ne.s32.totalorder %s340, %s341
      %p353 = scmp.eq.s32.totalorder %s32, 1
      %p354 = por %p352, %p353
      %p356 = scmp.ne.s32.totalorder %s341, %s355
      %p357 = scmp.eq.s32.totalorder %s32, 0
      %p358 = por %p356, %p357
      %s360 = sadd.s32 %s359, 1
      %p363 = scmp.eq.s32.totalorder %s26, 1
      %p364 = scmp.ne.s32.totalorder %s359, %s361
      %p365 = scmp.eq.s32.totalorder %s26, 0
      %p366 = por %p364, %p365
      %p367 = scmp.ne.s32.totalorder %s359, %s361
      %p368 = scmp.eq.s32.totalorder %s31, 1
      %p369 = por %p367, %p368
      %p370 = scmp.ne.s32.totalorder %s361, %s362
      %p371 = scmp.eq.s32.totalorder %s31, 0
      %p372 = por %p370, %p371
      %p373 = scmp.ne.s32.totalorder %s361, %s362
      %p374 = scmp.eq.s32.totalorder %s32, 1
      %p375 = por %p373, %p374
      %p377 = scmp.ne.s32.totalorder %s362, %s376
      %p378 = scmp.eq.s32.totalorder %s32, 0
      %p379 = por %p377, %p378
      %s381 = sadd.s32 %s380, 1
      %p384 = scmp.eq.s32.totalorder %s26, 1
      %p385 = scmp.ne.s32.totalorder %s380, %s382
      %p386 = scmp.eq.s32.totalorder %s26, 0
      %p387 = por %p385, %p386
      %p388 = scmp.ne.s32.totalorder %s380, %s382
      %p389 = scmp.eq.s32.totalorder %s31, 1
      %p390 = por %p388, %p389
      %p391 = scmp.ne.s32.totalorder %s382, %s383
      %p392 = scmp.eq.s32.totalorder %s31, 0
      %p393 = por %p391, %p392
      %p394 = scmp.ne.s32.totalorder %s382, %s383
      %p395 = scmp.eq.s32.totalorder %s32, 1
      %p396 = por %p394, %p395
      %p398 = scmp.ne.s32.totalorder %s383, %s397
      %p399 = scmp.eq.s32.totalorder %s32, 0
      %p400 = por %p398, %p399
      %s402 = sadd.s32 %s401, 1
      %p405 = scmp.eq.s32.totalorder %s26, 1
      %p406 = scmp.ne.s32.totalorder %s401, %s403
      %p407 = scmp.eq.s32.totalorder %s26, 0
      %p408 = por %p406, %p407
      %p409 = scmp.ne.s32.totalorder %s401, %s403
      %p410 = scmp.eq.s32.totalorder %s31, 1
      %p411 = por %p409, %p410
      %p412 = scmp.ne.s32.totalorder %s403, %s404
      %p413 = scmp.eq.s32.totalorder %s31, 0
      %p414 = por %p412, %p413
      %p415 = scmp.ne.s32.totalorder %s403, %s404
      %p416 = scmp.eq.s32.totalorder %s32, 1
      %p417 = por %p415, %p416
      %p419 = scmp.ne.s32.totalorder %s404, %s418
      %p420 = scmp.eq.s32.totalorder %s32, 0
      %p421 = por %p419, %p420
      %s423 = sadd.s32 %s422, 1
      %p426 = scmp.eq.s32.totalorder %s26, 1
      %p427 = scmp.ne.s32.totalorder %s422, %s424
      %p428 = scmp.eq.s32.totalorder %s26, 0
      %p429 = por %p427, %p428
      %p430 = scmp.ne.s32.totalorder %s422, %s424
      %p431 = scmp.eq.s32.totalorder %s31, 1
      %p432 = por %p430, %p431
      %p433 = scmp.ne.s32.totalorder %s424, %s425
      %p434 = scmp.eq.s32.totalorder %s31, 0
      %p435 = por %p433, %p434
      %p436 = scmp.ne.s32.totalorder %s424, %s425
      %p437 = scmp.eq.s32.totalorder %s32, 1
      %p438 = por %p436, %p437
      %p440 = scmp.ne.s32.totalorder %s425, %s439
      %p441 = scmp.eq.s32.totalorder %s32, 0
      %p442 = por %p440, %p441
      %s443 = ssub.s32 %s26, %s33
      %p444 = scmp.eq.s32.totalorder %s443, 0
      %s446 = sadd.s32 %s445, 1
      %s447 = scalar_select %p444, %s445, %s446
      %p450 = pneg %p444
      %p451 = scmp.eq.s32.totalorder %s26, 1
      %p452 = por %p450, %p451
      %p453 = scmp.ne.s32.totalorder %s445, %s448
      %p454 = scmp.eq.s32.totalorder %s26, 0
      %p455 = por %p453, %p454
      %p456 = scmp.ne.s32.totalorder %s445, %s448
      %p457 = scmp.eq.s32.totalorder %s31, 1
      %p458 = por %p456, %p457
      %p459 = scmp.ne.s32.totalorder %s448, %s449
      %p460 = scmp.eq.s32.totalorder %s31, 0
      %p461 = por %p459, %p460
      %p462 = scmp.ne.s32.totalorder %s448, %s449
      %p463 = scmp.eq.s32.totalorder %s32, 1
      %p464 = por %p462, %p463
      %p466 = scmp.ne.s32.totalorder %s449, %s465
      %p467 = scmp.eq.s32.totalorder %s32, 0
      %p468 = por %p466, %p467
      %p469 = scmp.le.s32.totalorder 1, %s26
      %p470 = scmp.lt.s32.totalorder %s26, 3
      %p471 = pnand %p469, %p470
      %p472 = pneg %p471
      // Predicated region
      $region9: #{dm_forward.1} parent=5 // pred_check
        _
      $region10: #{dm_forward.1} parent=5 // pred_check_branch
        %474 = sbr.rel (%p471) target = $region12
      $region11: #{dm_forward.1} parent=5 // pred_region
        %s475 = ssub.s32 %s26, 1
        // Predicated region
        $region13: #{dm_forward.1} parent=11 // pred_check
          %p476 = pneg %p47
        $region14: #{dm_forward.1} parent=11 // pred_check_branch
          %478 = sbr.rel (%p476) target = $region16
        $region15: #{dm_forward.1} parent=11 // pred_region
          %s480 = ssub.s32 16, 16
          %481 = vsyncadd [#allocation3], %s480
          %s483 = sshll.u32 %s0, 4
          %s484 = int_to_ptr.vmem [resolvable:$true] %s483
          %486 = dma.vmem_to_smem %s484, 16, [#allocation2], [#allocation3]
        $region16: #{dm_forward.1} parent=11 // pred_fallthru
          _
        // Predicated region
        $region17: #{dm_forward.1} parent=11 // pred_check
          %p487 = pneg %p120
        $region18: #{dm_forward.1} parent=11 // pred_check_branch
          %489 = sbr.rel (%p487) target = $region20
        $region19: #{dm_forward.1} parent=11 // pred_region
          _
        $region20: #{dm_forward.1} parent=11 // pred_fallthru
          _
        // Predicated region
        $region21: #{dm_forward.1} parent=11 // pred_check
          %p490 = pneg %p141
        $region22: #{dm_forward.1} parent=11 // pred_check_branch
          %492 = sbr.rel (%p490) target = $region24
        $region23: #{dm_forward.1} parent=11 // pred_region
          _
        $region24: #{dm_forward.1} parent=11 // pred_fallthru
          _
        // Predicated region
        $region25: #{dm_forward.1} parent=11 // pred_check
          %p493 = pneg %p162
        $region26: #{dm_forward.1} parent=11 // pred_check_branch
          %495 = sbr.rel (%p493) target = $region28
        $region27: #{dm_forward.1} parent=11 // pred_region
          _
        $region28: #{dm_forward.1} parent=11 // pred_fallthru
          _
        // Predicated region
        $region29: #{dm_forward.1} parent=11 // pred_check
          %p496 = pneg %p183
        $region30: #{dm_forward.1} parent=11 // pred_check_branch
          %498 = sbr.rel (%p496) target = $region32
        $region31: #{dm_forward.1} parent=11 // pred_region
          _
        $region32: #{dm_forward.1} parent=11 // pred_fallthru
          _
        // Predicated region
        $region33: #{dm_forward.1} parent=11 // pred_check
          %p499 = pneg %p204
        $region34: #{dm_forward.1} parent=11 // pred_check_branch
          %501 = sbr.rel (%p499) target = $region36
        $region35: #{dm_forward.1} parent=11 // pred_region
          _
        $region36: #{dm_forward.1} parent=11 // pred_fallthru
          _
        // Predicated region
        $region37: #{dm_forward.1} parent=11 // pred_check
          %p502 = pneg %p225
        $region38: #{dm_forward.1} parent=11 // pred_check_branch
          %504 = sbr.rel (%p502) target = $region40
        $region39: #{dm_forward.1} parent=11 // pred_region
          _
        $region40: #{dm_forward.1} parent=11 // pred_fallthru
          _
        // Predicated region
        $region41: #{dm_forward.1} parent=11 // pred_check
          %p505 = pneg %p246
        $region42: #{dm_forward.1} parent=11 // pred_check_branch
          %507 = sbr.rel (%p505) target = $region44
        $region43: #{dm_forward.1} parent=11 // pred_region
          _
        $region44: #{dm_forward.1} parent=11 // pred_fallthru
          _
        // Predicated region
        $region45: #{dm_forward.1} parent=11 // pred_check
          %p508 = pneg %p267
        $region46: #{dm_forward.1} parent=11 // pred_check_branch
          %510 = sbr.rel (%p508) target = $region48
        $region47: #{dm_forward.1} parent=11 // pred_region
          _
        $region48: #{dm_forward.1} parent=11 // pred_fallthru
          _
        // Predicated region
        $region49: #{dm_forward.1} parent=11 // pred_check
          %p511 = pneg %p288
        $region50: #{dm_forward.1} parent=11 // pred_check_branch
          %513 = sbr.rel (%p511) target = $region52
        $region51: #{dm_forward.1} parent=11 // pred_region
          _
        $region52: #{dm_forward.1} parent=11 // pred_fallthru
          _
        // Predicated region
        $region53: #{dm_forward.1} parent=11 // pred_check
          %p514 = pneg %p309
        $region54: #{dm_forward.1} parent=11 // pred_check_branch
          %516 = sbr.rel (%p514) target = $region56
        $region55: #{dm_forward.1} parent=11 // pred_region
          _
        $region56: #{dm_forward.1} parent=11 // pred_fallthru
          _
        // Predicated region
        $region57: #{dm_forward.1} parent=11 // pred_check
          %p517 = pneg %p330
        $region58: #{dm_forward.1} parent=11 // pred_check_branch
          %519 = sbr.rel (%p517) target = $region60
        $region59: #{dm_forward.1} parent=11 // pred_region
          _
        $region60: #{dm_forward.1} parent=11 // pred_fallthru
          _
        // Predicated region
        $region61: #{dm_forward.1} parent=11 // pred_check
          %p520 = pneg %p351
        $region62: #{dm_forward.1} parent=11 // pred_check_branch
          %522 = sbr.rel (%p520) target = $region64
        $region63: #{dm_forward.1} parent=11 // pred_region
          _
        $region64: #{dm_forward.1} parent=11 // pred_fallthru
          _
        // Predicated region
        $region65: #{dm_forward.1} parent=11 // pred_check
          %p523 = pneg %p372
        $region66: #{dm_forward.1} parent=11 // pred_check_branch
          %525 = sbr.rel (%p523) target = $region68
        $region67: #{dm_forward.1} parent=11 // pred_region
          _
        $region68: #{dm_forward.1} parent=11 // pred_fallthru
          _
        // Predicated region
        $region69: #{dm_forward.1} parent=11 // pred_check
          %p526 = pneg %p393
        $region70: #{dm_forward.1} parent=11 // pred_check_branch
          %528 = sbr.rel (%p526) target = $region72
        $region71: #{dm_forward.1} parent=11 // pred_region
          _
        $region72: #{dm_forward.1} parent=11 // pred_fallthru
          _
        // Predicated region
        $region73: #{dm_forward.1} parent=11 // pred_check
          %p529 = pneg %p414
        $region74: #{dm_forward.1} parent=11 // pred_check_branch
          %531 = sbr.rel (%p529) target = $region76
        $region75: #{dm_forward.1} parent=11 // pred_region
          _
        $region76: #{dm_forward.1} parent=11 // pred_fallthru
          _
        // Predicated region
        $region77: #{dm_forward.1} parent=11 // pred_check
          %p532 = pneg %p435
        $region78: #{dm_forward.1} parent=11 // pred_check_branch
          %534 = sbr.rel (%p532) target = $region80
        $region79: #{dm_forward.1} parent=11 // pred_region
          _
        $region80: #{dm_forward.1} parent=11 // pred_fallthru
          _
      $region12: #{dm_forward.1} parent=5 // pred_fallthru
        _
      %p535 = scmp.lt.s32.totalorder %s26, 2
      // Predicated region
      $region81: #{dm_forward.1} parent=5 // pred_check
        %p536 = pneg %p535
      $region82: #{dm_forward.1} parent=5 // pred_check_branch
        %538 = sbr.rel (%p536) target = $region84
      $region83: #{dm_forward.1} parent=5 // pred_region
        // Predicated region
        $region85: #{dm_forward.1} parent=83 // pred_check
          %p539 = pneg %p67
        $region86: #{dm_forward.1} parent=83 // pred_check_branch
          %541 = sbr.rel (%p539) target = $region88
        $region87: #{dm_forward.1} parent=83 // pred_region
          %p542 = scmp.lt.s32.totalorder %s26, 1
          %s543 = scalar_select %p542, %s26, 1
          %s544 = smul.addr %s543, 2
          %s545 = smul.addr %s544, 8
          %s546 = scalar_lea.vmem %s1, %s545
        $region88: #{dm_forward.1} parent=83 // pred_fallthru
          _
        // Predicated region
        $region89: #{dm_forward.1} parent=83 // pred_check
          %p547 = pneg %p93
        $region90: #{dm_forward.1} parent=83 // pred_check_branch
          %549 = sbr.rel (%p547) target = $region92
        $region91: #{dm_forward.1} parent=83 // pred_region
          %p550 = scmp.lt.s32.totalorder %s26, 1
          %s551 = scalar_select %p550, %s26, 1
          %s552 = smul.addr %s551, 8
          %s553 = scalar_lea.vmem %s2, %s552
        $region92: #{dm_forward.1} parent=83 // pred_fallthru
          _
      $region84: #{dm_forward.1} parent=5 // pred_fallthru
        _
      %p554 = scmp.le.s32.totalorder 1, %s26
      %p555 = scmp.lt.s32.totalorder %s26, 3
      %p556 = pnand %p554, %p555
      %p557 = pneg %p556
      // Predicated region
      $region93: #{dm_forward.1} parent=5 // pred_check
        _
      $region94: #{dm_forward.1} parent=5 // pred_check_branch
        %559 = sbr.rel (%p556) target = $region96
      $region95: #{dm_forward.1} parent=5 // pred_region
        %s560 = ssub.s32 %s26, 1
        // Predicated region
        $region97: #{dm_forward.1} parent=95 // pred_check
          %p561 = pneg %p47
        $region98: #{dm_forward.1} parent=95 // pred_check_branch
          %563 = sbr.rel (%p561) target = $region100
        $region99: #{dm_forward.1} parent=95 // pred_region
          %564 = dma.done [#allocation3], 16
        $region100: #{dm_forward.1} parent=95 // pred_fallthru
          _
        %565 = sfence
        %p566 = pneg %p47
        %p567 = pneg %p44
        %p568 = scmp.lt.s32.totalorder %s31, 1
        %s569 = scalar_select %p568, %s31, 1
        %s570 = smul.addr %s569, 2
        %s571 = smul.addr %s570, 8
        %s572 = scalar_lea.vmem %s1, %s571
        %p573 = pneg %p73
        %p574 = pneg %p70
        %p575 = scmp.lt.s32.totalorder %s31, 1
        %s576 = scalar_select %p575, %s31, 1
        %s577 = smul.addr %s576, 8
        %s578 = scalar_lea.vmem %s2, %s577
        %p579 = pneg %p99
        %p580 = pneg %p96
        %p581 = pneg %p120
        %p582 = pneg %p117
        %p583 = pneg %p141
        %p584 = pneg %p138
        %p585 = pneg %p162
        %p586 = pneg %p159
        %p587 = pneg %p183
        %p588 = pneg %p180
        %p589 = pneg %p204
        %p590 = pneg %p201
        %p591 = pneg %p225
        %p592 = pneg %p222
        %p593 = pneg %p246
        %p594 = pneg %p243
        %p595 = pneg %p267
        %p596 = pneg %p264
        %p597 = pneg %p288
        %p598 = pneg %p285
        %p599 = pneg %p309
        %p600 = pneg %p306
        %p601 = pneg %p330
        %p602 = pneg %p327
        %p603 = pneg %p351
        %p604 = pneg %p348
        %p605 = pneg %p372
        %p606 = pneg %p369
        %p607 = pneg %p393
        %p608 = pneg %p390
        %p609 = pneg %p414
        %p610 = pneg %p411
        %p611 = pneg %p435
        %p612 = pneg %p432
        %p613 = pneg %p461
        %p614 = pneg %p458
        %p615 = scmp.lt.s32.totalorder %s31, 1
        %s616 = scalar_select %p615, %s31, 1
        %s617 = smul.addr %s616, 2
        %s618 = smul.addr %s617, 8
        %s619 = scalar_lea.vmem %s19, %s618
        %p620 = scmp.lt.s32.totalorder %s31, 1
        %s621 = scalar_select %p620, %s31, 1
        %s622 = smul.addr %s621, 2
        %s623 = smul.addr %s622, 8
        %s624 = scalar_lea.vmem %s1, %s623
        %p625 = scmp.lt.s32.totalorder %s31, 1
        %s626 = scalar_select %p625, %s31, 1
        %s627 = smul.addr %s626, 8
        %s628 = scalar_lea.vmem %s2, %s627
        %p629 = scmp.lt.s32.totalorder %s31, 1
        %s630 = scalar_select %p629, %s31, 1
        %s631 = smul.addr %s630, 2
        %s632 = smul.addr %s631, 8
        %s633 = scalar_lea.vmem %s19, %s632
        %v635 = vld [vmem:[%s628] sm:$0xff]
        %v636 = vld [vmem:[%s5] sm:$0xff]
        %v637 = vld [vmem:[%s5 + $0x8] sm:$0xff]
        %v638 = vld [vmem:[%s5 + $0x10] sm:$0xff]
        %v639 = vld [vmem:[%s5 + $0x18] sm:$0xff]
        %v640 = vld [vmem:[%s6] sm:$0x1]
        %v642 = vlaneseq
        %v643 = vshrl.u32 %v642, 7
        %v644 = vsub.s32 0, %v643
        %v645 = vrot.slane %v640, %v644
        %vm647 = vcmask 261120
        %v649 = vsel %vm647, %v635, 0
        %651 = vmatprep.subr.mxu0 0.0
        %652 = vmatpush1.msra.mxu0 0.0
        %653 = vmatprep.subr.mxu0 0.0
        %654 = vmatpush1.msra.mxu0 0.0
        %655 = vmatprep.subr.mxu0 0.0
        %656 = vmatpush1.msra.mxu0 0.0
        %657 = vmatprep.subr.mxu0 0.0
        %658 = vmatpush1.msra.mxu0 0.0
        %659 = vmatprep.subr.mxu0 0.0
        %660 = vmatpush1.msra.mxu0 0.0
        %661 = vmatprep.subr.mxu0 0.0
        %662 = vmatpush1.msra.mxu0 0.0
        %663 = vmatprep.subr.mxu0 0.0
        %664 = vmatpush1.msra.mxu0 0.0
        %665 = vmatprep.subr.mxu0 0.0
        %666 = vmatpush1.msra.mxu0 0.0
        %667 = vmatprep.subr.mxu0 0.0
        %668 = vmatpush1.msra.mxu0 0.0
        %669 = vmatprep.subr.mxu0 0.0
        %670 = vmatpush1.msra.mxu0 0.0
        %671 = vmatprep.subr.mxu0 0.0
        %672 = vmatpush1.msra.mxu0 0.0
        %673 = vmatprep.subr.mxu0 0.0
        %674 = vmatpush1.msra.mxu0 0.0
        %675 = vmatprep.subr.mxu0 0.0
        %676 = vmatpush1.msra.mxu0 %v639
        %677 = vmatprep.subr.mxu0 0.0
        %678 = vmatpush1.msra.mxu0 %v638
        %679 = vmatprep.subr.mxu0 0.0
        %680 = vmatpush1.msra.mxu0 %v637
        %681 = vmatprep.subr.mxu0 0.0
        %682 = vmatpush1.msra.mxu0 %v636
        %683 = vmatprep.subr.mxu0 0.0
        %684 = vmatpush2.msra.mxu0 0.0
        %685 = vmatprep.subr.mxu0 0.0
        %686 = vmatpush2.msra.mxu0 0.0
        %687 = vmatprep.subr.mxu0 0.0
        %688 = vmatpush2.msra.mxu0 0.0
        %689 = vmatprep.subr.mxu0 0.0
        %690 = vmatpush2.msra.mxu0 0.0
        %691 = vmatprep.subr.mxu0 0.0
        %692 = vmatpush2.msra.mxu0 0.0
        %693 = vmatprep.subr.mxu0 0.0
        %694 = vmatpush2.msra.mxu0 0.0
        %695 = vmatprep.subr.mxu0 0.0
        %696 = vmatpush2.msra.mxu0 0.0
        %697 = vmatprep.subr.mxu0 0.0
        %698 = vmatpush2.msra.mxu0 0.0
        %699 = vmatprep.subr.mxu0 0.0
        %700 = vmatpush2.msra.mxu0 0.0
        %701 = vmatprep.subr.mxu0 0.0
        %702 = vmatpush2.msra.mxu0 0.0
        %703 = vmatprep.subr.mxu0 0.0
        %704 = vmatpush2.msra.mxu0 0.0
        %705 = vmatprep.subr.mxu0 0.0
        %706 = vmatpush2.msra.mxu0 0.0
        %707 = vmatprep.subr.mxu0 0.0
        %708 = vmatpush2.msra.mxu0 0.0
        %709 = vmatprep.subr.mxu0 0.0
        %710 = vmatpush2.msra.mxu0 0.0
        %711 = vmatprep.subr.mxu0 0.0
        %712 = vmatpush2.msra.mxu0 0.0
        %713 = vmatprep.subr.mxu0 0.0
        %714 = vmatpush2.msra.mxu0 0.0
        %715 = vmatprep.mubr.f32.mxu0 0.0
        %716 = vmatmul.mubr.f32.gmra.mxu0 %v649
        %v717 = vpop.f32.mrf.mxu0
        %v718 = vadd.f32 %v645, %v717
        %v719 = vpop.f32.mrf.mxu0
        %720 = vdwg.mxu0
        %v721 = vld [vmem:[%s7] sm:$0xff]
        %v722 = vld [vmem:[%s7 + $0x8] sm:$0xff]
        %v723 = vld [vmem:[%s7 + $0x10] sm:$0xff]
        %v724 = vld [vmem:[%s7 + $0x18] sm:$0xff]
        %v726 = vsel %vm647, %v718, 0
        %728 = vmatprep.subr.mxu0 0.0
        %729 = vmatpush1.msra.mxu0 0.0
        %730 = vmatprep.subr.mxu0 0.0
        %731 = vmatpush1.msra.mxu0 0.0
        %732 = vmatprep.subr.mxu0 0.0
        %733 = vmatpush1.msra.mxu0 0.0
        %734 = vmatprep.subr.mxu0 0.0
        %735 = vmatpush1.msra.mxu0 0.0
        %736 = vmatprep.subr.mxu0 0.0
        %737 = vmatpush1.msra.mxu0 0.0
        %738 = vmatprep.subr.mxu0 0.0
        %739 = vmatpush1.msra.mxu0 0.0
        %740 = vmatprep.subr.mxu0 0.0
        %741 = vmatpush1.msra.mxu0 0.0
        %742 = vmatprep.subr.mxu0 0.0
        %743 = vmatpush1.msra.mxu0 0.0
        %744 = vmatprep.subr.mxu0 0.0
        %745 = vmatpush1.msra.mxu0 0.0
        %746 = vmatprep.subr.mxu0 0.0
        %747 = vmatpush1.msra.mxu0 0.0
        %748 = vmatprep.subr.mxu0 0.0
        %749 = vmatpush1.msra.mxu0 0.0
        %750 = vmatprep.subr.mxu0 0.0
        %751 = vmatpush1.msra.mxu0 0.0
        %752 = vmatprep.subr.mxu0 0.0
        %753 = vmatpush1.msra.mxu0 %v724
        %754 = vmatprep.subr.mxu0 0.0
        %755 = vmatpush1.msra.mxu0 %v723
        %756 = vmatprep.subr.mxu0 0.0
        %757 = vmatpush1.msra.mxu0 %v722
        %758 = vmatprep.subr.mxu0 0.0
        %759 = vmatpush1.msra.mxu0 %v721
        %760 = vmatprep.subr.mxu0 0.0
        %761 = vmatpush2.msra.mxu0 0.0
        %762 = vmatprep.subr.mxu0 0.0
        %763 = vmatpush2.msra.mxu0 0.0
        %764 = vmatprep.subr.mxu0 0.0
        %765 = vmatpush2.msra.mxu0 0.0
        %766 = vmatprep.subr.mxu0 0.0
        %767 = vmatpush2.msra.mxu0 0.0
        %768 = vmatprep.subr.mxu0 0.0
        %769 = vmatpush2.msra.mxu0 0.0
        %770 = vmatprep.subr.mxu0 0.0
        %771 = vmatpush2.msra.mxu0 0.0
        %772 = vmatprep.subr.mxu0 0.0
        %773 = vmatpush2.msra.mxu0 0.0
        %774 = vmatprep.subr.mxu0 0.0
        %775 = vmatpush2.msra.mxu0 0.0
        %776 = vmatprep.subr.mxu0 0.0
        %777 = vmatpush2.msra.mxu0 0.0
        %778 = vmatprep.subr.mxu0 0.0
        %779 = vmatpush2.msra.mxu0 0.0
        %780 = vmatprep.subr.mxu0 0.0
        %781 = vmatpush2.msra.mxu0 0.0
        %782 = vmatprep.subr.mxu0 0.0
        %783 = vmatpush2.msra.mxu0 0.0
        %784 = vmatprep.subr.mxu0 0.0
        %785 = vmatpush2.msra.mxu0 0.0
        %786 = vmatprep.subr.mxu0 0.0
        %787 = vmatpush2.msra.mxu0 0.0
        %788 = vmatprep.subr.mxu0 0.0
        %789 = vmatpush2.msra.mxu0 0.0
        %790 = vmatprep.subr.mxu0 0.0
        %791 = vmatpush2.msra.mxu0 0.0
        %792 = vmatprep.mubr.f32.mxu0 0.0
        %793 = vmatmul.mubr.f32.gmra.mxu0 %v726
        %v794 = vpop.f32.mrf.mxu0
        %v795 = vadd.f32 0.0, %v794
        %v796 = vpop.f32.mrf.mxu0
        %797 = vdwg.mxu0
        %v798 = vld [vmem:[%s8] sm:$0xff]
        %v799 = vld [vmem:[%s8 + $0x8] sm:$0xff]
        %v800 = vld [vmem:[%s8 + $0x10] sm:$0xff]
        %v801 = vld [vmem:[%s8 + $0x18] sm:$0xff]
        %802 = vmatprep.subr.mxu0 0.0
        %803 = vmatpush1.msra.mxu0 0.0
        %804 = vmatprep.subr.mxu0 0.0
        %805 = vmatpush1.msra.mxu0 0.0
        %806 = vmatprep.subr.mxu0 0.0
        %807 = vmatpush1.msra.mxu0 0.0
        %808 = vmatprep.subr.mxu0 0.0
        %809 = vmatpush1.msra.mxu0 0.0
        %810 = vmatprep.subr.mxu0 0.0
        %811 = vmatpush1.msra.mxu0 0.0
        %812 = vmatprep.subr.mxu0 0.0
        %813 = vmatpush1.msra.mxu0 0.0
        %814 = vmatprep.subr.mxu0 0.0
        %815 = vmatpush1.msra.mxu0 0.0
        %816 = vmatprep.subr.mxu0 0.0
        %817 = vmatpush1.msra.mxu0 0.0
        %818 = vmatprep.subr.mxu0 0.0
        %819 = vmatpush1.msra.mxu0 0.0
        %820 = vmatprep.subr.mxu0 0.0
        %821 = vmatpush1.msra.mxu0 0.0
        %822 = vmatprep.subr.mxu0 0.0
        %823 = vmatpush1.msra.mxu0 0.0
        %824 = vmatprep.subr.mxu0 0.0
        %825 = vmatpush1.msra.mxu0 0.0
        %826 = vmatprep.subr.mxu0 0.0
        %827 = vmatpush1.msra.mxu0 %v801
        %828 = vmatprep.subr.mxu0 0.0
        %829 = vmatpush1.msra.mxu0 %v800
        %830 = vmatprep.subr.mxu0 0.0
        %831 = vmatpush1.msra.mxu0 %v799
        %832 = vmatprep.subr.mxu0 0.0
        %833 = vmatpush1.msra.mxu0 %v798
        %834 = vmatprep.subr.mxu0 0.0
        %835 = vmatpush2.msra.mxu0 0.0
        %836 = vmatprep.subr.mxu0 0.0
        %837 = vmatpush2.msra.mxu0 0.0
        %838 = vmatprep.subr.mxu0 0.0
        %839 = vmatpush2.msra.mxu0 0.0
        %840 = vmatprep.subr.mxu0 0.0
        %841 = vmatpush2.msra.mxu0 0.0
        %842 = vmatprep.subr.mxu0 0.0
        %843 = vmatpush2.msra.mxu0 0.0
        %844 = vmatprep.subr.mxu0 0.0
        %845 = vmatpush2.msra.mxu0 0.0
        %846 = vmatprep.subr.mxu0 0.0
        %847 = vmatpush2.msra.mxu0 0.0
        %848 = vmatprep.subr.mxu0 0.0
        %849 = vmatpush2.msra.mxu0 0.0
        %850 = vmatprep.subr.mxu0 0.0
        %851 = vmatpush2.msra.mxu0 0.0
        %852 = vmatprep.subr.mxu0 0.0
        %853 = vmatpush2.msra.mxu0 0.0
        %854 = vmatprep.subr.mxu0 0.0
        %855 = vmatpush2.msra.mxu0 0.0
        %856 = vmatprep.subr.mxu0 0.0
        %857 = vmatpush2.msra.mxu0 0.0
        %858 = vmatprep.subr.mxu0 0.0
        %859 = vmatpush2.msra.mxu0 0.0
        %860 = vmatprep.subr.mxu0 0.0
        %861 = vmatpush2.msra.mxu0 0.0
        %862 = vmatprep.subr.mxu0 0.0
        %863 = vmatpush2.msra.mxu0 0.0
        %864 = vmatprep.subr.mxu0 0.0
        %865 = vmatpush2.msra.mxu0 0.0
        %866 = vmatprep.mubr.f32.mxu0 0.0
        %867 = vmatmul.mubr.f32.gmra.mxu0 %v726
        %v868 = vpop.f32.mrf.mxu0
        %v869 = vadd.f32 0.0, %v868
        %v870 = vpop.f32.mrf.mxu0
        %871 = vdwg.mxu0
        %v872 = vmul.f32 %v795, 0.17677669
        %v873 = vld [vmem:[%s13] sm:$0xff]
        %v874 = vld [vmem:[%s13 + $0x8] sm:$0xff]
        %v875 = vld [vmem:[%s13 + $0x10] sm:$0xff]
        %v876 = vld [vmem:[%s13 + $0x18] sm:$0xff]
        %v878 = vsel %vm647, %v872, 0
        %880 = vmatprep.subr.mxu0 0.0
        %881 = vmatpush1.msra.mxu0 0.0
        %882 = vmatprep.subr.mxu0 0.0
        %883 = vmatpush1.msra.mxu0 0.0
        %884 = vmatprep.subr.mxu0 0.0
        %885 = vmatpush1.msra.mxu0 0.0
        %886 = vmatprep.subr.mxu0 0.0
        %887 = vmatpush1.msra.mxu0 0.0
        %888 = vmatprep.subr.mxu0 0.0
        %889 = vmatpush1.msra.mxu0 0.0
        %890 = vmatprep.subr.mxu0 0.0
        %891 = vmatpush1.msra.mxu0 0.0
        %892 = vmatprep.subr.mxu0 0.0
        %893 = vmatpush1.msra.mxu0 0.0
        %894 = vmatprep.subr.mxu0 0.0
        %895 = vmatpush1.msra.mxu0 0.0
        %896 = vmatprep.subr.mxu0 0.0
        %897 = vmatpush1.msra.mxu0 0.0
        %898 = vmatprep.subr.mxu0 0.0
        %899 = vmatpush1.msra.mxu0 0.0
        %900 = vmatprep.subr.mxu0 0.0
        %901 = vmatpush1.msra.mxu0 0.0
        %902 = vmatprep.subr.mxu0 0.0
        %903 = vmatpush1.msra.mxu0 0.0
        %904 = vmatprep.subr.mxu0 0.0
        %905 = vmatpush1.msra.mxu0 %v876
        %906 = vmatprep.subr.mxu0 0.0
        %907 = vmatpush1.msra.mxu0 %v875
        %908 = vmatprep.subr.mxu0 0.0
        %909 = vmatpush1.msra.mxu0 %v874
        %910 = vmatprep.subr.mxu0 0.0
        %911 = vmatpush1.msra.mxu0 %v873
        %912 = vmatprep.subr.mxu0 0.0
        %913 = vmatpush2.msra.mxu0 0.0
        %914 = vmatprep.subr.mxu0 0.0
        %915 = vmatpush2.msra.mxu0 0.0
        %916 = vmatprep.subr.mxu0 0.0
        %917 = vmatpush2.msra.mxu0 0.0
        %918 = vmatprep.subr.mxu0 0.0
        %919 = vmatpush2.msra.mxu0 0.0
        %920 = vmatprep.subr.mxu0 0.0
        %921 = vmatpush2.msra.mxu0 0.0
        %922 = vmatprep.subr.mxu0 0.0
        %923 = vmatpush2.msra.mxu0 0.0
        %924 = vmatprep.subr.mxu0 0.0
        %925 = vmatpush2.msra.mxu0 0.0
        %926 = vmatprep.subr.mxu0 0.0
        %927 = vmatpush2.msra.mxu0 0.0
        %928 = vmatprep.subr.mxu0 0.0
        %929 = vmatpush2.msra.mxu0 0.0
        %930 = vmatprep.subr.mxu0 0.0
        %931 = vmatpush2.msra.mxu0 0.0
        %932 = vmatprep.subr.mxu0 0.0
        %933 = vmatpush2.msra.mxu0 0.0
        %934 = vmatprep.subr.mxu0 0.0
        %935 = vmatpush2.msra.mxu0 0.0
        %936 = vmatprep.subr.mxu0 0.0
        %937 = vmatpush2.msra.mxu0 0.0
        %938 = vmatprep.subr.mxu0 0.0
        %939 = vmatpush2.msra.mxu0 0.0
        %940 = vmatprep.subr.mxu0 0.0
        %941 = vmatpush2.msra.mxu0 0.0
        %942 = vmatprep.subr.mxu0 0.0
        %943 = vmatpush2.msra.mxu0 0.0
        %944 = vmatprep.mubr.f32.mxu0 0.0
        %945 = vmatmul.mubr.f32.gmra.mxu0 %v878
        %v946 = vpop.f32.mrf.mxu0
        %v947 = vadd.f32 0.0, %v946
        %v948 = vpop.f32.mrf.mxu0
        %949 = vdwg.mxu0
        %v950 = vpack.c.bf16 %v947, %v947
        %v951 = vld [vmem:[%s14] sm:$0xff]
        %v952 = vld [vmem:[%s14 + $0x8] sm:$0xff]
        %v953 = vld [vmem:[%s14 + $0x10] sm:$0xff]
        %v954 = vld [vmem:[%s14 + $0x18] sm:$0xff]
        %v956 = vsel %vm647, %v951, 0
        %v959 = vsel %vm647, %v952, 0
        %v962 = vsel %vm647, %v953, 0
        %v965 = vsel %vm647, %v954, 0
        %v968 = vsel %vm647, %v869, 0
        %970 = vmatprep.subr.mxu0 0.0
        %971 = vmatpush1.xpose.msra.mxu0 0.0
        %972 = vmatprep.subr.mxu0 0.0
        %973 = vmatpush1.xpose.msra.mxu0 0.0
        %974 = vmatprep.subr.mxu0 0.0
        %975 = vmatpush1.xpose.msra.mxu0 0.0
        %976 = vmatprep.subr.mxu0 0.0
        %977 = vmatpush1.xpose.msra.mxu0 0.0
        %978 = vmatprep.subr.mxu0 0.0
        %979 = vmatpush1.xpose.msra.mxu0 0.0
        %980 = vmatprep.subr.mxu0 0.0
        %981 = vmatpush1.xpose.msra.mxu0 0.0
        %982 = vmatprep.subr.mxu0 0.0
        %983 = vmatpush1.xpose.msra.mxu0 0.0
        %984 = vmatprep.subr.mxu0 0.0
        %985 = vmatpush1.xpose.msra.mxu0 0.0
        %986 = vmatprep.subr.mxu0 0.0
        %987 = vmatpush1.xpose.msra.mxu0 0.0
        %988 = vmatprep.subr.mxu0 0.0
        %989 = vmatpush1.xpose.msra.mxu0 0.0
        %990 = vmatprep.subr.mxu0 0.0
        %991 = vmatpush1.xpose.msra.mxu0 0.0
        %992 = vmatprep.subr.mxu0 0.0
        %993 = vmatpush1.xpose.msra.mxu0 0.0
        %994 = vmatprep.subr.mxu0 0.0
        %995 = vmatpush1.xpose.msra.mxu0 0.0
        %996 = vmatprep.subr.mxu0 0.0
        %997 = vmatpush1.xpose.msra.mxu0 0.0
        %998 = vmatprep.subr.mxu0 0.0
        %999 = vmatpush1.xpose.msra.mxu0 0.0
        %1000 = vmatprep.subr.mxu0 0.0
        %1001 = vmatpush1.xpose.msra.mxu0 %v968
        %1002 = vmatprep.subr.mxu0 0.0
        %1003 = vmatpush2.xpose.msra.mxu0 0.0
        %1004 = vmatprep.subr.mxu0 0.0
        %1005 = vmatpush2.xpose.msra.mxu0 0.0
        %1006 = vmatprep.subr.mxu0 0.0
        %1007 = vmatpush2.xpose.msra.mxu0 0.0
        %1008 = vmatprep.subr.mxu0 0.0
        %1009 = vmatpush2.xpose.msra.mxu0 0.0
        %1010 = vmatprep.subr.mxu0 0.0
        %1011 = vmatpush2.xpose.msra.mxu0 0.0
        %1012 = vmatprep.subr.mxu0 0.0
        %1013 = vmatpush2.xpose.msra.mxu0 0.0
        %1014 = vmatprep.subr.mxu0 0.0
        %1015 = vmatpush2.xpose.msra.mxu0 0.0
        %1016 = vmatprep.subr.mxu0 0.0
        %1017 = vmatpush2.xpose.msra.mxu0 0.0
        %1018 = vmatprep.subr.mxu0 0.0
        %1019 = vmatpush2.xpose.msra.mxu0 0.0
        %1020 = vmatprep.subr.mxu0 0.0
        %1021 = vmatpush2.xpose.msra.mxu0 0.0
        %1022 = vmatprep.subr.mxu0 0.0
        %1023 = vmatpush2.xpose.msra.mxu0 0.0
        %1024 = vmatprep.subr.mxu0 0.0
        %1025 = vmatpush2.xpose.msra.mxu0 0.0
        %1026 = vmatprep.subr.mxu0 0.0
        %1027 = vmatpush2.xpose.msra.mxu0 0.0
        %1028 = vmatprep.subr.mxu0 0.0
        %1029 = vmatpush2.xpose.msra.mxu0 0.0
        %1030 = vmatprep.subr.mxu0 0.0
        %1031 = vmatpush2.xpose.msra.mxu0 0.0
        %1032 = vmatprep.subr.mxu0 0.0
        %1033 = vmatpush2.xpose.msra.mxu0 0.0
        %1034 = vmatprep.mubr.f32.mxu0 0.0
        %1035 = vmatmul.mubr.f32.gmra.mxu0 %v956
        %v1036 = vpop.f32.mrf.mxu0
        %v1037 = vadd.f32 0.0, %v1036
        %v1038 = vpop.f32.mrf.mxu0
        %1039 = vmatprep.mubr.f32.mxu0 0.0
        %1040 = vmatmul.mubr.f32.gmra.mxu0 %v959
        %v1041 = vpop.f32.mrf.mxu0
        %v1042 = vadd.f32 0.0, %v1041
        %v1043 = vpop.f32.mrf.mxu0
        %1044 = vmatprep.mubr.f32.mxu0 0.0
        %1045 = vmatmul.mubr.f32.gmra.mxu0 %v962
        %v1046 = vpop.f32.mrf.mxu0
        %v1047 = vadd.f32 0.0, %v1046
        %v1048 = vpop.f32.mrf.mxu0
        %1049 = vmatprep.mubr.f32.mxu0 0.0
        %1050 = vmatmul.mubr.f32.gmra.mxu0 %v965
        %v1051 = vpop.f32.mrf.mxu0
        %v1052 = vadd.f32 0.0, %v1051
        %v1053 = vpop.f32.mrf.mxu0
        %1054 = vdwg.mxu0
        %v1055 = vld [vmem:[%s15] sm:$0xff]
        %v1057 = vsel %vm647, %v1055, 0
        %1059 = vmatprep.subr.mxu0 0.0
        %1060 = vmatpush1.msra.mxu0 0.0
        %1061 = vmatprep.subr.mxu0 0.0
        %1062 = vmatpush1.msra.mxu0 0.0
        %1063 = vmatprep.subr.mxu0 0.0
        %1064 = vmatpush1.msra.mxu0 0.0
        %1065 = vmatprep.subr.mxu0 0.0
        %1066 = vmatpush1.msra.mxu0 0.0
        %1067 = vmatprep.subr.mxu0 0.0
        %1068 = vmatpush1.msra.mxu0 0.0
        %1069 = vmatprep.subr.mxu0 0.0
        %1070 = vmatpush1.msra.mxu0 0.0
        %1071 = vmatprep.subr.mxu0 0.0
        %1072 = vmatpush1.msra.mxu0 0.0
        %1073 = vmatprep.subr.mxu0 0.0
        %1074 = vmatpush1.msra.mxu0 0.0
        %1075 = vmatprep.subr.mxu0 0.0
        %1076 = vmatpush1.msra.mxu0 0.0
        %1077 = vmatprep.subr.mxu0 0.0
        %1078 = vmatpush1.msra.mxu0 0.0
        %1079 = vmatprep.subr.mxu0 0.0
        %1080 = vmatpush1.msra.mxu0 0.0
        %1081 = vmatprep.subr.mxu0 0.0
        %1082 = vmatpush1.msra.mxu0 0.0
        %1083 = vmatprep.subr.mxu0 0.0
        %1084 = vmatpush1.msra.mxu0 %v1052
        %1085 = vmatprep.subr.mxu0 0.0
        %1086 = vmatpush1.msra.mxu0 %v1047
        %1087 = vmatprep.subr.mxu0 0.0
        %1088 = vmatpush1.msra.mxu0 %v1042
        %1089 = vmatprep.subr.mxu0 0.0
        %1090 = vmatpush1.msra.mxu0 %v1037
        %1091 = vmatprep.subr.mxu0 0.0
        %1092 = vmatpush2.msra.mxu0 0.0
        %1093 = vmatprep.subr.mxu0 0.0
        %1094 = vmatpush2.msra.mxu0 0.0
        %1095 = vmatprep.subr.mxu0 0.0
        %1096 = vmatpush2.msra.mxu0 0.0
        %1097 = vmatprep.subr.mxu0 0.0
        %1098 = vmatpush2.msra.mxu0 0.0
        %1099 = vmatprep.subr.mxu0 0.0
        %1100 = vmatpush2.msra.mxu0 0.0
        %1101 = vmatprep.subr.mxu0 0.0
        %1102 = vmatpush2.msra.mxu0 0.0
        %1103 = vmatprep.subr.mxu0 0.0
        %1104 = vmatpush2.msra.mxu0 0.0
        %1105 = vmatprep.subr.mxu0 0.0
        %1106 = vmatpush2.msra.mxu0 0.0
        %1107 = vmatprep.subr.mxu0 0.0
        %1108 = vmatpush2.msra.mxu0 0.0
        %1109 = vmatprep.subr.mxu0 0.0
        %1110 = vmatpush2.msra.mxu0 0.0
        %1111 = vmatprep.subr.mxu0 0.0
        %1112 = vmatpush2.msra.mxu0 0.0
        %1113 = vmatprep.subr.mxu0 0.0
        %1114 = vmatpush2.msra.mxu0 0.0
        %1115 = vmatprep.subr.mxu0 0.0
        %1116 = vmatpush2.msra.mxu0 0.0
        %1117 = vmatprep.subr.mxu0 0.0
        %1118 = vmatpush2.msra.mxu0 0.0
        %1119 = vmatprep.subr.mxu0 0.0
        %1120 = vmatpush2.msra.mxu0 0.0
        %1121 = vmatprep.subr.mxu0 0.0
        %1122 = vmatpush2.msra.mxu0 0.0
        %1123 = vmatprep.mubr.f32.mxu0 0.0
        %1124 = vmatmul.mubr.f32.gmra.mxu0 %v1057
        %v1125 = vpop.f32.mrf.mxu0
        %v1126 = vadd.f32 0.0, %v1125
        %v1127 = vpop.f32.mrf.mxu0
        %1128 = vdwg.mxu0
        %v1129 = vpack.c.bf16 %v1126, %v1126
        %v1130 = vpack.c.bf16 %v1055, %v1055
        %v1131 = vld [vmem:[%s9] sm:$0xff]
        %v1132 = vld [vmem:[%s9 + $0x8] sm:$0xff]
        %v1133 = vld [vmem:[%s9 + $0x10] sm:$0xff]
        %v1134 = vld [vmem:[%s9 + $0x18] sm:$0xff]
        %v1135 = vld [vmem:[%s3] sm:$0xff]
        %v1136 = vld [vmem:[%s3 + $0x8] sm:$0xff]
        %v1137 = vld [vmem:[%s3 + $0x10] sm:$0xff]
        %v1138 = vld [vmem:[%s3 + $0x18] sm:$0xff]
        %v1139 = vld [vmem:[%s10] sm:$0xff]
        %v1140 = vld [vmem:[%s10 + $0x8] sm:$0xff]
        %v1141 = vld [vmem:[%s10 + $0x10] sm:$0xff]
        %v1142 = vld [vmem:[%s10 + $0x18] sm:$0xff]
        %1144 = vset.pattern.permute.xlu0 0
        %1145 = vperm.xlu0 %1144, %v1139
        %v1146 = vpop.permute.xlu0 %1145
        %1149 = vset.pattern.permute.xlu0 0
        %1150 = vperm.xlu0 %1149, %v1140
        %v1151 = vpop.permute.xlu0 %1150
        %1154 = vset.pattern.permute.xlu0 0
        %1155 = vperm.xlu0 %1154, %v1141
        %v1156 = vpop.permute.xlu0 %1155
        %1159 = vset.pattern.permute.xlu0 0
        %1160 = vperm.xlu0 %1159, %v1142
        %v1161 = vpop.permute.xlu0 %1160
        %v1164 = vsel %vm647, %v1131, 0
        %v1167 = vsel %vm647, %v1132, 0
        %v1170 = vsel %vm647, %v1133, 0
        %v1173 = vsel %vm647, %v1134, 0
        %1175 = vmatprep.subr.mxu0 0.0
        %1176 = vmatpush1.msra.mxu0 0.0
        %1177 = vmatprep.subr.mxu0 0.0
        %1178 = vmatpush1.msra.mxu0 0.0
        %1179 = vmatprep.subr.mxu0 0.0
        %1180 = vmatpush1.msra.mxu0 0.0
        %1181 = vmatprep.subr.mxu0 0.0
        %1182 = vmatpush1.msra.mxu0 0.0
        %1183 = vmatprep.subr.mxu0 0.0
        %1184 = vmatpush1.msra.mxu0 0.0
        %1185 = vmatprep.subr.mxu0 0.0
        %1186 = vmatpush1.msra.mxu0 0.0
        %1187 = vmatprep.subr.mxu0 0.0
        %1188 = vmatpush1.msra.mxu0 0.0
        %1189 = vmatprep.subr.mxu0 0.0
        %1190 = vmatpush1.msra.mxu0 0.0
        %1191 = vmatprep.subr.mxu0 0.0
        %1192 = vmatpush1.msra.mxu0 0.0
        %1193 = vmatprep.subr.mxu0 0.0
        %1194 = vmatpush1.msra.mxu0 0.0
        %1195 = vmatprep.subr.mxu0 0.0
        %1196 = vmatpush1.msra.mxu0 0.0
        %1197 = vmatprep.subr.mxu0 0.0
        %1198 = vmatpush1.msra.mxu0 0.0
        %1199 = vmatprep.subr.mxu0 0.0
        %1200 = vmatpush1.msra.mxu0 %v1138
        %1201 = vmatprep.subr.mxu0 0.0
        %1202 = vmatpush1.msra.mxu0 %v1137
        %1203 = vmatprep.subr.mxu0 0.0
        %1204 = vmatpush1.msra.mxu0 %v1136
        %1205 = vmatprep.subr.mxu0 0.0
        %1206 = vmatpush1.msra.mxu0 %v1135
        %1207 = vmatprep.subr.mxu0 0.0
        %1208 = vmatpush2.msra.mxu0 0.0
        %1209 = vmatprep.subr.mxu0 0.0
        %1210 = vmatpush2.msra.mxu0 0.0
        %1211 = vmatprep.subr.mxu0 0.0
        %1212 = vmatpush2.msra.mxu0 0.0
        %1213 = vmatprep.subr.mxu0 0.0
        %1214 = vmatpush2.msra.mxu0 0.0
        %1215 = vmatprep.subr.mxu0 0.0
        %1216 = vmatpush2.msra.mxu0 0.0
        %1217 = vmatprep.subr.mxu0 0.0
        %1218 = vmatpush2.msra.mxu0 0.0
        %1219 = vmatprep.subr.mxu0 0.0
        %1220 = vmatpush2.msra.mxu0 0.0
        %1221 = vmatprep.subr.mxu0 0.0
        %1222 = vmatpush2.msra.mxu0 0.0
        %1223 = vmatprep.subr.mxu0 0.0
        %1224 = vmatpush2.msra.mxu0 0.0
        %1225 = vmatprep.subr.mxu0 0.0
        %1226 = vmatpush2.msra.mxu0 0.0
        %1227 = vmatprep.subr.mxu0 0.0
        %1228 = vmatpush2.msra.mxu0 0.0
        %1229 = vmatprep.subr.mxu0 0.0
        %1230 = vmatpush2.msra.mxu0 0.0
        %1231 = vmatprep.subr.mxu0 0.0
        %1232 = vmatpush2.msra.mxu0 0.0
        %1233 = vmatprep.subr.mxu0 0.0
        %1234 = vmatpush2.msra.mxu0 0.0
        %1235 = vmatprep.subr.mxu0 0.0
        %1236 = vmatpush2.msra.mxu0 0.0
        %1237 = vmatprep.subr.mxu0 0.0
        %1238 = vmatpush2.msra.mxu0 0.0
        %1239 = vmatprep.mubr.f32.mxu0 0.0
        %1240 = vmatmul.mubr.f32.gmra.mxu0 %v1164
        %v1241 = vpop.f32.mrf.mxu0
        %v1242 = vadd.f32 %v1146, %v1241
        %v1243 = vpop.f32.mrf.mxu0
        %1244 = vmatprep.mubr.f32.mxu0 0.0
        %1245 = vmatmul.mubr.f32.gmra.mxu0 %v1167
        %v1246 = vpop.f32.mrf.mxu0
        %v1247 = vadd.f32 %v1151, %v1246
        %v1248 = vpop.f32.mrf.mxu0
        %1249 = vmatprep.mubr.f32.mxu0 0.0
        %1250 = vmatmul.mubr.f32.gmra.mxu0 %v1170
        %v1251 = vpop.f32.mrf.mxu0
        %v1252 = vadd.f32 %v1156, %v1251
        %v1253 = vpop.f32.mrf.mxu0
        %1254 = vmatprep.mubr.f32.mxu0 0.0
        %1255 = vmatmul.mubr.f32.gmra.mxu0 %v1173
        %v1256 = vpop.f32.mrf.mxu0
        %v1257 = vadd.f32 %v1161, %v1256
        %v1258 = vpop.f32.mrf.mxu0
        %1259 = vdwg.mxu0
        %v1260 = vxor.u32 %v1242, 2147483648
        %v1261 = vxor.u32 %v1247, 2147483648
        %v1262 = vxor.u32 %v1252, 2147483648
        %v1263 = vxor.u32 %v1257, 2147483648
        %v1264 = vmul.f32 %v1260, 1.442695
        %v1265 = vpow.pop %v1264
        %v1266 = vmul.f32 %v1261, 1.442695
        %v1267 = vpow.pop %v1266
        %v1268 = vmul.f32 %v1262, 1.442695
        %v1269 = vpow.pop %v1268
        %v1270 = vmul.f32 %v1263, 1.442695
        %v1271 = vpow.pop %v1270
        %v1272 = vadd.f32 %v1265, 1.0
        %v1273 = vadd.f32 %v1267, 1.0
        %v1274 = vadd.f32 %v1269, 1.0
        %v1275 = vadd.f32 %v1271, 1.0
        %v1276 = vrcp.pop %v1272
        %v1277 = vmul.f32 1.0, %v1276
        %v1278 = vrcp.pop %v1273
        %v1279 = vmul.f32 1.0, %v1278
        %v1280 = vrcp.pop %v1274
        %v1281 = vmul.f32 1.0, %v1280
        %v1282 = vrcp.pop %v1275
        %v1283 = vmul.f32 1.0, %v1282
        %v1284 = vmul.f32 %v1242, %v1277
        %v1285 = vmul.f32 %v1247, %v1279
        %v1286 = vmul.f32 %v1252, %v1281
        %v1287 = vmul.f32 %v1257, %v1283
        %v1288 = vld [vmem:[%s12] sm:$0xff]
        %v1289 = vld [vmem:[%s12 + $0x8] sm:$0xff]
        %v1290 = vld [vmem:[%s12 + $0x10] sm:$0xff]
        %v1291 = vld [vmem:[%s12 + $0x18] sm:$0xff]
        %1293 = vset.pattern.permute.xlu0 0
        %1294 = vperm.xlu0 %1293, %v1288
        %v1295 = vpop.permute.xlu0 %1294
        %1298 = vset.pattern.permute.xlu0 0
        %1299 = vperm.xlu0 %1298, %v1289
        %v1300 = vpop.permute.xlu0 %1299
        %1303 = vset.pattern.permute.xlu0 0
        %1304 = vperm.xlu0 %1303, %v1290
        %v1305 = vpop.permute.xlu0 %1304
        %1308 = vset.pattern.permute.xlu0 0
        %1309 = vperm.xlu0 %1308, %v1291
        %v1310 = vpop.permute.xlu0 %1309
        %v1312 = vadd.f32 %v1284, %v1295
        %v1313 = vadd.f32 %v1285, %v1300
        %v1314 = vadd.f32 %v1286, %v1305
        %v1315 = vadd.f32 %v1287, %v1310
        %v1316 = vld [vmem:[%s4] sm:$0xff]
        %v1317 = vld [vmem:[%s4 + $0x8] sm:$0xff]
        %v1318 = vld [vmem:[%s4 + $0x10] sm:$0xff]
        %v1319 = vld [vmem:[%s4 + $0x18] sm:$0xff]
        %v1320 = vld [vmem:[%s4 + $0x20] sm:$0xff]
        %v1321 = vld [vmem:[%s4 + $0x28] sm:$0xff]
        %v1322 = vld [vmem:[%s4 + $0x30] sm:$0xff]
        %v1323 = vld [vmem:[%s4 + $0x38] sm:$0xff]
        %v1324 = vld [vmem:[%s4 + $0x40] sm:$0xff]
        %v1325 = vld [vmem:[%s4 + $0x48] sm:$0xff]
        %v1326 = vld [vmem:[%s4 + $0x50] sm:$0xff]
        %v1327 = vld [vmem:[%s4 + $0x58] sm:$0xff]
        %v1328 = vld [vmem:[%s4 + $0x60] sm:$0xff]
        %v1329 = vld [vmem:[%s4 + $0x68] sm:$0xff]
        %v1330 = vld [vmem:[%s4 + $0x70] sm:$0xff]
        %v1331 = vld [vmem:[%s4 + $0x78] sm:$0xff]
        %v1332 = vld [vmem:[%s4 + $0x80] sm:$0xff]
        %v1333 = vld [vmem:[%s4 + $0x88] sm:$0xff]
        %v1334 = vld [vmem:[%s11] sm:$0xf]
        %v1335 = vld [vmem:[%s11 + $0x4] sm:$0xf]
        %v1336 = vld [vmem:[%s11 + $0x8] sm:$0xf]
        %v1337 = vld [vmem:[%s11 + $0xc] sm:$0xf]
        %v1338 = vld [vmem:[%s16] sm:$0xff]
        %v1339 = vld [vmem:[%s624] sm:$0xff]
        %v1340 = vld [vmem:[%s624 + $0x8] sm:$0xff]
        %1341 = vrot.lane.b32.xlu0 %v1339, 17
        %v1342 = vpop.permute.xlu0 %1341
        %1343 = vrot.lane.b32.xlu0 %v1340, 17
        %v1344 = vpop.permute.xlu0 %1343
        %v1345 = vlaneseq
        %v1346 = vand.u32 %v1345, 127
        %vm1347 = vcmp.lt.s32.totalorder %v1346, 17
        %v1348 = vsel %vm1347, %v1342, %v1344
        %v1349 = vsel %vm1347, %v1344, %v1342
        %1350 = vrot.lane.b32.xlu0 %v1339, 16
        %v1351 = vpop.permute.xlu0 %1350
        %1352 = vrot.lane.b32.xlu0 %v1340, 16
        %v1353 = vpop.permute.xlu0 %1352
        %vm1354 = vcmp.lt.s32.totalorder %v1346, 16
        %v1355 = vsel %vm1354, %v1351, %v1353
        %v1356 = vsel %vm1354, %v1353, %v1351
        %1357 = vrot.lane.b32.xlu0 %v1339, 15
        %v1358 = vpop.permute.xlu0 %1357
        %1359 = vrot.lane.b32.xlu0 %v1340, 15
        %v1360 = vpop.permute.xlu0 %1359
        %vm1361 = vcmp.lt.s32.totalorder %v1346, 15
        %v1362 = vsel %vm1361, %v1358, %v1360
        %v1363 = vsel %vm1361, %v1360, %v1358
        %1364 = vrot.lane.b32.xlu0 %v1339, 1
        %v1365 = vpop.permute.xlu0 %1364
        %1366 = vrot.lane.b32.xlu0 %v1340, 1
        %v1367 = vpop.permute.xlu0 %1366
        %vm1368 = vcmp.lt.s32.totalorder %v1346, 1
        %v1369 = vsel %vm1368, %v1365, %v1367
        %v1370 = vsel %vm1368, %v1367, %v1365
        %1371 = vrot.lane.b32.xlu0 %v1339, 127
        %v1372 = vpop.permute.xlu0 %1371
        %1373 = vrot.lane.b32.xlu0 %v1340, 127
        %v1374 = vpop.permute.xlu0 %1373
        %vm1375 = vcmp.lt.s32.totalorder %v1346, 127
        %v1376 = vsel %vm1375, %v1372, %v1374
        %v1377 = vsel %vm1375, %v1374, %v1372
        %1378 = vrot.lane.b32.xlu0 %v1339, 113
        %v1379 = vpop.permute.xlu0 %1378
        %1380 = vrot.lane.b32.xlu0 %v1340, 113
        %v1381 = vpop.permute.xlu0 %1380
        %vm1382 = vcmp.lt.s32.totalorder %v1346, 113
        %v1383 = vsel %vm1382, %v1379, %v1381
        %v1384 = vsel %vm1382, %v1381, %v1379
        %1385 = vrot.lane.b32.xlu0 %v1339, 112
        %v1386 = vpop.permute.xlu0 %1385
        %1387 = vrot.lane.b32.xlu0 %v1340, 112
        %v1388 = vpop.permute.xlu0 %1387
        %vm1389 = vcmp.lt.s32.totalorder %v1346, 112
        %v1390 = vsel %vm1389, %v1386, %v1388
        %v1391 = vsel %vm1389, %v1388, %v1386
        %1392 = vrot.lane.b32.xlu0 %v1339, 111
        %v1393 = vpop.permute.xlu0 %1392
        %1394 = vrot.lane.b32.xlu0 %v1340, 111
        %v1395 = vpop.permute.xlu0 %1394
        %vm1396 = vcmp.lt.s32.totalorder %v1346, 111
        %v1397 = vsel %vm1396, %v1393, %v1395
        %v1398 = vsel %vm1396, %v1395, %v1393
        %v1399 = vmul.f32 %v1349, %v1316
        %v1400 = vmul.f32 %v1348, %v1317
        %v1401 = vmul.f32 %v1356, %v1318
        %v1402 = vmul.f32 %v1355, %v1319
        %v1403 = vmul.f32 %v1363, %v1320
        %v1404 = vmul.f32 %v1362, %v1321
        %v1405 = vmul.f32 %v1370, %v1322
        %v1406 = vmul.f32 %v1369, %v1323
        %v1407 = vmul.f32 %v1339, %v1324
        %v1408 = vmul.f32 %v1340, %v1325
        %v1409 = vmul.f32 %v1376, %v1326
        %v1410 = vmul.f32 %v1377, %v1327
        %v1411 = vmul.f32 %v1383, %v1328
        %v1412 = vmul.f32 %v1384, %v1329
        %v1413 = vmul.f32 %v1390, %v1330
        %v1414 = vmul.f32 %v1391, %v1331
        %v1415 = vmul.f32 %v1397, %v1332
        %v1416 = vmul.f32 %v1398, %v1333
        %v1417 = vpack.c.bf16 %v1401, %v1399
        %v1418 = vpack.c.bf16 %v1402, %v1400
        %v1419 = vpack.c.bf16 %v1405, %v1403
        %v1420 = vpack.c.bf16 %v1406, %v1404
        %v1421 = vpack.c.bf16 %v1409, %v1407
        %v1422 = vpack.c.bf16 %v1410, %v1408
        %v1423 = vpack.c.bf16 %v1413, %v1411
        %v1424 = vpack.c.bf16 %v1414, %v1412
        %v1425 = vpack.c.bf16 %v1415, %v1415
        %v1426 = vpack.c.bf16 %v1416, %v1416
        %1428 = vset.pattern.permute.xlu0 0
        %1429 = vperm.xlu0 %1428, %v1312
        %v1430 = vpop.permute.xlu0 %1429
        %1433 = vset.pattern.permute.xlu0 0
        %1434 = vperm.xlu0 %1433, %v1313
        %v1435 = vpop.permute.xlu0 %1434
        %1438 = vset.pattern.permute.xlu0 0
        %1439 = vperm.xlu0 %1438, %v1314
        %v1440 = vpop.permute.xlu0 %1439
        %1443 = vset.pattern.permute.xlu0 0
        %1444 = vperm.xlu0 %1443, %v1315
        %v1445 = vpop.permute.xlu0 %1444
        %v1451 = vunpack.c.l.b16 %v1334
        %v1452 = vunpack.c.l.b16 %v1335
        %v1453 = vunpack.c.l.b16 %v1336
        %v1454 = vunpack.c.l.b16 %v1337
        %v1455 = vpack.c.b16 %v1452, %v1451
        %v1456 = vpack.c.b16 %v1454, %v1453
        %vm1457 = vcmask 588800
        %v1459 = vsel %vm1457, %v1455, 0
        %v1462 = vsel %vm1457, %v1456, 0
        %vm1464 = vcmask 1043456
        %v1466 = vsel %vm1464, %v1425, 0
        %v1469 = vsel %vm1464, %v1426, 0
        %1471 = vmatprep.subr.bf16.mxu0 0
        %1472 = vmatpush1.bf16.msra.mxu0 0
        %1473 = vmatprep.subr.bf16.mxu0 0
        %1474 = vmatpush1.bf16.msra.mxu0 0
        %1475 = vmatprep.subr.bf16.mxu0 0
        %1476 = vmatpush1.bf16.msra.mxu0 0
        %1477 = vmatprep.subr.bf16.mxu0 %v1469
        %1478 = vmatpush1.bf16.msra.mxu0 %v1466
        %1479 = vmatprep.subr.bf16.mxu0 %v1424
        %1480 = vmatpush1.bf16.msra.mxu0 %v1423
        %1481 = vmatprep.subr.bf16.mxu0 %v1422
        %1482 = vmatpush1.bf16.msra.mxu0 %v1421
        %1483 = vmatprep.subr.bf16.mxu0 %v1420
        %1484 = vmatpush1.bf16.msra.mxu0 %v1419
        %1485 = vmatprep.subr.bf16.mxu0 %v1418
        %1486 = vmatpush1.bf16.msra.mxu0 %v1417
        %1487 = vmatprep.subr.bf16.mxu0 0
        %1488 = vmatpush2.bf16.msra.mxu0 0
        %1489 = vmatprep.subr.bf16.mxu0 0
        %1490 = vmatpush2.bf16.msra.mxu0 0
        %1491 = vmatprep.subr.bf16.mxu0 0
        %1492 = vmatpush2.bf16.msra.mxu0 0
        %1493 = vmatprep.subr.bf16.mxu0 0
        %1494 = vmatpush2.bf16.msra.mxu0 0
        %1495 = vmatprep.subr.bf16.mxu0 0
        %1496 = vmatpush2.bf16.msra.mxu0 0
        %1497 = vmatprep.subr.bf16.mxu0 0
        %1498 = vmatpush2.bf16.msra.mxu0 0
        %1499 = vmatprep.subr.bf16.mxu0 0
        %1500 = vmatpush2.bf16.msra.mxu0 0
        %1501 = vmatprep.subr.bf16.mxu0 0
        %1502 = vmatpush2.bf16.msra.mxu0 0
        %1503 = vmatprep.mubr.bf16.mxu0 0
        %1504 = vmatmul.mubr.bf16.gmra.mxu0 %v1459
        %v1505 = vpop.f32.mrf.mxu0
        %v1506 = vadd.f32 %v1430, %v1505
        %v1507 = vpop.f32.mrf.mxu0
        %v1508 = vadd.f32 %v1430, %v1507
        %v1509 = vpop.f32.mrf.mxu0
        %v1510 = vadd.f32 %v1435, %v1509
        %v1511 = vpop.f32.mrf.mxu0
        %v1512 = vadd.f32 %v1435, %v1511
        %1513 = vmatprep.mubr.bf16.mxu0 0
        %1514 = vmatmul.mubr.bf16.gmra.mxu0 %v1462
        %v1515 = vpop.f32.mrf.mxu0
        %v1516 = vadd.f32 %v1440, %v1515
        %v1517 = vpop.f32.mrf.mxu0
        %v1518 = vadd.f32 %v1440, %v1517
        %v1519 = vpop.f32.mrf.mxu0
        %v1520 = vadd.f32 %v1445, %v1519
        %v1521 = vpop.f32.mrf.mxu0
        %v1522 = vadd.f32 %v1445, %v1521
        %1523 = vdwg.mxu0
        %v1524 = vxor.u32 %v1506, 2147483648
        %v1525 = vxor.u32 %v1508, 2147483648
        %v1526 = vxor.u32 %v1510, 2147483648
        %v1527 = vxor.u32 %v1512, 2147483648
        %v1528 = vxor.u32 %v1516, 2147483648
        %v1529 = vxor.u32 %v1518, 2147483648
        %v1530 = vxor.u32 %v1520, 2147483648
        %v1531 = vxor.u32 %v1522, 2147483648
        %v1532 = vmul.f32 %v1524, 1.442695
        %v1533 = vpow.pop %v1532
        %v1534 = vmul.f32 %v1525, 1.442695
        %v1535 = vpow.pop %v1534
        %v1536 = vmul.f32 %v1526, 1.442695
        %v1537 = vpow.pop %v1536
        %v1538 = vmul.f32 %v1527, 1.442695
        %v1539 = vpow.pop %v1538
        %v1540 = vmul.f32 %v1528, 1.442695
        %v1541 = vpow.pop %v1540
        %v1542 = vmul.f32 %v1529, 1.442695
        %v1543 = vpow.pop %v1542
        %v1544 = vmul.f32 %v1530, 1.442695
        %v1545 = vpow.pop %v1544
        %v1546 = vmul.f32 %v1531, 1.442695
        %v1547 = vpow.pop %v1546
        %v1548 = vadd.f32 %v1533, 1.0
        %v1549 = vadd.f32 %v1535, 1.0
        %v1550 = vadd.f32 %v1537, 1.0
        %v1551 = vadd.f32 %v1539, 1.0
        %v1552 = vadd.f32 %v1541, 1.0
        %v1553 = vadd.f32 %v1543, 1.0
        %v1554 = vadd.f32 %v1545, 1.0
        %v1555 = vadd.f32 %v1547, 1.0
        %v1556 = vrcp.pop %v1548
        %v1557 = vmul.f32 1.0, %v1556
        %v1558 = vrcp.pop %v1549
        %v1559 = vmul.f32 1.0, %v1558
        %v1560 = vrcp.pop %v1550
        %v1561 = vmul.f32 1.0, %v1560
        %v1562 = vrcp.pop %v1551
        %v1563 = vmul.f32 1.0, %v1562
        %v1564 = vrcp.pop %v1552
        %v1565 = vmul.f32 1.0, %v1564
        %v1566 = vrcp.pop %v1553
        %v1567 = vmul.f32 1.0, %v1566
        %v1568 = vrcp.pop %v1554
        %v1569 = vmul.f32 1.0, %v1568
        %v1570 = vrcp.pop %v1555
        %v1571 = vmul.f32 1.0, %v1570
        %v1572 = vmul.f32 %v1506, %v1557
        %v1573 = vmul.f32 %v1508, %v1559
        %v1574 = vmul.f32 %v1510, %v1561
        %v1575 = vmul.f32 %v1512, %v1563
        %v1576 = vmul.f32 %v1516, %v1565
        %v1577 = vmul.f32 %v1518, %v1567
        %v1578 = vmul.f32 %v1520, %v1569
        %v1579 = vmul.f32 %v1522, %v1571
        %v1580 = vpack.c.bf16 %v1574, %v1572
        %v1581 = vpack.c.bf16 %v1575, %v1573
        %v1582 = vpack.c.bf16 %v1578, %v1576
        %v1583 = vpack.c.bf16 %v1579, %v1577
        %v1585 = vsel %vm647, %v950, 0
        %1587 = vmatprep.subr.bf16.mxu0 0
        %1588 = vmatpush1.bf16.msra.mxu0 0
        %1589 = vmatprep.subr.bf16.mxu0 0
        %1590 = vmatpush1.bf16.msra.mxu0 0
        %1591 = vmatprep.subr.bf16.mxu0 0
        %1592 = vmatpush1.bf16.msra.mxu0 0
        %1593 = vmatprep.subr.bf16.mxu0 0
        %1594 = vmatpush1.bf16.msra.mxu0 0
        %1595 = vmatprep.subr.bf16.mxu0 0
        %1596 = vmatpush1.bf16.msra.mxu0 0
        %1597 = vmatprep.subr.bf16.mxu0 0
        %1598 = vmatpush1.bf16.msra.mxu0 0
        %1599 = vmatprep.subr.bf16.mxu0 %v1583
        %1600 = vmatpush1.bf16.msra.mxu0 %v1582
        %1601 = vmatprep.subr.bf16.mxu0 %v1581
        %1602 = vmatpush1.bf16.msra.mxu0 %v1580
        %1603 = vmatprep.subr.bf16.mxu0 0
        %1604 = vmatpush2.bf16.msra.mxu0 0
        %1605 = vmatprep.subr.bf16.mxu0 0
        %1606 = vmatpush2.bf16.msra.mxu0 0
        %1607 = vmatprep.subr.bf16.mxu0 0
        %1608 = vmatpush2.bf16.msra.mxu0 0
        %1609 = vmatprep.subr.bf16.mxu0 0
        %1610 = vmatpush2.bf16.msra.mxu0 0
        %1611 = vmatprep.subr.bf16.mxu0 0
        %1612 = vmatpush2.bf16.msra.mxu0 0
        %1613 = vmatprep.subr.bf16.mxu0 0
        %1614 = vmatpush2.bf16.msra.mxu0 0
        %1615 = vmatprep.subr.bf16.mxu0 0
        %1616 = vmatpush2.bf16.msra.mxu0 0
        %1617 = vmatprep.subr.bf16.mxu0 0
        %1618 = vmatpush2.bf16.msra.mxu0 0
        %1619 = vmatprep.mubr.bf16.mxu0 0
        %1620 = vmatmul.mubr.bf16.gmra.mxu0 %v1585
        %v1621 = vpop.f32.mrf.mxu0
        %v1622 = vadd.f32 0.0, %v1621
        %v1623 = vpop.f32.mrf.mxu0
        %v1624 = vadd.f32 0.0, %v1623
        %v1625 = vpop.f32.mrf.mxu0
        %v1626 = vpop.f32.mrf.mxu0
        %1627 = vdwg.mxu0
        %v1628 = vrot.slane %v1622, 4
        %v1629 = vmax.f32 %v1622, %v1628
        %v1630 = vrot.slane %v1629, 2
        %v1631 = vmax.f32 %v1629, %v1630
        %v1632 = vrot.slane %v1631, 1
        %v1633 = vmax.f32 %v1631, %v1632
        %v1634 = vrot.slane %v1624, 4
        %v1635 = vmax.f32 %v1624, %v1634
        %v1636 = vrot.slane %v1635, 2
        %v1637 = vmax.f32 %v1635, %v1636
        %v1638 = vrot.slane %v1637, 1
        %v1639 = vmax.f32 %v1637, %v1638
        %v1640 = vsub.f32 %v1622, %v1633
        %v1641 = vsub.f32 %v1624, %v1639
        %v1642 = vmul.f32 %v1640, 1.442695
        %v1643 = vpow.pop %v1642
        %v1644 = vmul.f32 %v1641, 1.442695
        %v1645 = vpow.pop %v1644
        %v1646 = vrot.slane %v1643, 4
        %v1647 = vadd.f32 %v1643, %v1646
        %v1648 = vrot.slane %v1647, 2
        %v1649 = vadd.f32 %v1647, %v1648
        %v1650 = vrot.slane %v1649, 1
        %v1651 = vadd.f32 %v1649, %v1650
        %v1652 = vrot.slane %v1645, 4
        %v1653 = vadd.f32 %v1645, %v1652
        %v1654 = vrot.slane %v1653, 2
        %v1655 = vadd.f32 %v1653, %v1654
        %v1656 = vrot.slane %v1655, 1
        %v1657 = vadd.f32 %v1655, %v1656
        %v1658 = vrcp.pop %v1651
        %v1659 = vrcp.pop %v1657
        %v1660 = vmul.f32 %v1643, %v1658
        %v1661 = vmul.f32 %v1645, %v1659
        %v1662 = vpack.c.bf16 %v1660, %v1660
        %v1663 = vpack.c.bf16 %v1661, %v1661
        %vm1664 = vcmask 64512
        %v1666 = vsel %vm1664, %v1129, 0
        %v1669 = vsel %vm1464, %v1662, 0
        %v1672 = vsel %vm1464, %v1663, 0
        %1674 = vmatprep.subr.bf16.mxu0 0
        %1675 = vmatpush1.bf16.msra.mxu0 0
        %1676 = vmatprep.subr.bf16.mxu0 0
        %1677 = vmatpush1.bf16.msra.mxu0 0
        %1678 = vmatprep.subr.bf16.mxu0 0
        %1679 = vmatpush1.bf16.msra.mxu0 0
        %1680 = vmatprep.subr.bf16.mxu0 0
        %1681 = vmatpush1.bf16.msra.mxu0 0
        %1682 = vmatprep.subr.bf16.mxu0 0
        %1683 = vmatpush1.bf16.msra.mxu0 0
        %1684 = vmatprep.subr.bf16.mxu0 0
        %1685 = vmatpush1.bf16.msra.mxu0 0
        %1686 = vmatprep.subr.bf16.mxu0 0
        %1687 = vmatpush1.bf16.msra.mxu0 0
        %1688 = vmatprep.subr.bf16.mxu0 %v1672
        %1689 = vmatpush1.bf16.msra.mxu0 %v1669
        %1690 = vmatprep.subr.bf16.mxu0 0
        %1691 = vmatpush2.bf16.msra.mxu0 0
        %1692 = vmatprep.subr.bf16.mxu0 0
        %1693 = vmatpush2.bf16.msra.mxu0 0
        %1694 = vmatprep.subr.bf16.mxu0 0
        %1695 = vmatpush2.bf16.msra.mxu0 0
        %1696 = vmatprep.subr.bf16.mxu0 0
        %1697 = vmatpush2.bf16.msra.mxu0 0
        %1698 = vmatprep.subr.bf16.mxu0 0
        %1699 = vmatpush2.bf16.msra.mxu0 0
        %1700 = vmatprep.subr.bf16.mxu0 0
        %1701 = vmatpush2.bf16.msra.mxu0 0
        %1702 = vmatprep.subr.bf16.mxu0 0
        %1703 = vmatpush2.bf16.msra.mxu0 0
        %1704 = vmatprep.subr.bf16.mxu0 0
        %1705 = vmatpush2.bf16.msra.mxu0 0
        %1706 = vmatprep.mubr.bf16.mxu0 0
        %1707 = vmatmul.mubr.bf16.gmra.mxu0 %v1666
        %v1708 = vpop.f32.mrf.mxu0
        %v1709 = vadd.f32 0.0, %v1708
        %v1710 = vpop.f32.mrf.mxu0
        %v1711 = vadd.f32 0.0, %v1710
        %v1712 = vpop.f32.mrf.mxu0
        %v1713 = vpop.f32.mrf.mxu0
        %1714 = vdwg.mxu0
        %v1716 = vsel %vm647, %v1130, 0
        %1718 = vmatprep.subr.bf16.mxu0 0
        %1719 = vmatpush1.bf16.msra.mxu0 0
        %1720 = vmatprep.subr.bf16.mxu0 0
        %1721 = vmatpush1.bf16.msra.mxu0 0
        %1722 = vmatprep.subr.bf16.mxu0 0
        %1723 = vmatpush1.bf16.msra.mxu0 0
        %1724 = vmatprep.subr.bf16.mxu0 0
        %1725 = vmatpush1.bf16.msra.mxu0 0
        %1726 = vmatprep.subr.bf16.mxu0 0
        %1727 = vmatpush1.bf16.msra.mxu0 0
        %1728 = vmatprep.subr.bf16.mxu0 0
        %1729 = vmatpush1.bf16.msra.mxu0 0
        %1730 = vmatprep.subr.bf16.mxu0 %v1583
        %1731 = vmatpush1.bf16.msra.mxu0 %v1582
        %1732 = vmatprep.subr.bf16.mxu0 %v1581
        %1733 = vmatpush1.bf16.msra.mxu0 %v1580
        %1734 = vmatprep.subr.bf16.mxu0 0
        %1735 = vmatpush2.bf16.msra.mxu0 0
        %1736 = vmatprep.subr.bf16.mxu0 0
        %1737 = vmatpush2.bf16.msra.mxu0 0
        %1738 = vmatprep.subr.bf16.mxu0 0
        %1739 = vmatpush2.bf16.msra.mxu0 0
        %1740 = vmatprep.subr.bf16.mxu0 0
        %1741 = vmatpush2.bf16.msra.mxu0 0
        %1742 = vmatprep.subr.bf16.mxu0 0
        %1743 = vmatpush2.bf16.msra.mxu0 0
        %1744 = vmatprep.subr.bf16.mxu0 0
        %1745 = vmatpush2.bf16.msra.mxu0 0
        %1746 = vmatprep.subr.bf16.mxu0 0
        %1747 = vmatpush2.bf16.msra.mxu0 0
        %1748 = vmatprep.subr.bf16.mxu0 0
        %1749 = vmatpush2.bf16.msra.mxu0 0
        %1750 = vmatprep.mubr.bf16.mxu0 0
        %1751 = vmatmul.mubr.bf16.gmra.mxu0 %v1716
        %v1752 = vpop.f32.mrf.mxu0
        %v1753 = vadd.f32 %v1709, %v1752
        %v1754 = vpop.f32.mrf.mxu0
        %v1755 = vadd.f32 %v1711, %v1754
        %v1756 = vpop.f32.mrf.mxu0
        %v1757 = vpop.f32.mrf.mxu0
        %1758 = vdwg.mxu0
        %1760 = vset.pattern.permute.xlu0 0
        %1761 = vperm.xlu0 %1760, %v1338
        %v1762 = vpop.permute.xlu0 %1761
        %v1764 = vadd.f32 %v1753, %v1762
        %v1765 = vadd.f32 %v1755, %v1762
        %s1766 = sld [smem:[#allocation2]]
        %v1767 = vstv %s1766
        %v1768 = vmul.f32 %v1767, %v1339
        %v1769 = vmul.f32 %v1767, %v1340
        %s1770 = sld [smem:[#allocation2 + $0x1]]
        %v1771 = vstv %s1770
        %v1772 = vmul.f32 %v1771, %v1764
        %v1773 = vmul.f32 %v1771, %v1765
        %v1774 = vadd.f32 %v1768, %v1772
        %v1775 = vadd.f32 %v1769, %v1773
        %1776 = vrot.lane.b32.xlu0 %v1774, 17
        %v1777 = vpop.permute.xlu0 %1776
        %1778 = vrot.lane.b32.xlu0 %v1775, 17
        %v1779 = vpop.permute.xlu0 %1778
        %v1780 = vsel %vm1347, %v1777, %v1779
        %v1781 = vsel %vm1347, %v1779, %v1777
        %1782 = vrot.lane.b32.xlu0 %v1774, 16
        %v1783 = vpop.permute.xlu0 %1782
        %1784 = vrot.lane.b32.xlu0 %v1775, 16
        %v1785 = vpop.permute.xlu0 %1784
        %v1786 = vsel %vm1354, %v1783, %v1785
        %v1787 = vsel %vm1354, %v1785, %v1783
        %1788 = vrot.lane.b32.xlu0 %v1774, 15
        %v1789 = vpop.permute.xlu0 %1788
        %1790 = vrot.lane.b32.xlu0 %v1775, 15
        %v1791 = vpop.permute.xlu0 %1790
        %v1792 = vsel %vm1361, %v1789, %v1791
        %v1793 = vsel %vm1361, %v1791, %v1789
        %1794 = vrot.lane.b32.xlu0 %v1774, 1
        %v1795 = vpop.permute.xlu0 %1794
        %1796 = vrot.lane.b32.xlu0 %v1775, 1
        %v1797 = vpop.permute.xlu0 %1796
        %v1798 = vsel %vm1368, %v1795, %v1797
        %v1799 = vsel %vm1368, %v1797, %v1795
        %1800 = vrot.lane.b32.xlu0 %v1774, 127
        %v1801 = vpop.permute.xlu0 %1800
        %1802 = vrot.lane.b32.xlu0 %v1775, 127
        %v1803 = vpop.permute.xlu0 %1802
        %v1804 = vsel %vm1375, %v1801, %v1803
        %v1805 = vsel %vm1375, %v1803, %v1801
        %1806 = vrot.lane.b32.xlu0 %v1774, 113
        %v1807 = vpop.permute.xlu0 %1806
        %1808 = vrot.lane.b32.xlu0 %v1775, 113
        %v1809 = vpop.permute.xlu0 %1808
        %v1810 = vsel %vm1382, %v1807, %v1809
        %v1811 = vsel %vm1382, %v1809, %v1807
        %1812 = vrot.lane.b32.xlu0 %v1774, 112
        %v1813 = vpop.permute.xlu0 %1812
        %1814 = vrot.lane.b32.xlu0 %v1775, 112
        %v1815 = vpop.permute.xlu0 %1814
        %v1816 = vsel %vm1389, %v1813, %v1815
        %v1817 = vsel %vm1389, %v1815, %v1813
        %1818 = vrot.lane.b32.xlu0 %v1774, 111
        %v1819 = vpop.permute.xlu0 %1818
        %1820 = vrot.lane.b32.xlu0 %v1775, 111
        %v1821 = vpop.permute.xlu0 %1820
        %v1822 = vsel %vm1396, %v1819, %v1821
        %v1823 = vsel %vm1396, %v1821, %v1819
        %v1824 = vmul.f32 %v1781, %v1316
        %v1825 = vmul.f32 %v1780, %v1317
        %v1826 = vmul.f32 %v1787, %v1318
        %v1827 = vmul.f32 %v1786, %v1319
        %v1828 = vmul.f32 %v1793, %v1320
        %v1829 = vmul.f32 %v1792, %v1321
        %v1830 = vmul.f32 %v1799, %v1322
        %v1831 = vmul.f32 %v1798, %v1323
        %v1832 = vmul.f32 %v1774, %v1324
        %v1833 = vmul.f32 %v1775, %v1325
        %v1834 = vmul.f32 %v1804, %v1326
        %v1835 = vmul.f32 %v1805, %v1327
        %v1836 = vmul.f32 %v1810, %v1328
        %v1837 = vmul.f32 %v1811, %v1329
        %v1838 = vmul.f32 %v1816, %v1330
        %v1839 = vmul.f32 %v1817, %v1331
        %v1840 = vmul.f32 %v1822, %v1332
        %v1841 = vmul.f32 %v1823, %v1333
        %v1842 = vpack.c.bf16 %v1826, %v1824
        %v1843 = vpack.c.bf16 %v1827, %v1825
        %v1844 = vpack.c.bf16 %v1830, %v1828
        %v1845 = vpack.c.bf16 %v1831, %v1829
        %v1846 = vpack.c.bf16 %v1834, %v1832
        %v1847 = vpack.c.bf16 %v1835, %v1833
        %v1848 = vpack.c.bf16 %v1838, %v1836
        %v1849 = vpack.c.bf16 %v1839, %v1837
        %v1850 = vpack.c.bf16 %v1840, %v1840
        %v1851 = vpack.c.bf16 %v1841, %v1841
        %1852 = vset.pattern.permute.xlu0 1
        %1853 = vperm.xlu0 %1852, %v1312
        %v1854 = vpop.permute.xlu0 %1853
        %1856 = vset.pattern.permute.xlu0 1
        %1857 = vperm.xlu0 %1856, %v1313
        %v1858 = vpop.permute.xlu0 %1857
        %1860 = vset.pattern.permute.xlu0 1
        %1861 = vperm.xlu0 %1860, %v1314
        %v1862 = vpop.permute.xlu0 %1861
        %1864 = vset.pattern.permute.xlu0 1
        %1865 = vperm.xlu0 %1864, %v1315
        %v1866 = vpop.permute.xlu0 %1865
        %v1869 = vsel %vm1464, %v1850, 0
        %v1872 = vsel %vm1464, %v1851, 0
        %1874 = vmatprep.subr.bf16.mxu0 0
        %1875 = vmatpush1.bf16.msra.mxu0 0
        %1876 = vmatprep.subr.bf16.mxu0 0
        %1877 = vmatpush1.bf16.msra.mxu0 0
        %1878 = vmatprep.subr.bf16.mxu0 0
        %1879 = vmatpush1.bf16.msra.mxu0 0
        %1880 = vmatprep.subr.bf16.mxu0 %v1872
        %1881 = vmatpush1.bf16.msra.mxu0 %v1869
        %1882 = vmatprep.subr.bf16.mxu0 %v1849
        %1883 = vmatpush1.bf16.msra.mxu0 %v1848
        %1884 = vmatprep.subr.bf16.mxu0 %v1847
        %1885 = vmatpush1.bf16.msra.mxu0 %v1846
        %1886 = vmatprep.subr.bf16.mxu0 %v1845
        %1887 = vmatpush1.bf16.msra.mxu0 %v1844
        %1888 = vmatprep.subr.bf16.mxu0 %v1843
        %1889 = vmatpush1.bf16.msra.mxu0 %v1842
        %1890 = vmatprep.subr.bf16.mxu0 0
        %1891 = vmatpush2.bf16.msra.mxu0 0
        %1892 = vmatprep.subr.bf16.mxu0 0
        %1893 = vmatpush2.bf16.msra.mxu0 0
        %1894 = vmatprep.subr.bf16.mxu0 0
        %1895 = vmatpush2.bf16.msra.mxu0 0
        %1896 = vmatprep.subr.bf16.mxu0 0
        %1897 = vmatpush2.bf16.msra.mxu0 0
        %1898 = vmatprep.subr.bf16.mxu0 0
        %1899 = vmatpush2.bf16.msra.mxu0 0
        %1900 = vmatprep.subr.bf16.mxu0 0
        %1901 = vmatpush2.bf16.msra.mxu0 0
        %1902 = vmatprep.subr.bf16.mxu0 0
        %1903 = vmatpush2.bf16.msra.mxu0 0
        %1904 = vmatprep.subr.bf16.mxu0 0
        %1905 = vmatpush2.bf16.msra.mxu0 0
        %1906 = vmatprep.mubr.bf16.mxu0 0
        %1907 = vmatmul.mubr.bf16.gmra.mxu0 %v1459
        %v1908 = vpop.f32.mrf.mxu0
        %v1909 = vadd.f32 %v1854, %v1908
        %v1910 = vpop.f32.mrf.mxu0
        %v1911 = vadd.f32 %v1854, %v1910
        %v1912 = vpop.f32.mrf.mxu0
        %v1913 = vadd.f32 %v1858, %v1912
        %v1914 = vpop.f32.mrf.mxu0
        %v1915 = vadd.f32 %v1858, %v1914
        %1916 = vmatprep.mubr.bf16.mxu0 0
        %1917 = vmatmul.mubr.bf16.gmra.mxu0 %v1462
        %v1918 = vpop.f32.mrf.mxu0
        %v1919 = vadd.f32 %v1862, %v1918
        %v1920 = vpop.f32.mrf.mxu0
        %v1921 = vadd.f32 %v1862, %v1920
        %v1922 = vpop.f32.mrf.mxu0
        %v1923 = vadd.f32 %v1866, %v1922
        %v1924 = vpop.f32.mrf.mxu0
        %v1925 = vadd.f32 %v1866, %v1924
        %1926 = vdwg.mxu0
        %v1927 = vxor.u32 %v1909, 2147483648
        %v1928 = vxor.u32 %v1911, 2147483648
        %v1929 = vxor.u32 %v1913, 2147483648
        %v1930 = vxor.u32 %v1915, 2147483648
        %v1931 = vxor.u32 %v1919, 2147483648
        %v1932 = vxor.u32 %v1921, 2147483648
        %v1933 = vxor.u32 %v1923, 2147483648
        %v1934 = vxor.u32 %v1925, 2147483648
        %v1935 = vmul.f32 %v1927, 1.442695
        %v1936 = vpow.pop %v1935
        %v1937 = vmul.f32 %v1928, 1.442695
        %v1938 = vpow.pop %v1937
        %v1939 = vmul.f32 %v1929, 1.442695
        %v1940 = vpow.pop %v1939
        %v1941 = vmul.f32 %v1930, 1.442695
        %v1942 = vpow.pop %v1941
        %v1943 = vmul.f32 %v1931, 1.442695
        %v1944 = vpow.pop %v1943
        %v1945 = vmul.f32 %v1932, 1.442695
        %v1946 = vpow.pop %v1945
        %v1947 = vmul.f32 %v1933, 1.442695
        %v1948 = vpow.pop %v1947
        %v1949 = vmul.f32 %v1934, 1.442695
        %v1950 = vpow.pop %v1949
        %v1951 = vadd.f32 %v1936, 1.0
        %v1952 = vadd.f32 %v1938, 1.0
        %v1953 = vadd.f32 %v1940, 1.0
        %v1954 = vadd.f32 %v1942, 1.0
        %v1955 = vadd.f32 %v1944, 1.0
        %v1956 = vadd.f32 %v1946, 1.0
        %v1957 = vadd.f32 %v1948, 1.0
        %v1958 = vadd.f32 %v1950, 1.0
        %v1959 = vrcp.pop %v1951
        %v1960 = vmul.f32 1.0, %v1959
        %v1961 = vrcp.pop %v1952
        %v1962 = vmul.f32 1.0, %v1961
        %v1963 = vrcp.pop %v1953
        %v1964 = vmul.f32 1.0, %v1963
        %v1965 = vrcp.pop %v1954
        %v1966 = vmul.f32 1.0, %v1965
        %v1967 = vrcp.pop %v1955
        %v1968 = vmul.f32 1.0, %v1967
        %v1969 = vrcp.pop %v1956
        %v1970 = vmul.f32 1.0, %v1969
        %v1971 = vrcp.pop %v1957
        %v1972 = vmul.f32 1.0, %v1971
        %v1973 = vrcp.pop %v1958
        %v1974 = vmul.f32 1.0, %v1973
        %v1975 = vmul.f32 %v1909, %v1960
        %v1976 = vmul.f32 %v1911, %v1962
        %v1977 = vmul.f32 %v1913, %v1964
        %v1978 = vmul.f32 %v1915, %v1966
        %v1979 = vmul.f32 %v1919, %v1968
        %v1980 = vmul.f32 %v1921, %v1970
        %v1981 = vmul.f32 %v1923, %v1972
        %v1982 = vmul.f32 %v1925, %v1974
        %v1983 = vpack.c.bf16 %v1977, %v1975
        %v1984 = vpack.c.bf16 %v1978, %v1976
        %v1985 = vpack.c.bf16 %v1981, %v1979
        %v1986 = vpack.c.bf16 %v1982, %v1980
        %1987 = vmatprep.subr.bf16.mxu0 0
        %1988 = vmatpush1.bf16.msra.mxu0 0
        %1989 = vmatprep.subr.bf16.mxu0 0
        %1990 = vmatpush1.bf16.msra.mxu0 0
        %1991 = vmatprep.subr.bf16.mxu0 0
        %1992 = vmatpush1.bf16.msra.mxu0 0
        %1993 = vmatprep.subr.bf16.mxu0 0
        %1994 = vmatpush1.bf16.msra.mxu0 0
        %1995 = vmatprep.subr.bf16.mxu0 0
        %1996 = vmatpush1.bf16.msra.mxu0 0
        %1997 = vmatprep.subr.bf16.mxu0 0
        %1998 = vmatpush1.bf16.msra.mxu0 0
        %1999 = vmatprep.subr.bf16.mxu0 %v1986
        %2000 = vmatpush1.bf16.msra.mxu0 %v1985
        %2001 = vmatprep.subr.bf16.mxu0 %v1984
        %2002 = vmatpush1.bf16.msra.mxu0 %v1983
        %2003 = vmatprep.subr.bf16.mxu0 0
        %2004 = vmatpush2.bf16.msra.mxu0 0
        %2005 = vmatprep.subr.bf16.mxu0 0
        %2006 = vmatpush2.bf16.msra.mxu0 0
        %2007 = vmatprep.subr.bf16.mxu0 0
        %2008 = vmatpush2.bf16.msra.mxu0 0
        %2009 = vmatprep.subr.bf16.mxu0 0
        %2010 = vmatpush2.bf16.msra.mxu0 0
        %2011 = vmatprep.subr.bf16.mxu0 0
        %2012 = vmatpush2.bf16.msra.mxu0 0
        %2013 = vmatprep.subr.bf16.mxu0 0
        %2014 = vmatpush2.bf16.msra.mxu0 0
        %2015 = vmatprep.subr.bf16.mxu0 0
        %2016 = vmatpush2.bf16.msra.mxu0 0
        %2017 = vmatprep.subr.bf16.mxu0 0
        %2018 = vmatpush2.bf16.msra.mxu0 0
        %2019 = vmatprep.mubr.bf16.mxu0 0
        %2020 = vmatmul.mubr.bf16.gmra.mxu0 %v1585
        %v2021 = vpop.f32.mrf.mxu0
        %v2022 = vadd.f32 0.0, %v2021
        %v2023 = vpop.f32.mrf.mxu0
        %v2024 = vadd.f32 0.0, %v2023
        %v2025 = vpop.f32.mrf.mxu0
        %v2026 = vpop.f32.mrf.mxu0
        %2027 = vdwg.mxu0
        %v2028 = vrot.slane %v2022, 4
        %v2029 = vmax.f32 %v2022, %v2028
        %v2030 = vrot.slane %v2029, 2
        %v2031 = vmax.f32 %v2029, %v2030
        %v2032 = vrot.slane %v2031, 1
        %v2033 = vmax.f32 %v2031, %v2032
        %v2034 = vrot.slane %v2024, 4
        %v2035 = vmax.f32 %v2024, %v2034
        %v2036 = vrot.slane %v2035, 2
        %v2037 = vmax.f32 %v2035, %v2036
        %v2038 = vrot.slane %v2037, 1
        %v2039 = vmax.f32 %v2037, %v2038
        %v2040 = vsub.f32 %v2022, %v2033
        %v2041 = vsub.f32 %v2024, %v2039
        %v2042 = vmul.f32 %v2040, 1.442695
        %v2043 = vpow.pop %v2042
        %v2044 = vmul.f32 %v2041, 1.442695
        %v2045 = vpow.pop %v2044
        %v2046 = vrot.slane %v2043, 4
        %v2047 = vadd.f32 %v2043, %v2046
        %v2048 = vrot.slane %v2047, 2
        %v2049 = vadd.f32 %v2047, %v2048
        %v2050 = vrot.slane %v2049, 1
        %v2051 = vadd.f32 %v2049, %v2050
        %v2052 = vrot.slane %v2045, 4
        %v2053 = vadd.f32 %v2045, %v2052
        %v2054 = vrot.slane %v2053, 2
        %v2055 = vadd.f32 %v2053, %v2054
        %v2056 = vrot.slane %v2055, 1
        %v2057 = vadd.f32 %v2055, %v2056
        %v2058 = vrcp.pop %v2051
        %v2059 = vrcp.pop %v2057
        %v2060 = vmul.f32 %v2043, %v2058
        %v2061 = vmul.f32 %v2045, %v2059
        %v2062 = vpack.c.bf16 %v2060, %v2060
        %v2063 = vpack.c.bf16 %v2061, %v2061
        %v2065 = vsel %vm1464, %v2062, 0
        %v2068 = vsel %vm1464, %v2063, 0
        %2070 = vmatprep.subr.bf16.mxu0 0
        %2071 = vmatpush1.bf16.msra.mxu0 0
        %2072 = vmatprep.subr.bf16.mxu0 0
        %2073 = vmatpush1.bf16.msra.mxu0 0
        %2074 = vmatprep.subr.bf16.mxu0 0
        %2075 = vmatpush1.bf16.msra.mxu0 0
        %2076 = vmatprep.subr.bf16.mxu0 0
        %2077 = vmatpush1.bf16.msra.mxu0 0
        %2078 = vmatprep.subr.bf16.mxu0 0
        %2079 = vmatpush1.bf16.msra.mxu0 0
        %2080 = vmatprep.subr.bf16.mxu0 0
        %2081 = vmatpush1.bf16.msra.mxu0 0
        %2082 = vmatprep.subr.bf16.mxu0 0
        %2083 = vmatpush1.bf16.msra.mxu0 0
        %2084 = vmatprep.subr.bf16.mxu0 %v2068
        %2085 = vmatpush1.bf16.msra.mxu0 %v2065
        %2086 = vmatprep.subr.bf16.mxu0 0
        %2087 = vmatpush2.bf16.msra.mxu0 0
        %2088 = vmatprep.subr.bf16.mxu0 0
        %2089 = vmatpush2.bf16.msra.mxu0 0
        %2090 = vmatprep.subr.bf16.mxu0 0
        %2091 = vmatpush2.bf16.msra.mxu0 0
        %2092 = vmatprep.subr.bf16.mxu0 0
        %2093 = vmatpush2.bf16.msra.mxu0 0
        %2094 = vmatprep.subr.bf16.mxu0 0
        %2095 = vmatpush2.bf16.msra.mxu0 0
        %2096 = vmatprep.subr.bf16.mxu0 0
        %2097 = vmatpush2.bf16.msra.mxu0 0
        %2098 = vmatprep.subr.bf16.mxu0 0
        %2099 = vmatpush2.bf16.msra.mxu0 0
        %2100 = vmatprep.subr.bf16.mxu0 0
        %2101 = vmatpush2.bf16.msra.mxu0 0
        %2102 = vmatprep.mubr.bf16.mxu0 0
        %2103 = vmatmul.mubr.bf16.gmra.mxu0 %v1666
        %v2104 = vpop.f32.mrf.mxu0
        %v2105 = vadd.f32 0.0, %v2104
        %v2106 = vpop.f32.mrf.mxu0
        %v2107 = vadd.f32 0.0, %v2106
        %v2108 = vpop.f32.mrf.mxu0
        %v2109 = vpop.f32.mrf.mxu0
        %2110 = vdwg.mxu0
        %2111 = vmatprep.subr.bf16.mxu0 0
        %2112 = vmatpush1.bf16.msra.mxu0 0
        %2113 = vmatprep.subr.bf16.mxu0 0
        %2114 = vmatpush1.bf16.msra.mxu0 0
        %2115 = vmatprep.subr.bf16.mxu0 0
        %2116 = vmatpush1.bf16.msra.mxu0 0
        %2117 = vmatprep.subr.bf16.mxu0 0
        %2118 = vmatpush1.bf16.msra.mxu0 0
        %2119 = vmatprep.subr.bf16.mxu0 0
        %2120 = vmatpush1.bf16.msra.mxu0 0
        %2121 = vmatprep.subr.bf16.mxu0 0
        %2122 = vmatpush1.bf16.msra.mxu0 0
        %2123 = vmatprep.subr.bf16.mxu0 %v1986
        %2124 = vmatpush1.bf16.msra.mxu0 %v1985
        %2125 = vmatprep.subr.bf16.mxu0 %v1984
        %2126 = vmatpush1.bf16.msra.mxu0 %v1983
        %2127 = vmatprep.subr.bf16.mxu0 0
        %2128 = vmatpush2.bf16.msra.mxu0 0
        %2129 = vmatprep.subr.bf16.mxu0 0
        %2130 = vmatpush2.bf16.msra.mxu0 0
        %2131 = vmatprep.subr.bf16.mxu0 0
        %2132 = vmatpush2.bf16.msra.mxu0 0
        %2133 = vmatprep.subr.bf16.mxu0 0
        %2134 = vmatpush2.bf16.msra.mxu0 0
        %2135 = vmatprep.subr.bf16.mxu0 0
        %2136 = vmatpush2.bf16.msra.mxu0 0
        %2137 = vmatprep.subr.bf16.mxu0 0
        %2138 = vmatpush2.bf16.msra.mxu0 0
        %2139 = vmatprep.subr.bf16.mxu0 0
        %2140 = vmatpush2.bf16.msra.mxu0 0
        %2141 = vmatprep.subr.bf16.mxu0 0
        %2142 = vmatpush2.bf16.msra.mxu0 0
        %2143 = vmatprep.mubr.bf16.mxu0 0
        %2144 = vmatmul.mubr.bf16.gmra.mxu0 %v1716
        %v2145 = vpop.f32.mrf.mxu0
        %v2146 = vadd.f32 %v2105, %v2145
        %v2147 = vpop.f32.mrf.mxu0
        %v2148 = vadd.f32 %v2107, %v2147
        %v2149 = vpop.f32.mrf.mxu0
        %v2150 = vpop.f32.mrf.mxu0
        %2151 = vdwg.mxu0
        %v2152 = vadd.f32 %v2146, %v1762
        %v2153 = vadd.f32 %v2148, %v1762
        %s2154 = sld [smem:[#allocation2 + $0x2]]
        %v2155 = vstv %s2154
        %v2156 = vmul.f32 %v2155, %v1774
        %v2157 = vmul.f32 %v2155, %v1775
        %s2158 = sld [smem:[#allocation2 + $0x3]]
        %v2159 = vstv %s2158
        %v2160 = vmul.f32 %v2159, %v2152
        %v2161 = vmul.f32 %v2159, %v2153
        %v2162 = vadd.f32 %v2156, %v2160
        %v2163 = vadd.f32 %v2157, %v2161
        %2164 = vrot.lane.b32.xlu0 %v2162, 17
        %v2165 = vpop.permute.xlu0 %2164
        %2166 = vrot.lane.b32.xlu0 %v2163, 17
        %v2167 = vpop.permute.xlu0 %2166
        %v2168 = vsel %vm1347, %v2165, %v2167
        %v2169 = vsel %vm1347, %v2167, %v2165
        %2170 = vrot.lane.b32.xlu0 %v2162, 16
        %v2171 = vpop.permute.xlu0 %2170
        %2172 = vrot.lane.b32.xlu0 %v2163, 16
        %v2173 = vpop.permute.xlu0 %2172
        %v2174 = vsel %vm1354, %v2171, %v2173
        %v2175 = vsel %vm1354, %v2173, %v2171
        %2176 = vrot.lane.b32.xlu0 %v2162, 15
        %v2177 = vpop.permute.xlu0 %2176
        %2178 = vrot.lane.b32.xlu0 %v2163, 15
        %v2179 = vpop.permute.xlu0 %2178
        %v2180 = vsel %vm1361, %v2177, %v2179
        %v2181 = vsel %vm1361, %v2179, %v2177
        %2182 = vrot.lane.b32.xlu0 %v2162, 1
        %v2183 = vpop.permute.xlu0 %2182
        %2184 = vrot.lane.b32.xlu0 %v2163, 1
        %v2185 = vpop.permute.xlu0 %2184
        %v2186 = vsel %vm1368, %v2183, %v2185
        %v2187 = vsel %vm1368, %v2185, %v2183
        %2188 = vrot.lane.b32.xlu0 %v2162, 127
        %v2189 = vpop.permute.xlu0 %2188
        %2190 = vrot.lane.b32.xlu0 %v2163, 127
        %v2191 = vpop.permute.xlu0 %2190
        %v2192 = vsel %vm1375, %v2189, %v2191
        %v2193 = vsel %vm1375, %v2191, %v2189
        %2194 = vrot.lane.b32.xlu0 %v2162, 113
        %v2195 = vpop.permute.xlu0 %2194
        %2196 = vrot.lane.b32.xlu0 %v2163, 113
        %v2197 = vpop.permute.xlu0 %2196
        %v2198 = vsel %vm1382, %v2195, %v2197
        %v2199 = vsel %vm1382, %v2197, %v2195
        %2200 = vrot.lane.b32.xlu0 %v2162, 112
        %v2201 = vpop.permute.xlu0 %2200
        %2202 = vrot.lane.b32.xlu0 %v2163, 112
        %v2203 = vpop.permute.xlu0 %2202
        %v2204 = vsel %vm1389, %v2201, %v2203
        %v2205 = vsel %vm1389, %v2203, %v2201
        %2206 = vrot.lane.b32.xlu0 %v2162, 111
        %v2207 = vpop.permute.xlu0 %2206
        %2208 = vrot.lane.b32.xlu0 %v2163, 111
        %v2209 = vpop.permute.xlu0 %2208
        %v2210 = vsel %vm1396, %v2207, %v2209
        %v2211 = vsel %vm1396, %v2209, %v2207
        %v2212 = vmul.f32 %v2169, %v1316
        %v2213 = vmul.f32 %v2168, %v1317
        %v2214 = vmul.f32 %v2175, %v1318
        %v2215 = vmul.f32 %v2174, %v1319
        %v2216 = vmul.f32 %v2181, %v1320
        %v2217 = vmul.f32 %v2180, %v1321
        %v2218 = vmul.f32 %v2187, %v1322
        %v2219 = vmul.f32 %v2186, %v1323
        %v2220 = vmul.f32 %v2162, %v1324
        %v2221 = vmul.f32 %v2163, %v1325
        %v2222 = vmul.f32 %v2192, %v1326
        %v2223 = vmul.f32 %v2193, %v1327
        %v2224 = vmul.f32 %v2198, %v1328
        %v2225 = vmul.f32 %v2199, %v1329
        %v2226 = vmul.f32 %v2204, %v1330
        %v2227 = vmul.f32 %v2205, %v1331
        %v2228 = vmul.f32 %v2210, %v1332
        %v2229 = vmul.f32 %v2211, %v1333
        %v2230 = vpack.c.bf16 %v2214, %v2212
        %v2231 = vpack.c.bf16 %v2215, %v2213
        %v2232 = vpack.c.bf16 %v2218, %v2216
        %v2233 = vpack.c.bf16 %v2219, %v2217
        %v2234 = vpack.c.bf16 %v2222, %v2220
        %v2235 = vpack.c.bf16 %v2223, %v2221
        %v2236 = vpack.c.bf16 %v2226, %v2224
        %v2237 = vpack.c.bf16 %v2227, %v2225
        %v2238 = vpack.c.bf16 %v2228, %v2228
        %v2239 = vpack.c.bf16 %v2229, %v2229
        %2240 = vset.pattern.permute.xlu0 2
        %2241 = vperm.xlu0 %2240, %v1312
        %v2242 = vpop.permute.xlu0 %2241
        %2244 = vset.pattern.permute.xlu0 2
        %2245 = vperm.xlu0 %2244, %v1313
        %v2246 = vpop.permute.xlu0 %2245
        %2248 = vset.pattern.permute.xlu0 2
        %2249 = vperm.xlu0 %2248, %v1314
        %v2250 = vpop.permute.xlu0 %2249
        %2252 = vset.pattern.permute.xlu0 2
        %2253 = vperm.xlu0 %2252, %v1315
        %v2254 = vpop.permute.xlu0 %2253
        %v2257 = vsel %vm1464, %v2238, 0
        %v2260 = vsel %vm1464, %v2239, 0
        %2262 = vmatprep.subr.bf16.mxu0 0
        %2263 = vmatpush1.bf16.msra.mxu0 0
        %2264 = vmatprep.subr.bf16.mxu0 0
        %2265 = vmatpush1.bf16.msra.mxu0 0
        %2266 = vmatprep.subr.bf16.mxu0 0
        %2267 = vmatpush1.bf16.msra.mxu0 0
        %2268 = vmatprep.subr.bf16.mxu0 %v2260
        %2269 = vmatpush1.bf16.msra.mxu0 %v2257
        %2270 = vmatprep.subr.bf16.mxu0 %v2237
        %2271 = vmatpush1.bf16.msra.mxu0 %v2236
        %2272 = vmatprep.subr.bf16.mxu0 %v2235
        %2273 = vmatpush1.bf16.msra.mxu0 %v2234
        %2274 = vmatprep.subr.bf16.mxu0 %v2233
        %2275 = vmatpush1.bf16.msra.mxu0 %v2232
        %2276 = vmatprep.subr.bf16.mxu0 %v2231
        %2277 = vmatpush1.bf16.msra.mxu0 %v2230
        %2278 = vmatprep.subr.bf16.mxu0 0
        %2279 = vmatpush2.bf16.msra.mxu0 0
        %2280 = vmatprep.subr.bf16.mxu0 0
        %2281 = vmatpush2.bf16.msra.mxu0 0
        %2282 = vmatprep.subr.bf16.mxu0 0
        %2283 = vmatpush2.bf16.msra.mxu0 0
        %2284 = vmatprep.subr.bf16.mxu0 0
        %2285 = vmatpush2.bf16.msra.mxu0 0
        %2286 = vmatprep.subr.bf16.mxu0 0
        %2287 = vmatpush2.bf16.msra.mxu0 0
        %2288 = vmatprep.subr.bf16.mxu0 0
        %2289 = vmatpush2.bf16.msra.mxu0 0
        %2290 = vmatprep.subr.bf16.mxu0 0
        %2291 = vmatpush2.bf16.msra.mxu0 0
        %2292 = vmatprep.subr.bf16.mxu0 0
        %2293 = vmatpush2.bf16.msra.mxu0 0
        %2294 = vmatprep.mubr.bf16.mxu0 0
        %2295 = vmatmul.mubr.bf16.gmra.mxu0 %v1459
        %v2296 = vpop.f32.mrf.mxu0
        %v2297 = vadd.f32 %v2242, %v2296
        %v2298 = vpop.f32.mrf.mxu0
        %v2299 = vadd.f32 %v2242, %v2298
        %v2300 = vpop.f32.mrf.mxu0
        %v2301 = vadd.f32 %v2246, %v2300
        %v2302 = vpop.f32.mrf.mxu0
        %v2303 = vadd.f32 %v2246, %v2302
        %2304 = vmatprep.mubr.bf16.mxu0 0
        %2305 = vmatmul.mubr.bf16.gmra.mxu0 %v1462
        %v2306 = vpop.f32.mrf.mxu0
        %v2307 = vadd.f32 %v2250, %v2306
        %v2308 = vpop.f32.mrf.mxu0
        %v2309 = vadd.f32 %v2250, %v2308
        %v2310 = vpop.f32.mrf.mxu0
        %v2311 = vadd.f32 %v2254, %v2310
        %v2312 = vpop.f32.mrf.mxu0
        %v2313 = vadd.f32 %v2254, %v2312
        %2314 = vdwg.mxu0
        %v2315 = vxor.u32 %v2297, 2147483648
        %v2316 = vxor.u32 %v2299, 2147483648
        %v2317 = vxor.u32 %v2301, 2147483648
        %v2318 = vxor.u32 %v2303, 2147483648
        %v2319 = vxor.u32 %v2307, 2147483648
        %v2320 = vxor.u32 %v2309, 2147483648
        %v2321 = vxor.u32 %v2311, 2147483648
        %v2322 = vxor.u32 %v2313, 2147483648
        %v2323 = vmul.f32 %v2315, 1.442695
        %v2324 = vpow.pop %v2323
        %v2325 = vmul.f32 %v2316, 1.442695
        %v2326 = vpow.pop %v2325
        %v2327 = vmul.f32 %v2317, 1.442695
        %v2328 = vpow.pop %v2327
        %v2329 = vmul.f32 %v2318, 1.442695
        %v2330 = vpow.pop %v2329
        %v2331 = vmul.f32 %v2319, 1.442695
        %v2332 = vpow.pop %v2331
        %v2333 = vmul.f32 %v2320, 1.442695
        %v2334 = vpow.pop %v2333
        %v2335 = vmul.f32 %v2321, 1.442695
        %v2336 = vpow.pop %v2335
        %v2337 = vmul.f32 %v2322, 1.442695
        %v2338 = vpow.pop %v2337
        %v2339 = vadd.f32 %v2324, 1.0
        %v2340 = vadd.f32 %v2326, 1.0
        %v2341 = vadd.f32 %v2328, 1.0
        %v2342 = vadd.f32 %v2330, 1.0
        %v2343 = vadd.f32 %v2332, 1.0
        %v2344 = vadd.f32 %v2334, 1.0
        %v2345 = vadd.f32 %v2336, 1.0
        %v2346 = vadd.f32 %v2338, 1.0
        %v2347 = vrcp.pop %v2339
        %v2348 = vmul.f32 1.0, %v2347
        %v2349 = vrcp.pop %v2340
        %v2350 = vmul.f32 1.0, %v2349
        %v2351 = vrcp.pop %v2341
        %v2352 = vmul.f32 1.0, %v2351
        %v2353 = vrcp.pop %v2342
        %v2354 = vmul.f32 1.0, %v2353
        %v2355 = vrcp.pop %v2343
        %v2356 = vmul.f32 1.0, %v2355
        %v2357 = vrcp.pop %v2344
        %v2358 = vmul.f32 1.0, %v2357
        %v2359 = vrcp.pop %v2345
        %v2360 = vmul.f32 1.0, %v2359
        %v2361 = vrcp.pop %v2346
        %v2362 = vmul.f32 1.0, %v2361
        %v2363 = vmul.f32 %v2297, %v2348
        %v2364 = vmul.f32 %v2299, %v2350
        %v2365 = vmul.f32 %v2301, %v2352
        %v2366 = vmul.f32 %v2303, %v2354
        %v2367 = vmul.f32 %v2307, %v2356
        %v2368 = vmul.f32 %v2309, %v2358
        %v2369 = vmul.f32 %v2311, %v2360
        %v2370 = vmul.f32 %v2313, %v2362
        %v2371 = vpack.c.bf16 %v2365, %v2363
        %v2372 = vpack.c.bf16 %v2366, %v2364
        %v2373 = vpack.c.bf16 %v2369, %v2367
        %v2374 = vpack.c.bf16 %v2370, %v2368
        %2375 = vmatprep.subr.bf16.mxu0 0
        %2376 = vmatpush1.bf16.msra.mxu0 0
        %2377 = vmatprep.subr.bf16.mxu0 0
        %2378 = vmatpush1.bf16.msra.mxu0 0
        %2379 = vmatprep.subr.bf16.mxu0 0
        %2380 = vmatpush1.bf16.msra.mxu0 0
        %2381 = vmatprep.subr.bf16.mxu0 0
        %2382 = vmatpush1.bf16.msra.mxu0 0
        %2383 = vmatprep.subr.bf16.mxu0 0
        %2384 = vmatpush1.bf16.msra.mxu0 0
        %2385 = vmatprep.subr.bf16.mxu0 0
        %2386 = vmatpush1.bf16.msra.mxu0 0
        %2387 = vmatprep.subr.bf16.mxu0 %v2374
        %2388 = vmatpush1.bf16.msra.mxu0 %v2373
        %2389 = vmatprep.subr.bf16.mxu0 %v2372
        %2390 = vmatpush1.bf16.msra.mxu0 %v2371
        %2391 = vmatprep.subr.bf16.mxu0 0
        %2392 = vmatpush2.bf16.msra.mxu0 0
        %2393 = vmatprep.subr.bf16.mxu0 0
        %2394 = vmatpush2.bf16.msra.mxu0 0
        %2395 = vmatprep.subr.bf16.mxu0 0
        %2396 = vmatpush2.bf16.msra.mxu0 0
        %2397 = vmatprep.subr.bf16.mxu0 0
        %2398 = vmatpush2.bf16.msra.mxu0 0
        %2399 = vmatprep.subr.bf16.mxu0 0
        %2400 = vmatpush2.bf16.msra.mxu0 0
        %2401 = vmatprep.subr.bf16.mxu0 0
        %2402 = vmatpush2.bf16.msra.mxu0 0
        %2403 = vmatprep.subr.bf16.mxu0 0
        %2404 = vmatpush2.bf16.msra.mxu0 0
        %2405 = vmatprep.subr.bf16.mxu0 0
        %2406 = vmatpush2.bf16.msra.mxu0 0
        %2407 = vmatprep.mubr.bf16.mxu0 0
        %2408 = vmatmul.mubr.bf16.gmra.mxu0 %v1585
        %v2409 = vpop.f32.mrf.mxu0
        %v2410 = vadd.f32 0.0, %v2409
        %v2411 = vpop.f32.mrf.mxu0
        %v2412 = vadd.f32 0.0, %v2411
        %v2413 = vpop.f32.mrf.mxu0
        %v2414 = vpop.f32.mrf.mxu0
        %2415 = vdwg.mxu0
        %v2416 = vrot.slane %v2410, 4
        %v2417 = vmax.f32 %v2410, %v2416
        %v2418 = vrot.slane %v2417, 2
        %v2419 = vmax.f32 %v2417, %v2418
        %v2420 = vrot.slane %v2419, 1
        %v2421 = vmax.f32 %v2419, %v2420
        %v2422 = vrot.slane %v2412, 4
        %v2423 = vmax.f32 %v2412, %v2422
        %v2424 = vrot.slane %v2423, 2
        %v2425 = vmax.f32 %v2423, %v2424
        %v2426 = vrot.slane %v2425, 1
        %v2427 = vmax.f32 %v2425, %v2426
        %v2428 = vsub.f32 %v2410, %v2421
        %v2429 = vsub.f32 %v2412, %v2427
        %v2430 = vmul.f32 %v2428, 1.442695
        %v2431 = vpow.pop %v2430
        %v2432 = vmul.f32 %v2429, 1.442695
        %v2433 = vpow.pop %v2432
        %v2434 = vrot.slane %v2431, 4
        %v2435 = vadd.f32 %v2431, %v2434
        %v2436 = vrot.slane %v2435, 2
        %v2437 = vadd.f32 %v2435, %v2436
        %v2438 = vrot.slane %v2437, 1
        %v2439 = vadd.f32 %v2437, %v2438
        %v2440 = vrot.slane %v2433, 4
        %v2441 = vadd.f32 %v2433, %v2440
        %v2442 = vrot.slane %v2441, 2
        %v2443 = vadd.f32 %v2441, %v2442
        %v2444 = vrot.slane %v2443, 1
        %v2445 = vadd.f32 %v2443, %v2444
        %v2446 = vrcp.pop %v2439
        %v2447 = vrcp.pop %v2445
        %v2448 = vmul.f32 %v2431, %v2446
        %v2449 = vmul.f32 %v2433, %v2447
        %v2450 = vpack.c.bf16 %v2448, %v2448
        %v2451 = vpack.c.bf16 %v2449, %v2449
        %v2453 = vsel %vm1464, %v2450, 0
        %v2456 = vsel %vm1464, %v2451, 0
        %2458 = vmatprep.subr.bf16.mxu0 0
        %2459 = vmatpush1.bf16.msra.mxu0 0
        %2460 = vmatprep.subr.bf16.mxu0 0
        %2461 = vmatpush1.bf16.msra.mxu0 0
        %2462 = vmatprep.subr.bf16.mxu0 0
        %2463 = vmatpush1.bf16.msra.mxu0 0
        %2464 = vmatprep.subr.bf16.mxu0 0
        %2465 = vmatpush1.bf16.msra.mxu0 0
        %2466 = vmatprep.subr.bf16.mxu0 0
        %2467 = vmatpush1.bf16.msra.mxu0 0
        %2468 = vmatprep.subr.bf16.mxu0 0
        %2469 = vmatpush1.bf16.msra.mxu0 0
        %2470 = vmatprep.subr.bf16.mxu0 0
        %2471 = vmatpush1.bf16.msra.mxu0 0
        %2472 = vmatprep.subr.bf16.mxu0 %v2456
        %2473 = vmatpush1.bf16.msra.mxu0 %v2453
        %2474 = vmatprep.subr.bf16.mxu0 0
        %2475 = vmatpush2.bf16.msra.mxu0 0
        %2476 = vmatprep.subr.bf16.mxu0 0
        %2477 = vmatpush2.bf16.msra.mxu0 0
        %2478 = vmatprep.subr.bf16.mxu0 0
        %2479 = vmatpush2.bf16.msra.mxu0 0
        %2480 = vmatprep.subr.bf16.mxu0 0
        %2481 = vmatpush2.bf16.msra.mxu0 0
        %2482 = vmatprep.subr.bf16.mxu0 0
        %2483 = vmatpush2.bf16.msra.mxu0 0
        %2484 = vmatprep.subr.bf16.mxu0 0
        %2485 = vmatpush2.bf16.msra.mxu0 0
        %2486 = vmatprep.subr.bf16.mxu0 0
        %2487 = vmatpush2.bf16.msra.mxu0 0
        %2488 = vmatprep.subr.bf16.mxu0 0
        %2489 = vmatpush2.bf16.msra.mxu0 0
        %2490 = vmatprep.mubr.bf16.mxu0 0
        %2491 = vmatmul.mubr.bf16.gmra.mxu0 %v1666
        %v2492 = vpop.f32.mrf.mxu0
        %v2493 = vadd.f32 0.0, %v2492
        %v2494 = vpop.f32.mrf.mxu0
        %v2495 = vadd.f32 0.0, %v2494
        %v2496 = vpop.f32.mrf.mxu0
        %v2497 = vpop.f32.mrf.mxu0
        %2498 = vdwg.mxu0
        %2499 = vmatprep.subr.bf16.mxu0 0
        %2500 = vmatpush1.bf16.msra.mxu0 0
        %2501 = vmatprep.subr.bf16.mxu0 0
        %2502 = vmatpush1.bf16.msra.mxu0 0
        %2503 = vmatprep.subr.bf16.mxu0 0
        %2504 = vmatpush1.bf16.msra.mxu0 0
        %2505 = vmatprep.subr.bf16.mxu0 0
        %2506 = vmatpush1.bf16.msra.mxu0 0
        %2507 = vmatprep.subr.bf16.mxu0 0
        %2508 = vmatpush1.bf16.msra.mxu0 0
        %2509 = vmatprep.subr.bf16.mxu0 0
        %2510 = vmatpush1.bf16.msra.mxu0 0
        %2511 = vmatprep.subr.bf16.mxu0 %v2374
        %2512 = vmatpush1.bf16.msra.mxu0 %v2373
        %2513 = vmatprep.subr.bf16.mxu0 %v2372
        %2514 = vmatpush1.bf16.msra.mxu0 %v2371
        %2515 = vmatprep.subr.bf16.mxu0 0
        %2516 = vmatpush2.bf16.msra.mxu0 0
        %2517 = vmatprep.subr.bf16.mxu0 0
        %2518 = vmatpush2.bf16.msra.mxu0 0
        %2519 = vmatprep.subr.bf16.mxu0 0
        %2520 = vmatpush2.bf16.msra.mxu0 0
        %2521 = vmatprep.subr.bf16.mxu0 0
        %2522 = vmatpush2.bf16.msra.mxu0 0
        %2523 = vmatprep.subr.bf16.mxu0 0
        %2524 = vmatpush2.bf16.msra.mxu0 0
        %2525 = vmatprep.subr.bf16.mxu0 0
        %2526 = vmatpush2.bf16.msra.mxu0 0
        %2527 = vmatprep.subr.bf16.mxu0 0
        %2528 = vmatpush2.bf16.msra.mxu0 0
        %2529 = vmatprep.subr.bf16.mxu0 0
        %2530 = vmatpush2.bf16.msra.mxu0 0
        %2531 = vmatprep.mubr.bf16.mxu0 0
        %2532 = vmatmul.mubr.bf16.gmra.mxu0 %v1716
        %v2533 = vpop.f32.mrf.mxu0
        %v2534 = vadd.f32 %v2493, %v2533
        %v2535 = vpop.f32.mrf.mxu0
        %v2536 = vadd.f32 %v2495, %v2535
        %v2537 = vpop.f32.mrf.mxu0
        %v2538 = vpop.f32.mrf.mxu0
        %2539 = vdwg.mxu0
        %v2540 = vadd.f32 %v2534, %v1762
        %v2541 = vadd.f32 %v2536, %v1762
        %s2542 = sld [smem:[#allocation2 + $0x4]]
        %v2543 = vstv %s2542
        %v2544 = vmul.f32 %v2543, %v2162
        %v2545 = vmul.f32 %v2543, %v2163
        %s2546 = sld [smem:[#allocation2 + $0x5]]
        %v2547 = vstv %s2546
        %v2548 = vmul.f32 %v2547, %v2540
        %v2549 = vmul.f32 %v2547, %v2541
        %v2550 = vadd.f32 %v2544, %v2548
        %v2551 = vadd.f32 %v2545, %v2549
        %2552 = vrot.lane.b32.xlu0 %v2550, 17
        %v2553 = vpop.permute.xlu0 %2552
        %2554 = vrot.lane.b32.xlu0 %v2551, 17
        %v2555 = vpop.permute.xlu0 %2554
        %v2556 = vsel %vm1347, %v2553, %v2555
        %v2557 = vsel %vm1347, %v2555, %v2553
        %2558 = vrot.lane.b32.xlu0 %v2550, 16
        %v2559 = vpop.permute.xlu0 %2558
        %2560 = vrot.lane.b32.xlu0 %v2551, 16
        %v2561 = vpop.permute.xlu0 %2560
        %v2562 = vsel %vm1354, %v2559, %v2561
        %v2563 = vsel %vm1354, %v2561, %v2559
        %2564 = vrot.lane.b32.xlu0 %v2550, 15
        %v2565 = vpop.permute.xlu0 %2564
        %2566 = vrot.lane.b32.xlu0 %v2551, 15
        %v2567 = vpop.permute.xlu0 %2566
        %v2568 = vsel %vm1361, %v2565, %v2567
        %v2569 = vsel %vm1361, %v2567, %v2565
        %2570 = vrot.lane.b32.xlu0 %v2550, 1
        %v2571 = vpop.permute.xlu0 %2570
        %2572 = vrot.lane.b32.xlu0 %v2551, 1
        %v2573 = vpop.permute.xlu0 %2572
        %v2574 = vsel %vm1368, %v2571, %v2573
        %v2575 = vsel %vm1368, %v2573, %v2571
        %2576 = vrot.lane.b32.xlu0 %v2550, 127
        %v2577 = vpop.permute.xlu0 %2576
        %2578 = vrot.lane.b32.xlu0 %v2551, 127
        %v2579 = vpop.permute.xlu0 %2578
        %v2580 = vsel %vm1375, %v2577, %v2579
        %v2581 = vsel %vm1375, %v2579, %v2577
        %2582 = vrot.lane.b32.xlu0 %v2550, 113
        %v2583 = vpop.permute.xlu0 %2582
        %2584 = vrot.lane.b32.xlu0 %v2551, 113
        %v2585 = vpop.permute.xlu0 %2584
        %v2586 = vsel %vm1382, %v2583, %v2585
        %v2587 = vsel %vm1382, %v2585, %v2583
        %2588 = vrot.lane.b32.xlu0 %v2550, 112
        %v2589 = vpop.permute.xlu0 %2588
        %2590 = vrot.lane.b32.xlu0 %v2551, 112
        %v2591 = vpop.permute.xlu0 %2590
        %v2592 = vsel %vm1389, %v2589, %v2591
        %v2593 = vsel %vm1389, %v2591, %v2589
        %2594 = vrot.lane.b32.xlu0 %v2550, 111
        %v2595 = vpop.permute.xlu0 %2594
        %2596 = vrot.lane.b32.xlu0 %v2551, 111
        %v2597 = vpop.permute.xlu0 %2596
        %v2598 = vsel %vm1396, %v2595, %v2597
        %v2599 = vsel %vm1396, %v2597, %v2595
        %v2600 = vmul.f32 %v2557, %v1316
        %v2601 = vmul.f32 %v2556, %v1317
        %v2602 = vmul.f32 %v2563, %v1318
        %v2603 = vmul.f32 %v2562, %v1319
        %v2604 = vmul.f32 %v2569, %v1320
        %v2605 = vmul.f32 %v2568, %v1321
        %v2606 = vmul.f32 %v2575, %v1322
        %v2607 = vmul.f32 %v2574, %v1323
        %v2608 = vmul.f32 %v2550, %v1324
        %v2609 = vmul.f32 %v2551, %v1325
        %v2610 = vmul.f32 %v2580, %v1326
        %v2611 = vmul.f32 %v2581, %v1327
        %v2612 = vmul.f32 %v2586, %v1328
        %v2613 = vmul.f32 %v2587, %v1329
        %v2614 = vmul.f32 %v2592, %v1330
        %v2615 = vmul.f32 %v2593, %v1331
        %v2616 = vmul.f32 %v2598, %v1332
        %v2617 = vmul.f32 %v2599, %v1333
        %v2618 = vpack.c.bf16 %v2602, %v2600
        %v2619 = vpack.c.bf16 %v2603, %v2601
        %v2620 = vpack.c.bf16 %v2606, %v2604
        %v2621 = vpack.c.bf16 %v2607, %v2605
        %v2622 = vpack.c.bf16 %v2610, %v2608
        %v2623 = vpack.c.bf16 %v2611, %v2609
        %v2624 = vpack.c.bf16 %v2614, %v2612
        %v2625 = vpack.c.bf16 %v2615, %v2613
        %v2626 = vpack.c.bf16 %v2616, %v2616
        %v2627 = vpack.c.bf16 %v2617, %v2617
        %2628 = vset.pattern.permute.xlu0 3
        %2629 = vperm.xlu0 %2628, %v1312
        %v2630 = vpop.permute.xlu0 %2629
        %2632 = vset.pattern.permute.xlu0 3
        %2633 = vperm.xlu0 %2632, %v1313
        %v2634 = vpop.permute.xlu0 %2633
        %2636 = vset.pattern.permute.xlu0 3
        %2637 = vperm.xlu0 %2636, %v1314
        %v2638 = vpop.permute.xlu0 %2637
        %2640 = vset.pattern.permute.xlu0 3
        %2641 = vperm.xlu0 %2640, %v1315
        %v2642 = vpop.permute.xlu0 %2641
        %v2645 = vsel %vm1464, %v2626, 0
        %v2648 = vsel %vm1464, %v2627, 0
        %2650 = vmatprep.subr.bf16.mxu0 0
        %2651 = vmatpush1.bf16.msra.mxu0 0
        %2652 = vmatprep.subr.bf16.mxu0 0
        %2653 = vmatpush1.bf16.msra.mxu0 0
        %2654 = vmatprep.subr.bf16.mxu0 0
        %2655 = vmatpush1.bf16.msra.mxu0 0
        %2656 = vmatprep.subr.bf16.mxu0 %v2648
        %2657 = vmatpush1.bf16.msra.mxu0 %v2645
        %2658 = vmatprep.subr.bf16.mxu0 %v2625
        %2659 = vmatpush1.bf16.msra.mxu0 %v2624
        %2660 = vmatprep.subr.bf16.mxu0 %v2623
        %2661 = vmatpush1.bf16.msra.mxu0 %v2622
        %2662 = vmatprep.subr.bf16.mxu0 %v2621
        %2663 = vmatpush1.bf16.msra.mxu0 %v2620
        %2664 = vmatprep.subr.bf16.mxu0 %v2619
        %2665 = vmatpush1.bf16.msra.mxu0 %v2618
        %2666 = vmatprep.subr.bf16.mxu0 0
        %2667 = vmatpush2.bf16.msra.mxu0 0
        %2668 = vmatprep.subr.bf16.mxu0 0
        %2669 = vmatpush2.bf16.msra.mxu0 0
        %2670 = vmatprep.subr.bf16.mxu0 0
        %2671 = vmatpush2.bf16.msra.mxu0 0
        %2672 = vmatprep.subr.bf16.mxu0 0
        %2673 = vmatpush2.bf16.msra.mxu0 0
        %2674 = vmatprep.subr.bf16.mxu0 0
        %2675 = vmatpush2.bf16.msra.mxu0 0
        %2676 = vmatprep.subr.bf16.mxu0 0
        %2677 = vmatpush2.bf16.msra.mxu0 0
        %2678 = vmatprep.subr.bf16.mxu0 0
        %2679 = vmatpush2.bf16.msra.mxu0 0
        %2680 = vmatprep.subr.bf16.mxu0 0
        %2681 = vmatpush2.bf16.msra.mxu0 0
        %2682 = vmatprep.mubr.bf16.mxu0 0
        %2683 = vmatmul.mubr.bf16.gmra.mxu0 %v1459
        %v2684 = vpop.f32.mrf.mxu0
        %v2685 = vadd.f32 %v2630, %v2684
        %v2686 = vpop.f32.mrf.mxu0
        %v2687 = vadd.f32 %v2630, %v2686
        %v2688 = vpop.f32.mrf.mxu0
        %v2689 = vadd.f32 %v2634, %v2688
        %v2690 = vpop.f32.mrf.mxu0
        %v2691 = vadd.f32 %v2634, %v2690
        %2692 = vmatprep.mubr.bf16.mxu0 0
        %2693 = vmatmul.mubr.bf16.gmra.mxu0 %v1462
        %v2694 = vpop.f32.mrf.mxu0
        %v2695 = vadd.f32 %v2638, %v2694
        %v2696 = vpop.f32.mrf.mxu0
        %v2697 = vadd.f32 %v2638, %v2696
        %v2698 = vpop.f32.mrf.mxu0
        %v2699 = vadd.f32 %v2642, %v2698
        %v2700 = vpop.f32.mrf.mxu0
        %v2701 = vadd.f32 %v2642, %v2700
        %2702 = vdwg.mxu0
        %v2703 = vxor.u32 %v2685, 2147483648
        %v2704 = vxor.u32 %v2687, 2147483648
        %v2705 = vxor.u32 %v2689, 2147483648
        %v2706 = vxor.u32 %v2691, 2147483648
        %v2707 = vxor.u32 %v2695, 2147483648
        %v2708 = vxor.u32 %v2697, 2147483648
        %v2709 = vxor.u32 %v2699, 2147483648
        %v2710 = vxor.u32 %v2701, 2147483648
        %v2711 = vmul.f32 %v2703, 1.442695
        %v2712 = vpow.pop %v2711
        %v2713 = vmul.f32 %v2704, 1.442695
        %v2714 = vpow.pop %v2713
        %v2715 = vmul.f32 %v2705, 1.442695
        %v2716 = vpow.pop %v2715
        %v2717 = vmul.f32 %v2706, 1.442695
        %v2718 = vpow.pop %v2717
        %v2719 = vmul.f32 %v2707, 1.442695
        %v2720 = vpow.pop %v2719
        %v2721 = vmul.f32 %v2708, 1.442695
        %v2722 = vpow.pop %v2721
        %v2723 = vmul.f32 %v2709, 1.442695
        %v2724 = vpow.pop %v2723
        %v2725 = vmul.f32 %v2710, 1.442695
        %v2726 = vpow.pop %v2725
        %v2727 = vadd.f32 %v2712, 1.0
        %v2728 = vadd.f32 %v2714, 1.0
        %v2729 = vadd.f32 %v2716, 1.0
        %v2730 = vadd.f32 %v2718, 1.0
        %v2731 = vadd.f32 %v2720, 1.0
        %v2732 = vadd.f32 %v2722, 1.0
        %v2733 = vadd.f32 %v2724, 1.0
        %v2734 = vadd.f32 %v2726, 1.0
        %v2735 = vrcp.pop %v2727
        %v2736 = vmul.f32 1.0, %v2735
        %v2737 = vrcp.pop %v2728
        %v2738 = vmul.f32 1.0, %v2737
        %v2739 = vrcp.pop %v2729
        %v2740 = vmul.f32 1.0, %v2739
        %v2741 = vrcp.pop %v2730
        %v2742 = vmul.f32 1.0, %v2741
        %v2743 = vrcp.pop %v2731
        %v2744 = vmul.f32 1.0, %v2743
        %v2745 = vrcp.pop %v2732
        %v2746 = vmul.f32 1.0, %v2745
        %v2747 = vrcp.pop %v2733
        %v2748 = vmul.f32 1.0, %v2747
        %v2749 = vrcp.pop %v2734
        %v2750 = vmul.f32 1.0, %v2749
        %v2751 = vmul.f32 %v2685, %v2736
        %v2752 = vmul.f32 %v2687, %v2738
        %v2753 = vmul.f32 %v2689, %v2740
        %v2754 = vmul.f32 %v2691, %v2742
        %v2755 = vmul.f32 %v2695, %v2744
        %v2756 = vmul.f32 %v2697, %v2746
        %v2757 = vmul.f32 %v2699, %v2748
        %v2758 = vmul.f32 %v2701, %v2750
        %v2759 = vpack.c.bf16 %v2753, %v2751
        %v2760 = vpack.c.bf16 %v2754, %v2752
        %v2761 = vpack.c.bf16 %v2757, %v2755
        %v2762 = vpack.c.bf16 %v2758, %v2756
        %2763 = vmatprep.subr.bf16.mxu0 0
        %2764 = vmatpush1.bf16.msra.mxu0 0
        %2765 = vmatprep.subr.bf16.mxu0 0
        %2766 = vmatpush1.bf16.msra.mxu0 0
        %2767 = vmatprep.subr.bf16.mxu0 0
        %2768 = vmatpush1.bf16.msra.mxu0 0
        %2769 = vmatprep.subr.bf16.mxu0 0
        %2770 = vmatpush1.bf16.msra.mxu0 0
        %2771 = vmatprep.subr.bf16.mxu0 0
        %2772 = vmatpush1.bf16.msra.mxu0 0
        %2773 = vmatprep.subr.bf16.mxu0 0
        %2774 = vmatpush1.bf16.msra.mxu0 0
        %2775 = vmatprep.subr.bf16.mxu0 %v2762
        %2776 = vmatpush1.bf16.msra.mxu0 %v2761
        %2777 = vmatprep.subr.bf16.mxu0 %v2760
        %2778 = vmatpush1.bf16.msra.mxu0 %v2759
        %2779 = vmatprep.subr.bf16.mxu0 0
        %2780 = vmatpush2.bf16.msra.mxu0 0
        %2781 = vmatprep.subr.bf16.mxu0 0
        %2782 = vmatpush2.bf16.msra.mxu0 0
        %2783 = vmatprep.subr.bf16.mxu0 0
        %2784 = vmatpush2.bf16.msra.mxu0 0
        %2785 = vmatprep.subr.bf16.mxu0 0
        %2786 = vmatpush2.bf16.msra.mxu0 0
        %2787 = vmatprep.subr.bf16.mxu0 0
        %2788 = vmatpush2.bf16.msra.mxu0 0
        %2789 = vmatprep.subr.bf16.mxu0 0
        %2790 = vmatpush2.bf16.msra.mxu0 0
        %2791 = vmatprep.subr.bf16.mxu0 0
        %2792 = vmatpush2.bf16.msra.mxu0 0
        %2793 = vmatprep.subr.bf16.mxu0 0
        %2794 = vmatpush2.bf16.msra.mxu0 0
        %2795 = vmatprep.mubr.bf16.mxu0 0
        %2796 = vmatmul.mubr.bf16.gmra.mxu0 %v1585
        %v2797 = vpop.f32.mrf.mxu0
        %v2798 = vadd.f32 0.0, %v2797
        %v2799 = vpop.f32.mrf.mxu0
        %v2800 = vadd.f32 0.0, %v2799
        %v2801 = vpop.f32.mrf.mxu0
        %v2802 = vpop.f32.mrf.mxu0
        %2803 = vdwg.mxu0
        %v2804 = vrot.slane %v2798, 4
        %v2805 = vmax.f32 %v2798, %v2804
        %v2806 = vrot.slane %v2805, 2
        %v2807 = vmax.f32 %v2805, %v2806
        %v2808 = vrot.slane %v2807, 1
        %v2809 = vmax.f32 %v2807, %v2808
        %v2810 = vrot.slane %v2800, 4
        %v2811 = vmax.f32 %v2800, %v2810
        %v2812 = vrot.slane %v2811, 2
        %v2813 = vmax.f32 %v2811, %v2812
        %v2814 = vrot.slane %v2813, 1
        %v2815 = vmax.f32 %v2813, %v2814
        %v2816 = vsub.f32 %v2798, %v2809
        %v2817 = vsub.f32 %v2800, %v2815
        %v2818 = vmul.f32 %v2816, 1.442695
        %v2819 = vpow.pop %v2818
        %v2820 = vmul.f32 %v2817, 1.442695
        %v2821 = vpow.pop %v2820
        %v2822 = vrot.slane %v2819, 4
        %v2823 = vadd.f32 %v2819, %v2822
        %v2824 = vrot.slane %v2823, 2
        %v2825 = vadd.f32 %v2823, %v2824
        %v2826 = vrot.slane %v2825, 1
        %v2827 = vadd.f32 %v2825, %v2826
        %v2828 = vrot.slane %v2821, 4
        %v2829 = vadd.f32 %v2821, %v2828
        %v2830 = vrot.slane %v2829, 2
        %v2831 = vadd.f32 %v2829, %v2830
        %v2832 = vrot.slane %v2831, 1
        %v2833 = vadd.f32 %v2831, %v2832
        %v2834 = vrcp.pop %v2827
        %v2835 = vrcp.pop %v2833
        %v2836 = vmul.f32 %v2819, %v2834
        %v2837 = vmul.f32 %v2821, %v2835
        %v2838 = vpack.c.bf16 %v2836, %v2836
        %v2839 = vpack.c.bf16 %v2837, %v2837
        %v2841 = vsel %vm1464, %v2838, 0
        %v2844 = vsel %vm1464, %v2839, 0
        %2846 = vmatprep.subr.bf16.mxu0 0
        %2847 = vmatpush1.bf16.msra.mxu0 0
        %2848 = vmatprep.subr.bf16.mxu0 0
        %2849 = vmatpush1.bf16.msra.mxu0 0
        %2850 = vmatprep.subr.bf16.mxu0 0
        %2851 = vmatpush1.bf16.msra.mxu0 0
        %2852 = vmatprep.subr.bf16.mxu0 0
        %2853 = vmatpush1.bf16.msra.mxu0 0
        %2854 = vmatprep.subr.bf16.mxu0 0
        %2855 = vmatpush1.bf16.msra.mxu0 0
        %2856 = vmatprep.subr.bf16.mxu0 0
        %2857 = vmatpush1.bf16.msra.mxu0 0
        %2858 = vmatprep.subr.bf16.mxu0 0
        %2859 = vmatpush1.bf16.msra.mxu0 0
        %2860 = vmatprep.subr.bf16.mxu0 %v2844
        %2861 = vmatpush1.bf16.msra.mxu0 %v2841
        %2862 = vmatprep.subr.bf16.mxu0 0
        %2863 = vmatpush2.bf16.msra.mxu0 0
        %2864 = vmatprep.subr.bf16.mxu0 0
        %2865 = vmatpush2.bf16.msra.mxu0 0
        %2866 = vmatprep.subr.bf16.mxu0 0
        %2867 = vmatpush2.bf16.msra.mxu0 0
        %2868 = vmatprep.subr.bf16.mxu0 0
        %2869 = vmatpush2.bf16.msra.mxu0 0
        %2870 = vmatprep.subr.bf16.mxu0 0
        %2871 = vmatpush2.bf16.msra.mxu0 0
        %2872 = vmatprep.subr.bf16.mxu0 0
        %2873 = vmatpush2.bf16.msra.mxu0 0
        %2874 = vmatprep.subr.bf16.mxu0 0
        %2875 = vmatpush2.bf16.msra.mxu0 0
        %2876 = vmatprep.subr.bf16.mxu0 0
        %2877 = vmatpush2.bf16.msra.mxu0 0
        %2878 = vmatprep.mubr.bf16.mxu0 0
        %2879 = vmatmul.mubr.bf16.gmra.mxu0 %v1666
        %v2880 = vpop.f32.mrf.mxu0
        %v2881 = vadd.f32 0.0, %v2880
        %v2882 = vpop.f32.mrf.mxu0
        %v2883 = vadd.f32 0.0, %v2882
        %v2884 = vpop.f32.mrf.mxu0
        %v2885 = vpop.f32.mrf.mxu0
        %2886 = vdwg.mxu0
        %2887 = vmatprep.subr.bf16.mxu0 0
        %2888 = vmatpush1.bf16.msra.mxu0 0
        %2889 = vmatprep.subr.bf16.mxu0 0
        %2890 = vmatpush1.bf16.msra.mxu0 0
        %2891 = vmatprep.subr.bf16.mxu0 0
        %2892 = vmatpush1.bf16.msra.mxu0 0
        %2893 = vmatprep.subr.bf16.mxu0 0
        %2894 = vmatpush1.bf16.msra.mxu0 0
        %2895 = vmatprep.subr.bf16.mxu0 0
        %2896 = vmatpush1.bf16.msra.mxu0 0
        %2897 = vmatprep.subr.bf16.mxu0 0
        %2898 = vmatpush1.bf16.msra.mxu0 0
        %2899 = vmatprep.subr.bf16.mxu0 %v2762
        %2900 = vmatpush1.bf16.msra.mxu0 %v2761
        %2901 = vmatprep.subr.bf16.mxu0 %v2760
        %2902 = vmatpush1.bf16.msra.mxu0 %v2759
        %2903 = vmatprep.subr.bf16.mxu0 0
        %2904 = vmatpush2.bf16.msra.mxu0 0
        %2905 = vmatprep.subr.bf16.mxu0 0
        %2906 = vmatpush2.bf16.msra.mxu0 0
        %2907 = vmatprep.subr.bf16.mxu0 0
        %2908 = vmatpush2.bf16.msra.mxu0 0
        %2909 = vmatprep.subr.bf16.mxu0 0
        %2910 = vmatpush2.bf16.msra.mxu0 0
        %2911 = vmatprep.subr.bf16.mxu0 0
        %2912 = vmatpush2.bf16.msra.mxu0 0
        %2913 = vmatprep.subr.bf16.mxu0 0
        %2914 = vmatpush2.bf16.msra.mxu0 0
        %2915 = vmatprep.subr.bf16.mxu0 0
        %2916 = vmatpush2.bf16.msra.mxu0 0
        %2917 = vmatprep.subr.bf16.mxu0 0
        %2918 = vmatpush2.bf16.msra.mxu0 0
        %2919 = vmatprep.mubr.bf16.mxu0 0
        %2920 = vmatmul.mubr.bf16.gmra.mxu0 %v1716
        %v2921 = vpop.f32.mrf.mxu0
        %v2922 = vadd.f32 %v2881, %v2921
        %v2923 = vpop.f32.mrf.mxu0
        %v2924 = vadd.f32 %v2883, %v2923
        %v2925 = vpop.f32.mrf.mxu0
        %v2926 = vpop.f32.mrf.mxu0
        %2927 = vdwg.mxu0
        %v2928 = vadd.f32 %v2922, %v1762
        %v2929 = vadd.f32 %v2924, %v1762
        %s2930 = sld [smem:[#allocation2 + $0x6]]
        %v2931 = vstv %s2930
        %v2932 = vmul.f32 %v2931, %v2550
        %v2933 = vmul.f32 %v2931, %v2551
        %s2934 = sld [smem:[#allocation2 + $0x7]]
        %v2935 = vstv %s2934
        %v2936 = vmul.f32 %v2935, %v2928
        %v2937 = vmul.f32 %v2935, %v2929
        %v2938 = vadd.f32 %v2932, %v2936
        %v2939 = vadd.f32 %v2933, %v2937
        %v2940 = vld [vmem:[%s17] sm:$0xf]
        %v2941 = vpack.c.bf16 %v2938, %v2938
        %v2942 = vpack.c.bf16 %v2939, %v2939
        %v2943 = vld [vmem:[%s18] sm:$0xff]
        %2945 = vset.pattern.permute.xlu0 0
        %2946 = vperm.xlu0 %2945, %v2943
        %v2947 = vpop.permute.xlu0 %2946
        %v2950 = vsel %vm1664, %v2940, 0
        %v2953 = vsel %vm1464, %v2941, 0
        %v2956 = vsel %vm1464, %v2942, 0
        %2958 = vmatprep.subr.bf16.mxu0 0
        %2959 = vmatpush1.bf16.msra.mxu0 0
        %2960 = vmatprep.subr.bf16.mxu0 0
        %2961 = vmatpush1.bf16.msra.mxu0 0
        %2962 = vmatprep.subr.bf16.mxu0 0
        %2963 = vmatpush1.bf16.msra.mxu0 0
        %2964 = vmatprep.subr.bf16.mxu0 0
        %2965 = vmatpush1.bf16.msra.mxu0 0
        %2966 = vmatprep.subr.bf16.mxu0 0
        %2967 = vmatpush1.bf16.msra.mxu0 0
        %2968 = vmatprep.subr.bf16.mxu0 0
        %2969 = vmatpush1.bf16.msra.mxu0 0
        %2970 = vmatprep.subr.bf16.mxu0 0
        %2971 = vmatpush1.bf16.msra.mxu0 0
        %2972 = vmatprep.subr.bf16.mxu0 %v2956
        %2973 = vmatpush1.bf16.msra.mxu0 %v2953
        %2974 = vmatprep.subr.bf16.mxu0 0
        %2975 = vmatpush2.bf16.msra.mxu0 0
        %2976 = vmatprep.subr.bf16.mxu0 0
        %2977 = vmatpush2.bf16.msra.mxu0 0
        %2978 = vmatprep.subr.bf16.mxu0 0
        %2979 = vmatpush2.bf16.msra.mxu0 0
        %2980 = vmatprep.subr.bf16.mxu0 0
        %2981 = vmatpush2.bf16.msra.mxu0 0
        %2982 = vmatprep.subr.bf16.mxu0 0
        %2983 = vmatpush2.bf16.msra.mxu0 0
        %2984 = vmatprep.subr.bf16.mxu0 0
        %2985 = vmatpush2.bf16.msra.mxu0 0
        %2986 = vmatprep.subr.bf16.mxu0 0
        %2987 = vmatpush2.bf16.msra.mxu0 0
        %2988 = vmatprep.subr.bf16.mxu0 0
        %2989 = vmatpush2.bf16.msra.mxu0 0
        %2990 = vmatprep.mubr.bf16.mxu0 0
        %2991 = vmatmul.mubr.bf16.gmra.mxu0 %v2950
        %v2992 = vpop.f32.mrf.mxu0
        %v2993 = vadd.f32 %v2947, %v2992
        %v2994 = vpop.f32.mrf.mxu0
        %v2995 = vadd.f32 %v2947, %v2994
        %v2996 = vpop.f32.mrf.mxu0
        %v2997 = vpop.f32.mrf.mxu0
        %2998 = vdwg.mxu0
        %v2999 = vadd.f32 %v2993, 1.0
        %v3000 = vadd.f32 %v2995, 1.0
        %v3001 = vmul.f32 %v2999, 0.5
        %v3002 = vmul.f32 %v3000, 0.5
        %v3003 = vmax.f32 %v3001, 0.0
        %v3004 = vmax.f32 %v3002, 0.0
        %v3005 = vmin.f32 %v3003, 1.0
        %v3006 = vmin.f32 %v3004, 1.0
        %3007 = vst [vmem:[%s633] sm:$0xff] %v3005
        %3008 = vst [vmem:[%s633 + $0x8] sm:$0xff] %v3006
        %p3009 = scmp.lt.s32.totalorder %s31, 1
        %s3010 = scalar_select %p3009, %s31, 1
        %s3011 = smul.addr %s3010, 2
        %s3012 = smul.addr %s3011, 8
        %s3013 = scalar_lea.vmem %s19, %s3012
        // Predicated region
        $region101: #{dm_forward.1} parent=95 // pred_check
          %p3014 = pneg %p458
        $region102: #{dm_forward.1} parent=95 // pred_check_branch
          %3016 = sbr.rel (%p3014) target = $region104
        $region103: #{dm_forward.1} parent=95 // pred_region
          _
        $region104: #{dm_forward.1} parent=95 // pred_fallthru
          _
      $region96: #{dm_forward.1} parent=5 // pred_fallthru
        _
      %p3017 = scmp.le.s32.totalorder 2, %s26
      // Predicated region
      $region105: #{dm_forward.1} parent=5 // pred_check
        %p3018 = pneg %p3017
      $region106: #{dm_forward.1} parent=5 // pred_check_branch
        %3020 = sbr.rel (%p3018) target = $region108
      $region107: #{dm_forward.1} parent=5 // pred_region
        %s3021 = ssub.s32 %s26, 2
        // Predicated region
        $region109: #{dm_forward.1} parent=107 // pred_check
          %p3022 = pneg %p464
        $region110: #{dm_forward.1} parent=107 // pred_check_branch
          %3024 = sbr.rel (%p3022) target = $region112
        $region111: #{dm_forward.1} parent=107 // pred_region
          %p3025 = scmp.lt.s32.totalorder %s32, 1
          %s3026 = scalar_select %p3025, %s32, 1
          %s3027 = smul.addr %s3026, 2
          %s3028 = smul.addr %s3027, 8
          %s3029 = scalar_lea.vmem %s19, %s3028
        $region112: #{dm_forward.1} parent=107 // pred_fallthru
          _
      $region108: #{dm_forward.1} parent=5 // pred_fallthru
        _
    $region6: #{dm_forward.1} parent=1 // loop_footer
      %s30 = sadd.s32 1, %s26
    $region7: #{dm_forward.1} parent=1 // loop_footer_branch
      %25 = sbr.rel target = $region3
    $region8: #{dm_forward.1} parent=1 // loop_exit
      _
    %3030 = vsyncpa [#allocation3], 1
    %s3031 = scalar_lea.sflag [#allocation3], 1
    %3032 = vsyncpa %s3031, 1

</llo_original>
